<compile_context>
chip_gen: v7x
topology: tpu7x:2x2x1
jax: 0.10.0
libtpu: 0.0.40
codegen_flags: <defaults>
</compile_context>

<pallas_src>
import jax
import jax.numpy as jnp
from jax.experimental import pallas as pl
from jax.experimental.pallas import tpu as pltpu

BN_EPS = 1e-5
NEG_BIG = -1e30  # finite "-inf" for padded fc output lanes (exp underflows to 0)

# Packed-bias layout (f32, [1, 512]):  0:256 b2 | 256:384 b3 | 384:512 bfc (10 real + pad)
B2_LO, B2_HI = 0, 256
B3_LO, B3_HI = 256, 384
BF_LO, BF_HI = 384, 512


def net_kernel(x_ref, w1b_ref, w2_ref, w3_ref, wf_ref, bias_ref, out_ref):
    # x tile: [TB, 128] bf16. Lanes 0..99 = BN-folded features, lane 100 = 1.0
    # (drives the bias row of w1b), lanes 101..127 = 0.
    x = x_ref[...]

    b2 = bias_ref[:, B2_LO:B2_HI]          # [1, 256] f32
    b3 = bias_ref[:, B3_LO:B3_HI]          # [1, 128] f32
    bf = bias_ref[:, BF_LO:BF_HI]          # [1, 128] f32 (lanes 10.. = -1e30)

    # One pass of x through the MXU: merged [128, 640] weight =
    #   cols 0:512  -> branch1 Linear(100,512) (+ bias via ones-lane)
    #   cols 512:640-> branch2 Linear(100,128) (+ bias via ones-lane)
    h0 = jnp.dot(x, w1b_ref[...], preferred_element_type=jnp.float32)     # [TB, 640]

    # branch1 tail: ReLU -> Linear(512,256)+ReLU -> Linear(256,128)
    h = jnp.maximum(h0[:, :512], 0.0).astype(jnp.bfloat16)
    h = jnp.maximum(
        jnp.dot(h, w2_ref[...], preferred_element_type=jnp.float32) + b2,
        0.0).astype(jnp.bfloat16)
    x1 = jnp.dot(h, w3_ref[...], preferred_element_type=jnp.float32) + b3  # [TB, 128]
    x2 = h0[:, 512:]                                                       # [TB, 128]

    # ReLU(concat(x1, x2)) @ Wfc + bfc as a single K=256 matmul (aligned lane concat).
    x1 = jnp.maximum(x1, 0.0).astype(jnp.bfloat16)
    x2 = jnp.maximum(x2, 0.0).astype(jnp.bfloat16)
    cat = jnp.concatenate([x1, x2], axis=-1)                               # [TB, 256]
    logits = jnp.dot(cat, wf_ref[...], preferred_element_type=jnp.float32) + bf

    # Softmax over the (lane-padded) class axis; padded lanes contribute exactly 0.
    m = jnp.max(logits, axis=-1, keepdims=True)
    e = jnp.exp(logits - m)
    s = jnp.sum(e, axis=-1, keepdims=True)
    r = pl.reciprocal(s, approx=True)
    r = r * (2.0 - s * r)                  # one Newton step -> ~exact normalization
    out_ref[...] = e[:, :16] * r           # thin [TB, 16] f32 output (classes 0..9 + zeros)


def net_forward(x, kp, *, tb=1024):
    """x: [B, 100] float32. Returns [B, 10] float32 softmax probabilities."""
    B = x.shape[0]
    # Cap the tile at the (sublane-rounded) batch; keep it a multiple of 8.
    tb = max(8, min(tb, ((B + 7) // 8) * 8))
    tb -= tb % 8
    n_tiles = pl.cdiv(B, tb)
    Bp = n_tiles * tb

    # Prep pass: bf16 cast, append the bias ones-lane (col 100), pad K 100 -> 128
    # and batch B -> Bp.
    # TODO(synk): in a real pipeline, fuse this pad/cast into x's producer (or stream
    #             f32 [B,100] and cast/pad in-kernel) to avoid the extra HBM pass.
    xb = jnp.concatenate([x.astype(jnp.bfloat16),
                          jnp.ones((B, 1), jnp.bfloat16)], axis=1)         # [B, 101]
    x_p = jnp.pad(xb, ((0, Bp - B), (0, 27)))                              # [Bp, 128]

    out = pl.pallas_call(
        net_kernel,
        out_shape=jax.ShapeDtypeStruct((Bp, 16), jnp.float32),
        grid_spec=pltpu.PrefetchScalarGridSpec(
            num_scalar_prefetch=0,
            grid=(n_tiles,),
            in_specs=[
                pl.BlockSpec((tb, 128), lambda i: (i, 0)),    # x tile (streamed)
                pl.BlockSpec((128, 640), lambda i: (0, 0)),   # merged w1|wb (+bias row), VMEM-resident
                pl.BlockSpec((512, 256), lambda i: (0, 0)),   # w2
                pl.BlockSpec((256, 128), lambda i: (0, 0)),   # w3
                pl.BlockSpec((256, 128), lambda i: (0, 0)),   # fused fc weight (K=256)
                pl.BlockSpec((1, 512), lambda i: (0, 0)),     # packed b2|b3|bfc (f32)
            ],
            out_specs=pl.BlockSpec((tb, 16), lambda i: (i, 0)),
        ),
        compiler_params=pltpu.CompilerParams(
            dimension_semantics=("parallel",)),
    )(x_p, kp["w1b"], kp["w2"], kp["w3"], kp["wf"], kp["biases"])

    return out[:B, :10]


def init_params(key):
    """PyTorch-convention params (weights stored as [in, out]); BN defaults."""
    def linear(k, fan_in, fan_out):
        kw, kb = jax.random.split(k)
        bound = 1.0 / jnp.sqrt(fan_in)
        w = jax.random.uniform(kw, (fan_in, fan_out), jnp.float32, -bound, bound)
        b = jax.random.uniform(kb, (fan_out,), jnp.float32, -bound, bound)
        return w, b

    keys = jax.random.split(key, 5)
    w1, b1 = linear(keys[0], 100, 512)
    w2, b2 = linear(keys[1], 512, 256)
    w3, b3 = linear(keys[2], 256, 128)
    wb, bb = linear(keys[3], 100, 128)
    wf, bf = linear(keys[4], 256, 10)
    return dict(
        gamma=jnp.ones((100,), jnp.float32), beta=jnp.zeros((100,), jnp.float32),
        rmean=jnp.zeros((100,), jnp.float32), rvar=jnp.ones((100,), jnp.float32),
        w1=w1, b1=b1, w2=w2, b2=b2, w3=w3, b3=b3, wb=wb, bb=bb, wf=wf, bf=bf,
    )


def prepare_kernel_params(p):
    """Fold eval BN into first-layer weights, merge branch2 into the first matmul,
    fold b1/bb into the MXU bias row, pad dims, pack remaining biases, cast bf16."""
    scale = p["gamma"] / jnp.sqrt(p["rvar"] + BN_EPS)      # [100]
    shift = p["beta"] - p["rmean"] * scale                 # [100]

    w1f = p["w1"] * scale[:, None]                         # [100, 512]
    b1f = p["b1"] + shift @ p["w1"]                        # [512]
    wbf = p["wb"] * scale[:, None]                         # [100, 128]
    bbf = p["bb"] + shift @ p["wb"]                        # [128]

    # Merged first-layer weight [128, 640]: rows 0..99 features, row 100 the folded
    # biases (x's ones-lane), rows 101..127 zero (K padded to 128).
    w_top = jnp.concatenate([w1f, wbf], axis=1)                          # [100, 640]
    bias_row = jnp.concatenate([b1f, bbf])[None, :]                      # [1, 640]
    w1b = jnp.concatenate(
        [w_top, bias_row, jnp.zeros((27, 640), jnp.float32)], axis=0)    # [128, 640]

    # fc weight kept as a single K=256 contraction; output dim 10 -> padded to 128,
    # with pad-lane bias = -1e30 so softmax gives exactly 0 there.
    wf = jnp.pad(p["wf"], ((0, 0), (0, 118)))                            # [256, 128]
    bfp = jnp.pad(p["bf"], (0, 118), constant_values=NEG_BIG)            # [128]

    biases = jnp.concatenate([p["b2"], p["b3"], bfp])[None, :]           # [1, 512]

    bf16 = lambda a: a.astype(jnp.bfloat16)
    return dict(
        w1b=bf16(w1b), w2=bf16(p["w2"]), w3=bf16(p["w3"]), wf=bf16(wf),
        biases=biases.astype(jnp.float32),
    )


def reference_forward(x, p):
    """Pure-f32 JAX reference of the original (unfolded) PyTorch eval forward."""
    xn = (x - p["rmean"]) / jnp.sqrt(p["rvar"] + BN_EPS) * p["gamma"] + p["beta"]
    h = jnp.maximum(xn @ p["w1"] + p["b1"], 0.0)
    h = jnp.maximum(h @ p["w2"] + p["b2"], 0.0)
    x1 = h @ p["w3"] + p["b3"]
    x2 = xn @ p["wb"] + p["bb"]
    cat = jnp.maximum(jnp.concatenate([x1, x2], axis=1), 0.0)
    logits = cat @ p["wf"] + p["bf"]
    return jax.nn.softmax(logits, axis=-1)


def reference_forward_bf16(x, kp):
    """Plain-JAX emulation of the kernel numerics (bf16 inputs/weights, f32 accum)."""
    f32, bf16 = jnp.float32, jnp.bfloat16
    b = kp["biases"][0]
    b2, b3, bfc = b[B2_LO:B2_HI], b[B3_LO:B3_HI], b[BF_LO:BF_HI]
    xb = jnp.concatenate([x.astype(bf16), jnp.ones((x.shape[0], 1), bf16)], axis=1)
    xb = jnp.pad(xb, ((0, 0), (0, 27)))                                   # [B, 128]
    h0 = jnp.dot(xb, kp["w1b"], preferred_element_type=f32)               # [B, 640]
    h = jnp.maximum(h0[:, :512], 0.0).astype(bf16)
    h = jnp.maximum(jnp.dot(h, kp["w2"], preferred_element_type=f32) + b2, 0.0).astype(bf16)
    x1 = jnp.maximum(jnp.dot(h, kp["w3"], preferred_element_type=f32) + b3, 0.0).astype(bf16)
    x2 = jnp.maximum(h0[:, 512:], 0.0).astype(bf16)
    cat = jnp.concatenate([x1, x2], axis=-1)
    logits = jnp.dot(cat, kp["wf"], preferred_element_type=f32) + bfc
    return jax.nn.softmax(logits, axis=-1)[:, :10]


if __name__ == "__main__":
    key = jax.random.PRNGKey(0)
    kx, kparam = jax.random.split(key)

    B = 300  # exercises batch padding (300 -> 512) and a 2-step (even) "parallel" grid
    x = jax.random.normal(kx, (B, 100), jnp.float32)

    params = init_params(kparam)
    kernel_params = prepare_kernel_params(params)

    out = jax.block_until_ready(net_forward(x, kernel_params, tb=256))

    assert out.shape == (B, 10)
    assert bool(jnp.all(jnp.isfinite(out)))
    # Rows are valid probability distributions (Newton-refined reciprocal -> ~exact).
    assert jnp.allclose(jnp.sum(out, axis=-1), 1.0, atol=1e-3)

    # Tight check vs a bf16-emulating reference (isolates kernel mechanics).
    ref_bf16 = reference_forward_bf16(x, kernel_params)
    assert jnp.allclose(out, ref_bf16, atol=2e-3), float(jnp.max(jnp.abs(out - ref_bf16)))

    # Semantic check vs the full-precision PyTorch-equivalent forward
    # (loose tolerance only accounts for bf16 weight/activation quantization).
    ref_f32 = reference_forward(x, params)
    assert jnp.allclose(out, ref_f32, atol=3e-2), float(jnp.max(jnp.abs(out - ref_f32)))

    print("KERNEL_OK")
</pallas_src>

<mosaic_0001>
module attributes {stable_mosaic.version = 11 : i64} {
  func.func @net_kernel(%arg0: i32, %arg1: memref<256x128xbf16, #tpu.memory_space<vmem>>, %arg2: memref<128x640xbf16, #tpu.memory_space<vmem>>, %arg3: memref<512x256xbf16, #tpu.memory_space<vmem>>, %arg4: memref<256x128xbf16, #tpu.memory_space<vmem>>, %arg5: memref<256x128xbf16, #tpu.memory_space<vmem>>, %arg6: memref<1x512xf32, #tpu.memory_space<vmem>>, %arg7: memref<256x16xf32, #tpu.memory_space<vmem>>) attributes {dimension_semantics = [#tpu.dimension_semantics<parallel>], iteration_bounds = array<i64: 2>, scalar_prefetch = 0 : i64, scratch_operands = 0 : i64, tpu.core_type = #tpu.core_type<tc>, window_params = [{transform_indices = @transform_0, window_bounds = array<i64: 256, 128>}, {pipeline_mode = #tpu.pipeline_mode<synchronous>, transform_indices = @transform_1, window_bounds = array<i64: 128, 640>}, {pipeline_mode = #tpu.pipeline_mode<synchronous>, transform_indices = @transform_2, window_bounds = array<i64: 512, 256>}, {pipeline_mode = #tpu.pipeline_mode<synchronous>, transform_indices = @transform_3, window_bounds = array<i64: 256, 128>}, {pipeline_mode = #tpu.pipeline_mode<synchronous>, transform_indices = @transform_4, window_bounds = array<i64: 256, 128>}, {pipeline_mode = #tpu.pipeline_mode<synchronous>, transform_indices = @transform_5, window_bounds = array<i64: 1, 512>}, {transform_indices = @transform_6, window_bounds = array<i64: 256, 16>}]} {
    %c0 = arith.constant 0 : index
    %c0_0 = arith.constant 0 : index
    %0 = vector.load %arg1[%c0, %c0_0] : memref<256x128xbf16, #tpu.memory_space<vmem>>, vector<256x128xbf16>
    %c0_1 = arith.constant 0 : index
    %c0_2 = arith.constant 0 : index
    %1 = vector.load %arg6[%c0_1, %c0_2] : memref<1x512xf32, #tpu.memory_space<vmem>>, vector<1x256xf32>
    %c0_3 = arith.constant 0 : index
    %c256 = arith.constant 256 : index
    %2 = vector.load %arg6[%c0_3, %c256] : memref<1x512xf32, #tpu.memory_space<vmem>>, vector<1x128xf32>
    %c0_4 = arith.constant 0 : index
    %c384 = arith.constant 384 : index
    %3 = vector.load %arg6[%c0_4, %c384] : memref<1x512xf32, #tpu.memory_space<vmem>>, vector<1x128xf32>
    %c0_5 = arith.constant 0 : index
    %c0_6 = arith.constant 0 : index
    %4 = vector.load %arg2[%c0_5, %c0_6] : memref<128x640xbf16, #tpu.memory_space<vmem>>, vector<128x640xbf16>
    %cst = arith.constant dense<0.000000e+00> : vector<256x640xf32>
    %5 = tpu.matmul %0, %4, %cst {dimension_numbers = #tpu.dot_dimension_numbers<[1], [0], [0], [1], [0, 0, 1, 1], [], []>} : vector<256x128xbf16>, vector<128x640xbf16>, vector<256x640xf32> -> vector<256x640xf32>
    %6 = vector.extract_strided_slice %5 {offsets = [0, 0], sizes = [256, 512], strides = [1, 1]} : vector<256x640xf32> to vector<256x512xf32>
    %cst_7 = arith.constant 0.000000e+00 : f32
    %7 = vector.broadcast %cst_7 : f32 to vector<256x512xf32>
    %8 = arith.maximumf %6, %7 : vector<256x512xf32>
    %9 = arith.truncf %8 : vector<256x512xf32> to vector<256x512xbf16>
    %c0_8 = arith.constant 0 : index
    %c0_9 = arith.constant 0 : index
    %10 = vector.load %arg3[%c0_8, %c0_9] : memref<512x256xbf16, #tpu.memory_space<vmem>>, vector<512x256xbf16>
    %cst_10 = arith.constant dense<0.000000e+00> : vector<256x256xf32>
    %11 = tpu.matmul %9, %10, %cst_10 {dimension_numbers = #tpu.dot_dimension_numbers<[1], [0], [0], [1], [0, 0, 1, 1], [], []>} : vector<256x512xbf16>, vector<512x256xbf16>, vector<256x256xf32> -> vector<256x256xf32>
    %12 = vector.broadcast %1 : vector<1x256xf32> to vector<256x256xf32>
    %13 = arith.addf %11, %12 : vector<256x256xf32>
    %cst_11 = arith.constant 0.000000e+00 : f32
    %14 = vector.broadcast %cst_11 : f32 to vector<256x256xf32>
    %15 = arith.maximumf %13, %14 : vector<256x256xf32>
    %16 = arith.truncf %15 : vector<256x256xf32> to vector<256x256xbf16>
    %c0_12 = arith.constant 0 : index
    %c0_13 = arith.constant 0 : index
    %17 = vector.load %arg4[%c0_12, %c0_13] : memref<256x128xbf16, #tpu.memory_space<vmem>>, vector<256x128xbf16>
    %cst_14 = arith.constant dense<0.000000e+00> : vector<256x128xf32>
    %18 = tpu.matmul %16, %17, %cst_14 {dimension_numbers = #tpu.dot_dimension_numbers<[1], [0], [0], [1], [0, 0, 1, 1], [], []>} : vector<256x256xbf16>, vector<256x128xbf16>, vector<256x128xf32> -> vector<256x128xf32>
    %19 = vector.broadcast %2 : vector<1x128xf32> to vector<256x128xf32>
    %20 = arith.addf %18, %19 : vector<256x128xf32>
    %21 = vector.extract_strided_slice %5 {offsets = [0, 512], sizes = [256, 128], strides = [1, 1]} : vector<256x640xf32> to vector<256x128xf32>
    %cst_15 = arith.constant 0.000000e+00 : f32
    %22 = vector.broadcast %cst_15 : f32 to vector<256x128xf32>
    %23 = arith.maximumf %20, %22 : vector<256x128xf32>
    %24 = arith.truncf %23 : vector<256x128xf32> to vector<256x128xbf16>
    %cst_16 = arith.constant 0.000000e+00 : f32
    %25 = vector.broadcast %cst_16 : f32 to vector<256x128xf32>
    %26 = arith.maximumf %21, %25 : vector<256x128xf32>
    %27 = arith.truncf %26 : vector<256x128xf32> to vector<256x128xbf16>
    %28 = tpu.concatenate %24, %27 in 1 : vector<256x128xbf16>, vector<256x128xbf16> -> vector<256x256xbf16>
    %c0_17 = arith.constant 0 : index
    %c0_18 = arith.constant 0 : index
    %29 = vector.load %arg5[%c0_17, %c0_18] : memref<256x128xbf16, #tpu.memory_space<vmem>>, vector<256x128xbf16>
    %cst_19 = arith.constant dense<0.000000e+00> : vector<256x128xf32>
    %30 = tpu.matmul %28, %29, %cst_19 {dimension_numbers = #tpu.dot_dimension_numbers<[1], [0], [0], [1], [0, 0, 1, 1], [], []>} : vector<256x256xbf16>, vector<256x128xbf16>, vector<256x128xf32> -> vector<256x128xf32>
    %31 = vector.broadcast %3 : vector<1x128xf32> to vector<256x128xf32>
    %32 = arith.addf %30, %31 : vector<256x128xf32>
    %cst_20 = arith.constant dense<0xFF800000> : vector<256xf32>
    %33 = vector.multi_reduction <maximumf>, %32, %cst_20 [1] : vector<256x128xf32> to vector<256xf32>
    %34 = vector.shape_cast %33 : vector<256xf32> to vector<256x1xf32>
    %35 = vector.broadcast %34 : vector<256x1xf32> to vector<256x128xf32>
    %36 = arith.subf %32, %35 : vector<256x128xf32>
    %37 = math.exp %36 : vector<256x128xf32>
    %cst_21 = arith.constant dense<0.000000e+00> : vector<256xf32>
    %38 = vector.multi_reduction <add>, %37, %cst_21 [1] : vector<256x128xf32> to vector<256xf32>
    %39 = vector.shape_cast %38 : vector<256xf32> to vector<256x1xf32>
    %40 = tpu.reciprocal %39 {approx = true} : vector<256x1xf32> -> vector<256x1xf32>
    %41 = arith.mulf %39, %40 : vector<256x1xf32>
    %cst_22 = arith.constant 2.000000e+00 : f32
    %42 = vector.broadcast %cst_22 : f32 to vector<256x1xf32>
    %43 = arith.subf %42, %41 : vector<256x1xf32>
    %44 = arith.mulf %40, %43 : vector<256x1xf32>
    %45 = vector.extract_strided_slice %37 {offsets = [0, 0], sizes = [256, 16], strides = [1, 1]} : vector<256x128xf32> to vector<256x16xf32>
    %46 = vector.broadcast %44 : vector<256x1xf32> to vector<256x16xf32>
    %47 = arith.mulf %45, %46 : vector<256x16xf32>
    %c0_23 = arith.constant 0 : index
    %c0_24 = arith.constant 0 : index
    %48 = vector.load %arg7[%c0_23, %c0_24] : memref<256x16xf32, #tpu.memory_space<vmem>>, vector<256x16xf32>
    tpu.vector_store %arg7[%c0_23, %c0_24], %47 {strides = array<i32>} : memref<256x16xf32, #tpu.memory_space<vmem>>, vector<256x16xf32>,
    return
  }
  func.func @transform_0(%arg0: i32) -> (i32, i32) {
    %c0_i32 = arith.constant 0 : i32
    %c0_i32_0 = arith.constant 0 : i32
    return %arg0, %c0_i32 : i32, i32
  }
  func.func @transform_1(%arg0: i32) -> (i32, i32) {
    %c0_i32 = arith.constant 0 : i32
    %c0_i32_0 = arith.constant 0 : i32
    %c0_i32_1 = arith.constant 0 : i32
    return %c0_i32, %c0_i32_0 : i32, i32
  }
  func.func @transform_2(%arg0: i32) -> (i32, i32) {
    %c0_i32 = arith.constant 0 : i32
    %c0_i32_0 = arith.constant 0 : i32
    %c0_i32_1 = arith.constant 0 : i32
    return %c0_i32, %c0_i32_0 : i32, i32
  }
  func.func @transform_3(%arg0: i32) -> (i32, i32) {
    %c0_i32 = arith.constant 0 : i32
    %c0_i32_0 = arith.constant 0 : i32
    %c0_i32_1 = arith.constant 0 : i32
    return %c0_i32, %c0_i32_0 : i32, i32
  }
  func.func @transform_4(%arg0: i32) -> (i32, i32) {
    %c0_i32 = arith.constant 0 : i32
    %c0_i32_0 = arith.constant 0 : i32
    %c0_i32_1 = arith.constant 0 : i32
    return %c0_i32, %c0_i32_0 : i32, i32
  }
  func.func @transform_5(%arg0: i32) -> (i32, i32) {
    %c0_i32 = arith.constant 0 : i32
    %c0_i32_0 = arith.constant 0 : i32
    %c0_i32_1 = arith.constant 0 : i32
    return %c0_i32, %c0_i32_0 : i32, i32
  }
  func.func @transform_6(%arg0: i32) -> (i32, i32) {
    %c0_i32 = arith.constant 0 : i32
    %c0_i32_0 = arith.constant 0 : i32
    return %arg0, %c0_i32 : i32, i32
  }
}

</mosaic_0001>

<llo_original>
// kernel: tpu_custom_call.1
$region0: #{tpu_custom_call.1}
  #allocation0 [shape = 'u32[]', space=smem, size = 0x4, offset = 0x4, fixed_abs, tag = 'smem constant byte address 0x4 - core index']
  #allocation1 [shape = 'u32[144,128]{1,0:T(1,128)}', space=vmem, size = 0x12000, scoped, tag = 'internal scratch']
  %s0 = inlined_call_operand.hbm [shape: bf16[512,128], index: 0, kind: input, shape index: {}]
  %s1 = inlined_call_operand.hbm [shape: bf16[128,640], index: 1, kind: input, shape index: {}]
  %s2 = inlined_call_operand.hbm [shape: bf16[512,256], index: 2, kind: input, shape index: {}]
  %s3 = inlined_call_operand.hbm [shape: bf16[256,128], index: 3, kind: input, shape index: {}]
  %s4 = inlined_call_operand.hbm [shape: bf16[256,128], index: 4, kind: input, shape index: {}]
  %s5 = inlined_call_operand.vmem [shape: f32[1,512], index: 5, kind: input, shape index: {}]
  %s6 = inlined_call_operand.vmem [shape: f32[512,16], index: 6, kind: output, shape index: {}]
  %s7 = sld [smem:[#allocation0]]
  $region77: #{tpu_custom_call.1} parent=0
    _
  %s9 = ssub.s32 1, %s7
  %s10 = scalar_select 0, %s9, %s7
  $region1: #{tpu_custom_call.1} parent=0
    #allocation2 [shape = 'u8[131072]{0}', space=vmem, size = 0x20000, scoped, tag = 'input window, operand 0']
    #allocation3 [shape = 's32[2]{0}', space=sflag, size = 0x8, scoped, tag = 'scoped memory for tpu_custom_call.1']
    #allocation4 [shape = 'u8[163840]{0}', space=vmem, size = 0x28000, scoped, tag = 'input window, operand 1, single buffered']
    #allocation5 [shape = 's32[1]{0}', space=sflag, size = 0x4, scoped, tag = 'scoped memory for tpu_custom_call.1']
    #allocation6 [shape = 'u8[262144]{0}', space=vmem, size = 0x40000, scoped, tag = 'input window, operand 2, single buffered']
    #allocation7 [shape = 'u8[65536]{0}', space=vmem, size = 0x10000, scoped, tag = 'input window, operand 3, single buffered']
    #allocation8 [shape = 's32[1]{0}', space=sflag, size = 0x4, scoped, tag = 'scoped memory for tpu_custom_call.1']
    #allocation9 [shape = 'u8[65536]{0}', space=vmem, size = 0x10000, scoped, tag = 'input window, operand 4, single buffered']
    %11 = vsyncpa [#allocation3], 0
    %s12 = scalar_lea.sflag [#allocation3], 1
    %13 = vsyncpa %s12, 0
    %14 = vsyncpa [#allocation5], 0
    %15 = vsyncpa [#allocation8], 0
    loop: start=0, step=1, limit=4
    $region2: #{tpu_custom_call.1} parent=1 // loop_pre_header
      _
    $region3: #{tpu_custom_call.1} parent=1 // loop_header
      %s17 = sphi 0, %s21
      %p18 = scmp.ge.s32.totalorder %s17, 4
      %s27 = sphi 0, %s29
      %s30 = sphi 0, %s27
      %s31 = sphi 0, %s30
      %s47 = sphi 0, %s31
      %s51 = sphi 0, %s51
      %s53 = sphi 0, %s51
      %s54 = sphi 0, %s53
      %s68 = sphi 0, %s54
      %s72 = sphi 0, %s72
      %s74 = sphi 0, %s72
      %s75 = sphi 0, %s74
      %s89 = sphi 0, %s75
      %s93 = sphi 0, %s93
      %s95 = sphi 0, %s93
      %s96 = sphi 0, %s95
      %s110 = sphi 0, %s96
      %s114 = sphi 0, %s114
      %s116 = sphi 0, %s114
      %s117 = sphi 0, %s116
      %s131 = sphi 0, %s117
      %s135 = sphi 0, %s135
      %s137 = sphi 0, %s135
      %s138 = sphi 0, %s137
      %s152 = sphi 0, %s138
      %s158 = sphi 0, %s160
      %s161 = sphi 0, %s158
      %s162 = sphi 0, %s161
      %s178 = sphi 0, %s162
    $region4: #{tpu_custom_call.1} parent=1 // loop_header_branch
      %20 = sbr.rel (%p18) target = $region8
    $region5: #{tpu_custom_call.1} parent=1 // loop_body
      %s22 = ssub.s32 %s17, 1
      %s23 = ssub.s32 %s17, 2
      %s24 = sadd.s32 %s17, 1
      %s25 = ssub.s32 %s17, %s24
      %p26 = scmp.eq.s32.totalorder %s25, 0
      %s28 = sadd.s32 %s27, 1
      %s29 = scalar_select %p26, %s27, %s28
      %p32 = pneg %p26
      %p33 = scmp.eq.s32.totalorder %s17, 1
      %p34 = por %p32, %p33
      %p35 = scmp.ne.s32.totalorder %s27, %s30
      %p36 = scmp.eq.s32.totalorder %s17, 0
      %p37 = por %p35, %p36
      %p38 = scmp.ne.s32.totalorder %s27, %s30
      %p39 = scmp.eq.s32.totalorder %s22, 1
      %p40 = por %p38, %p39
      %p41 = scmp.ne.s32.totalorder %s30, %s31
      %p42 = scmp.eq.s32.totalorder %s22, 0
      %p43 = por %p41, %p42
      %p44 = scmp.ne.s32.totalorder %s30, %s31
      %p45 = scmp.eq.s32.totalorder %s23, 1
      %p46 = por %p44, %p45
      %p48 = scmp.ne.s32.totalorder %s31, %s47
      %p49 = scmp.eq.s32.totalorder %s23, 0
      %p50 = por %p48, %p49
      %s52 = sadd.s32 %s51, 1
      %p55 = scmp.eq.s32.totalorder %s17, 1
      %p56 = scmp.ne.s32.totalorder %s51, %s53
      %p57 = scmp.eq.s32.totalorder %s17, 0
      %p58 = por %p56, %p57
      %p59 = scmp.ne.s32.totalorder %s51, %s53
      %p60 = scmp.eq.s32.totalorder %s22, 1
      %p61 = por %p59, %p60
      %p62 = scmp.ne.s32.totalorder %s53, %s54
      %p63 = scmp.eq.s32.totalorder %s22, 0
      %p64 = por %p62, %p63
      %p65 = scmp.ne.s32.totalorder %s53, %s54
      %p66 = scmp.eq.s32.totalorder %s23, 1
      %p67 = por %p65, %p66
      %p69 = scmp.ne.s32.totalorder %s54, %s68
      %p70 = scmp.eq.s32.totalorder %s23, 0
      %p71 = por %p69, %p70
      %s73 = sadd.s32 %s72, 1
      %p76 = scmp.eq.s32.totalorder %s17, 1
      %p77 = scmp.ne.s32.totalorder %s72, %s74
      %p78 = scmp.eq.s32.totalorder %s17, 0
      %p79 = por %p77, %p78
      %p80 = scmp.ne.s32.totalorder %s72, %s74
      %p81 = scmp.eq.s32.totalorder %s22, 1
      %p82 = por %p80, %p81
      %p83 = scmp.ne.s32.totalorder %s74, %s75
      %p84 = scmp.eq.s32.totalorder %s22, 0
      %p85 = por %p83, %p84
      %p86 = scmp.ne.s32.totalorder %s74, %s75
      %p87 = scmp.eq.s32.totalorder %s23, 1
      %p88 = por %p86, %p87
      %p90 = scmp.ne.s32.totalorder %s75, %s89
      %p91 = scmp.eq.s32.totalorder %s23, 0
      %p92 = por %p90, %p91
      %s94 = sadd.s32 %s93, 1
      %p97 = scmp.eq.s32.totalorder %s17, 1
      %p98 = scmp.ne.s32.totalorder %s93, %s95
      %p99 = scmp.eq.s32.totalorder %s17, 0
      %p100 = por %p98, %p99
      %p101 = scmp.ne.s32.totalorder %s93, %s95
      %p102 = scmp.eq.s32.totalorder %s22, 1
      %p103 = por %p101, %p102
      %p104 = scmp.ne.s32.totalorder %s95, %s96
      %p105 = scmp.eq.s32.totalorder %s22, 0
      %p106 = por %p104, %p105
      %p107 = scmp.ne.s32.totalorder %s95, %s96
      %p108 = scmp.eq.s32.totalorder %s23, 1
      %p109 = por %p107, %p108
      %p111 = scmp.ne.s32.totalorder %s96, %s110
      %p112 = scmp.eq.s32.totalorder %s23, 0
      %p113 = por %p111, %p112
      %s115 = sadd.s32 %s114, 1
      %p118 = scmp.eq.s32.totalorder %s17, 1
      %p119 = scmp.ne.s32.totalorder %s114, %s116
      %p120 = scmp.eq.s32.totalorder %s17, 0
      %p121 = por %p119, %p120
      %p122 = scmp.ne.s32.totalorder %s114, %s116
      %p123 = scmp.eq.s32.totalorder %s22, 1
      %p124 = por %p122, %p123
      %p125 = scmp.ne.s32.totalorder %s116, %s117
      %p126 = scmp.eq.s32.totalorder %s22, 0
      %p127 = por %p125, %p126
      %p128 = scmp.ne.s32.totalorder %s116, %s117
      %p129 = scmp.eq.s32.totalorder %s23, 1
      %p130 = por %p128, %p129
      %p132 = scmp.ne.s32.totalorder %s117, %s131
      %p133 = scmp.eq.s32.totalorder %s23, 0
      %p134 = por %p132, %p133
      %s136 = sadd.s32 %s135, 1
      %p139 = scmp.eq.s32.totalorder %s17, 1
      %p140 = scmp.ne.s32.totalorder %s135, %s137
      %p141 = scmp.eq.s32.totalorder %s17, 0
      %p142 = por %p140, %p141
      %p143 = scmp.ne.s32.totalorder %s135, %s137
      %p144 = scmp.eq.s32.totalorder %s22, 1
      %p145 = por %p143, %p144
      %p146 = scmp.ne.s32.totalorder %s137, %s138
      %p147 = scmp.eq.s32.totalorder %s22, 0
      %p148 = por %p146, %p147
      %p149 = scmp.ne.s32.totalorder %s137, %s138
      %p150 = scmp.eq.s32.totalorder %s23, 1
      %p151 = por %p149, %p150
      %p153 = scmp.ne.s32.totalorder %s138, %s152
      %p154 = scmp.eq.s32.totalorder %s23, 0
      %p155 = por %p153, %p154
      %s156 = ssub.s32 %s17, %s24
      %p157 = scmp.eq.s32.totalorder %s156, 0
      %s159 = sadd.s32 %s158, 1
      %s160 = scalar_select %p157, %s158, %s159
      %p163 = pneg %p157
      %p164 = scmp.eq.s32.totalorder %s17, 1
      %p165 = por %p163, %p164
      %p166 = scmp.ne.s32.totalorder %s158, %s161
      %p167 = scmp.eq.s32.totalorder %s17, 0
      %p168 = por %p166, %p167
      %p169 = scmp.ne.s32.totalorder %s158, %s161
      %p170 = scmp.eq.s32.totalorder %s22, 1
      %p171 = por %p169, %p170
      %p172 = scmp.ne.s32.totalorder %s161, %s162
      %p173 = scmp.eq.s32.totalorder %s22, 0
      %p174 = por %p172, %p173
      %p175 = scmp.ne.s32.totalorder %s161, %s162
      %p176 = scmp.eq.s32.totalorder %s23, 1
      %p177 = por %p175, %p176
      %p179 = scmp.ne.s32.totalorder %s162, %s178
      %p180 = scmp.eq.s32.totalorder %s23, 0
      %p181 = por %p179, %p180
      %p182 = scmp.le.s32.totalorder 1, %s17
      %p183 = scmp.lt.s32.totalorder %s17, 3
      %p184 = pnand %p182, %p183
      %p185 = pneg %p184
      // Predicated region
      $region9: #{tpu_custom_call.1} parent=5 // pred_check
        _
      $region10: #{tpu_custom_call.1} parent=5 // pred_check_branch
        %187 = sbr.rel (%p184) target = $region12
      $region11: #{tpu_custom_call.1} parent=5 // pred_region
        %s188 = ssub.s32 %s17, 1
        // Predicated region
        $region13: #{tpu_custom_call.1} parent=11 // pred_check
          %p189 = pneg %p64
        $region14: #{tpu_custom_call.1} parent=11 // pred_check_branch
          %191 = sbr.rel (%p189) target = $region16
        $region15: #{tpu_custom_call.1} parent=11 // pred_region
          %s193 = ssub.s32 5120, 5120
          %194 = vsyncadd [#allocation5], %s193
          %s195 = sshll.u32 [#allocation4], 4
          %s196 = int_to_ptr.vmem [resolvable:$true] %s195
          %201 = dma.hbm_to_vmem [thread:$0]  %s1, 5120, %s196, [#allocation5], 320, 320, 20
        $region16: #{tpu_custom_call.1} parent=11 // pred_fallthru
          _
        // Predicated region
        $region17: #{tpu_custom_call.1} parent=11 // pred_check
          %p202 = pneg %p85
        $region18: #{tpu_custom_call.1} parent=11 // pred_check_branch
          %204 = sbr.rel (%p202) target = $region20
        $region19: #{tpu_custom_call.1} parent=11 // pred_region
          %s206 = ssub.s32 8192, 8192
          %207 = vsyncadd [#allocation5], %s206
          %s208 = sshll.u32 [#allocation6], 4
          %s209 = int_to_ptr.vmem [resolvable:$true] %s208
          %214 = dma.hbm_to_vmem [thread:$0]  %s2, 8192, %s209, [#allocation5], 128, 128, 8
        $region20: #{tpu_custom_call.1} parent=11 // pred_fallthru
          _
        // Predicated region
        $region21: #{tpu_custom_call.1} parent=11 // pred_check
          %p215 = pneg %p106
        $region22: #{tpu_custom_call.1} parent=11 // pred_check_branch
          %217 = sbr.rel (%p215) target = $region24
        $region23: #{tpu_custom_call.1} parent=11 // pred_region
          %s219 = ssub.s32 2048, 2048
          %220 = vsyncadd [#allocation8], %s219
          %s221 = sshll.u32 [#allocation7], 4
          %s222 = int_to_ptr.vmem [resolvable:$true] %s221
          %227 = dma.hbm_to_vmem [thread:$0]  %s3, 2048, %s222, [#allocation8], 64, 64, 4
        $region24: #{tpu_custom_call.1} parent=11 // pred_fallthru
          _
        // Predicated region
        $region25: #{tpu_custom_call.1} parent=11 // pred_check
          %p228 = pneg %p127
        $region26: #{tpu_custom_call.1} parent=11 // pred_check_branch
          %230 = sbr.rel (%p228) target = $region28
        $region27: #{tpu_custom_call.1} parent=11 // pred_region
          %s232 = ssub.s32 2048, 2048
          %233 = vsyncadd [#allocation8], %s232
          %s234 = sshll.u32 [#allocation9], 4
          %s235 = int_to_ptr.vmem [resolvable:$true] %s234
          %240 = dma.hbm_to_vmem [thread:$0]  %s4, 2048, %s235, [#allocation8], 64, 64, 4
        $region28: #{tpu_custom_call.1} parent=11 // pred_fallthru
          _
        // Predicated region
        $region29: #{tpu_custom_call.1} parent=11 // pred_check
          %p241 = pneg %p148
        $region30: #{tpu_custom_call.1} parent=11 // pred_check_branch
          %243 = sbr.rel (%p241) target = $region32
        $region31: #{tpu_custom_call.1} parent=11 // pred_region
          _
        $region32: #{tpu_custom_call.1} parent=11 // pred_fallthru
          _
      $region12: #{tpu_custom_call.1} parent=5 // pred_fallthru
        _
      %p244 = scmp.lt.s32.totalorder %s17, 2
      // Predicated region
      $region33: #{tpu_custom_call.1} parent=5 // pred_check
        %p245 = pneg %p244
      $region34: #{tpu_custom_call.1} parent=5 // pred_check_branch
        %247 = sbr.rel (%p245) target = $region36
      $region35: #{tpu_custom_call.1} parent=5 // pred_region
        // Predicated region
        $region37: #{tpu_custom_call.1} parent=35 // pred_check
          %p248 = pneg %p37
        $region38: #{tpu_custom_call.1} parent=35 // pred_check_branch
          %250 = sbr.rel (%p248) target = $region40
        $region39: #{tpu_custom_call.1} parent=35 // pred_region
          %s251 = sand.u32 %s27, 1
          %s252 = scalar_lea.sflag [#allocation3], %s251
          %s253 = sand.u32 %s27, 1
          %s254 = smul.addr %s253, 128
          %s255 = scalar_lea.vmem [#allocation2], %s254
          %s256 = smul.u32 32, %s17
          %s258 = ssub.s32 2048, 2048
          %259 = vsyncadd %s252, %s258
          %s260 = smul.addr %s256, 64
          %s261 = scalar_lea.hbm %s0, %s260
          %s262 = sshll.u32 %s255, 4
          %s263 = int_to_ptr.vmem [resolvable:$true] %s262
          %268 = dma.hbm_to_vmem [thread:$0]  %s261, 2048, %s263, %s252, 64, 64, 4
        $region40: #{tpu_custom_call.1} parent=35 // pred_fallthru
          _
      $region36: #{tpu_custom_call.1} parent=5 // pred_fallthru
        _
      %p269 = scmp.le.s32.totalorder 1, %s17
      %p270 = scmp.lt.s32.totalorder %s17, 3
      %p271 = pnand %p269, %p270
      %p272 = pneg %p271
      // Predicated region
      $region41: #{tpu_custom_call.1} parent=5 // pred_check
        _
      $region42: #{tpu_custom_call.1} parent=5 // pred_check_branch
        %274 = sbr.rel (%p271) target = $region44
      $region43: #{tpu_custom_call.1} parent=5 // pred_region
        %s275 = ssub.s32 %s17, 1
        %s276 = sand.u32 %s30, 1
        %s277 = scalar_lea.sflag [#allocation3], %s276
        %s278 = sand.u32 %s30, 1
        %s279 = smul.addr %s278, 128
        %s280 = scalar_lea.vmem [#allocation2], %s279
        // Predicated region
        $region45: #{tpu_custom_call.1} parent=43 // pred_check
          %p281 = pneg %p43
        $region46: #{tpu_custom_call.1} parent=43 // pred_check_branch
          %283 = sbr.rel (%p281) target = $region48
        $region47: #{tpu_custom_call.1} parent=43 // pred_region
          %284 = dma.done %s277, 2048
        $region48: #{tpu_custom_call.1} parent=43 // pred_fallthru
          _
        // Predicated region
        $region49: #{tpu_custom_call.1} parent=43 // pred_check
          %p285 = pneg %p64
        $region50: #{tpu_custom_call.1} parent=43 // pred_check_branch
          %287 = sbr.rel (%p285) target = $region52
        $region51: #{tpu_custom_call.1} parent=43 // pred_region
          %288 = dma.done [#allocation5], 5120
        $region52: #{tpu_custom_call.1} parent=43 // pred_fallthru
          _
        // Predicated region
        $region53: #{tpu_custom_call.1} parent=43 // pred_check
          %p289 = pneg %p85
        $region54: #{tpu_custom_call.1} parent=43 // pred_check_branch
          %291 = sbr.rel (%p289) target = $region56
        $region55: #{tpu_custom_call.1} parent=43 // pred_region
          %292 = dma.done [#allocation5], 8192
        $region56: #{tpu_custom_call.1} parent=43 // pred_fallthru
          _
        // Predicated region
        $region57: #{tpu_custom_call.1} parent=43 // pred_check
          %p293 = pneg %p106
        $region58: #{tpu_custom_call.1} parent=43 // pred_check_branch
          %295 = sbr.rel (%p293) target = $region60
        $region59: #{tpu_custom_call.1} parent=43 // pred_region
          %296 = dma.done [#allocation8], 2048
        $region60: #{tpu_custom_call.1} parent=43 // pred_fallthru
          _
        // Predicated region
        $region61: #{tpu_custom_call.1} parent=43 // pred_check
          %p297 = pneg %p127
        $region62: #{tpu_custom_call.1} parent=43 // pred_check_branch
          %299 = sbr.rel (%p297) target = $region64
        $region63: #{tpu_custom_call.1} parent=43 // pred_region
          %300 = dma.done [#allocation8], 2048
        $region64: #{tpu_custom_call.1} parent=43 // pred_fallthru
          _
        %s301 = sand.u32 %s30, 1
        %s302 = scalar_lea.sflag [#allocation3], %s301
        %s303 = sand.u32 %s30, 1
        %s304 = smul.addr %s303, 128
        %s305 = scalar_lea.vmem [#allocation2], %s304
        %p306 = pneg %p43
        %p307 = pneg %p40
        %p308 = pneg %p64
        %p309 = pneg %p61
        %p310 = pneg %p85
        %p311 = pneg %p82
        %p312 = pneg %p106
        %p313 = pneg %p103
        %p314 = pneg %p127
        %p315 = pneg %p124
        %p316 = pneg %p148
        %p317 = pneg %p145
        %p318 = pneg %p174
        %p319 = pneg %p171
        %s320 = smul.u32 32, %s22
        %p321 = scmp.lt.s32.totalorder %s320, 63
        %s322 = scalar_select %p321, %s320, 63
        %s323 = smul.addr %s322, 8
        %s324 = scalar_lea.vmem %s6, %s323
        %s325 = smul.u32 32, %s22
        %s326 = smul.u32 32, %s22
        %p327 = scmp.lt.s32.totalorder %s326, 63
        %s328 = scalar_select %p327, %s326, 63
        %s329 = smul.addr %s328, 8
        %s330 = scalar_lea.vmem %s6, %s329
        %s331 = smul.u32 32, %s22
        %v333 = vld [vmem:[%s280] sm:$0xf]
        %v334 = vld [vmem:[%s280 + $0x4] sm:$0xf]
        %v335 = vld [vmem:[%s280 + $0x8] sm:$0xf]
        %v336 = vld [vmem:[%s280 + $0xc] sm:$0xf]
        %v337 = vld [vmem:[%s280 + $0x10] sm:$0xf]
        %v338 = vld [vmem:[%s280 + $0x14] sm:$0xf]
        %v339 = vld [vmem:[%s280 + $0x18] sm:$0xf]
        %v340 = vld [vmem:[%s280 + $0x1c] sm:$0xf]
        %v341 = vld [vmem:[%s280 + $0x20] sm:$0xf]
        %v342 = vld [vmem:[%s280 + $0x24] sm:$0xf]
        %v343 = vld [vmem:[%s280 + $0x28] sm:$0xf]
        %v344 = vld [vmem:[%s280 + $0x2c] sm:$0xf]
        %v345 = vld [vmem:[%s280 + $0x30] sm:$0xf]
        %v346 = vld [vmem:[%s280 + $0x34] sm:$0xf]
        %v347 = vld [vmem:[%s280 + $0x38] sm:$0xf]
        %v348 = vld [vmem:[%s280 + $0x3c] sm:$0xf]
        %v349 = vld [vmem:[%s280 + $0x40] sm:$0xf]
        %v350 = vld [vmem:[%s280 + $0x44] sm:$0xf]
        %v351 = vld [vmem:[%s280 + $0x48] sm:$0xf]
        %v352 = vld [vmem:[%s280 + $0x4c] sm:$0xf]
        %v353 = vld [vmem:[%s280 + $0x50] sm:$0xf]
        %v354 = vld [vmem:[%s280 + $0x54] sm:$0xf]
        %v355 = vld [vmem:[%s280 + $0x58] sm:$0xf]
        %v356 = vld [vmem:[%s280 + $0x5c] sm:$0xf]
        %v357 = vld [vmem:[%s280 + $0x60] sm:$0xf]
        %v358 = vld [vmem:[%s280 + $0x64] sm:$0xf]
        %v359 = vld [vmem:[%s280 + $0x68] sm:$0xf]
        %v360 = vld [vmem:[%s280 + $0x6c] sm:$0xf]
        %v361 = vld [vmem:[%s280 + $0x70] sm:$0xf]
        %v362 = vld [vmem:[%s280 + $0x74] sm:$0xf]
        %v363 = vld [vmem:[%s280 + $0x78] sm:$0xf]
        %v364 = vld [vmem:[%s280 + $0x7c] sm:$0xf]
        %v365 = vld [vmem:[%s5] sm:$0x3]
        %v366 = vld [vmem:[%s5 + $0x2] sm:$0x1]
        %v367 = vld [vmem:[%s5 + $0x3] sm:$0x1]
        %v368 = vld [vmem:[#allocation4] sm:$0xff]
        %v369 = vld [vmem:[#allocation4 + $0x8] sm:$0xff]
        %v370 = vld [vmem:[#allocation4 + $0x10] sm:$0xf]
        %v371 = vld [vmem:[#allocation4 + $0x14] sm:$0xff]
        %v372 = vld [vmem:[#allocation4 + $0x1c] sm:$0xff]
        %v373 = vld [vmem:[#allocation4 + $0x24] sm:$0xf]
        %v374 = vld [vmem:[#allocation4 + $0x28] sm:$0xff]
        %v375 = vld [vmem:[#allocation4 + $0x30] sm:$0xff]
        %v376 = vld [vmem:[#allocation4 + $0x38] sm:$0xf]
        %v377 = vld [vmem:[#allocation4 + $0x3c] sm:$0xff]
        %v378 = vld [vmem:[#allocation4 + $0x44] sm:$0xff]
        %v379 = vld [vmem:[#allocation4 + $0x4c] sm:$0xf]
        %v380 = vld [vmem:[#allocation4 + $0x50] sm:$0xff]
        %v381 = vld [vmem:[#allocation4 + $0x58] sm:$0xff]
        %v382 = vld [vmem:[#allocation4 + $0x60] sm:$0xf]
        %v383 = vld [vmem:[#allocation4 + $0x64] sm:$0xff]
        %v384 = vld [vmem:[#allocation4 + $0x6c] sm:$0xff]
        %v385 = vld [vmem:[#allocation4 + $0x74] sm:$0xf]
        %v386 = vld [vmem:[#allocation4 + $0x78] sm:$0xff]
        %v387 = vld [vmem:[#allocation4 + $0x80] sm:$0xff]
        %v388 = vld [vmem:[#allocation4 + $0x88] sm:$0xf]
        %v389 = vld [vmem:[#allocation4 + $0x8c] sm:$0xff]
        %v390 = vld [vmem:[#allocation4 + $0x94] sm:$0xff]
        %v391 = vld [vmem:[#allocation4 + $0x9c] sm:$0xf]
        %v392 = vld [vmem:[#allocation4 + $0xa0] sm:$0xff]
        %v393 = vld [vmem:[#allocation4 + $0xa8] sm:$0xff]
        %v394 = vld [vmem:[#allocation4 + $0xb0] sm:$0xf]
        %v395 = vld [vmem:[#allocation4 + $0xb4] sm:$0xff]
        %v396 = vld [vmem:[#allocation4 + $0xbc] sm:$0xff]
        %v397 = vld [vmem:[#allocation4 + $0xc4] sm:$0xf]
        %v398 = vld [vmem:[#allocation4 + $0xc8] sm:$0xff]
        %v399 = vld [vmem:[#allocation4 + $0xd0] sm:$0xff]
        %v400 = vld [vmem:[#allocation4 + $0xd8] sm:$0xf]
        %v401 = vld [vmem:[#allocation4 + $0xdc] sm:$0xff]
        %v402 = vld [vmem:[#allocation4 + $0xe4] sm:$0xff]
        %v403 = vld [vmem:[#allocation4 + $0xec] sm:$0xf]
        %v404 = vld [vmem:[#allocation4 + $0xf0] sm:$0xff]
        %v405 = vld [vmem:[#allocation4 + $0xf8] sm:$0xff]
        %v406 = vld [vmem:[#allocation4 + $0x100] sm:$0xf]
        %v407 = vld [vmem:[#allocation4 + $0x104] sm:$0xff]
        %v408 = vld [vmem:[#allocation4 + $0x10c] sm:$0xff]
        %v409 = vld [vmem:[#allocation4 + $0x114] sm:$0xf]
        %v410 = vld [vmem:[#allocation4 + $0x118] sm:$0xff]
        %v411 = vld [vmem:[#allocation4 + $0x120] sm:$0xff]
        %v412 = vld [vmem:[#allocation4 + $0x128] sm:$0xf]
        %v413 = vld [vmem:[#allocation4 + $0x12c] sm:$0xff]
        %v414 = vld [vmem:[#allocation4 + $0x134] sm:$0xff]
        %v415 = vld [vmem:[#allocation4 + $0x13c] sm:$0xf]
        %v448 = vunpack.c.l.b16 %v333
        %v449 = vunpack.c.l.b16 %v334
        %v450 = vunpack.c.l.b16 %v335
        %v451 = vunpack.c.l.b16 %v336
        %v452 = vunpack.c.l.b16 %v337
        %v453 = vunpack.c.l.b16 %v338
        %v454 = vunpack.c.l.b16 %v339
        %v455 = vunpack.c.l.b16 %v340
        %v456 = vunpack.c.l.b16 %v341
        %v457 = vunpack.c.l.b16 %v342
        %v458 = vunpack.c.l.b16 %v343
        %v459 = vunpack.c.l.b16 %v344
        %v460 = vunpack.c.l.b16 %v345
        %v461 = vunpack.c.l.b16 %v346
        %v462 = vunpack.c.l.b16 %v347
        %v463 = vunpack.c.l.b16 %v348
        %v464 = vunpack.c.l.b16 %v349
        %v465 = vunpack.c.l.b16 %v350
        %v466 = vunpack.c.l.b16 %v351
        %v467 = vunpack.c.l.b16 %v352
        %v468 = vunpack.c.l.b16 %v353
        %v469 = vunpack.c.l.b16 %v354
        %v470 = vunpack.c.l.b16 %v355
        %v471 = vunpack.c.l.b16 %v356
        %v472 = vunpack.c.l.b16 %v357
        %v473 = vunpack.c.l.b16 %v358
        %v474 = vunpack.c.l.b16 %v359
        %v475 = vunpack.c.l.b16 %v360
        %v476 = vunpack.c.l.b16 %v361
        %v477 = vunpack.c.l.b16 %v362
        %v478 = vunpack.c.l.b16 %v363
        %v479 = vunpack.c.l.b16 %v364
        %v480 = vpack.c.b16 %v449, %v448
        %v481 = vpack.c.b16 %v451, %v450
        %v482 = vpack.c.b16 %v453, %v452
        %v483 = vpack.c.b16 %v455, %v454
        %v484 = vpack.c.b16 %v457, %v456
        %v485 = vpack.c.b16 %v459, %v458
        %v486 = vpack.c.b16 %v461, %v460
        %v487 = vpack.c.b16 %v463, %v462
        %v488 = vpack.c.b16 %v465, %v464
        %v489 = vpack.c.b16 %v467, %v466
        %v490 = vpack.c.b16 %v469, %v468
        %v491 = vpack.c.b16 %v471, %v470
        %v492 = vpack.c.b16 %v473, %v472
        %v493 = vpack.c.b16 %v475, %v474
        %v494 = vpack.c.b16 %v477, %v476
        %v495 = vpack.c.b16 %v479, %v478
        %v560 = vunpack.c.l.b16 %v368
        %v561 = vunpack.c.h.b16 %v368
        %v562 = vunpack.c.l.b16 %v369
        %v563 = vunpack.c.h.b16 %v369
        %v564 = vunpack.c.l.b16 %v370
        %v565 = vunpack.c.l.b16 %v371
        %v566 = vunpack.c.h.b16 %v371
        %v567 = vunpack.c.l.b16 %v372
        %v568 = vunpack.c.h.b16 %v372
        %v569 = vunpack.c.l.b16 %v373
        %v570 = vunpack.c.l.b16 %v374
        %v571 = vunpack.c.h.b16 %v374
        %v572 = vunpack.c.l.b16 %v375
        %v573 = vunpack.c.h.b16 %v375
        %v574 = vunpack.c.l.b16 %v376
        %v575 = vunpack.c.l.b16 %v377
        %v576 = vunpack.c.h.b16 %v377
        %v577 = vunpack.c.l.b16 %v378
        %v578 = vunpack.c.h.b16 %v378
        %v579 = vunpack.c.l.b16 %v379
        %v580 = vunpack.c.l.b16 %v380
        %v581 = vunpack.c.h.b16 %v380
        %v582 = vunpack.c.l.b16 %v381
        %v583 = vunpack.c.h.b16 %v381
        %v584 = vunpack.c.l.b16 %v382
        %v585 = vunpack.c.l.b16 %v383
        %v586 = vunpack.c.h.b16 %v383
        %v587 = vunpack.c.l.b16 %v384
        %v588 = vunpack.c.h.b16 %v384
        %v589 = vunpack.c.l.b16 %v385
        %v590 = vunpack.c.l.b16 %v386
        %v591 = vunpack.c.h.b16 %v386
        %v592 = vunpack.c.l.b16 %v387
        %v593 = vunpack.c.h.b16 %v387
        %v594 = vunpack.c.l.b16 %v388
        %v595 = vunpack.c.l.b16 %v389
        %v596 = vunpack.c.h.b16 %v389
        %v597 = vunpack.c.l.b16 %v390
        %v598 = vunpack.c.h.b16 %v390
        %v599 = vunpack.c.l.b16 %v391
        %v600 = vunpack.c.l.b16 %v392
        %v601 = vunpack.c.h.b16 %v392
        %v602 = vunpack.c.l.b16 %v393
        %v603 = vunpack.c.h.b16 %v393
        %v604 = vunpack.c.l.b16 %v394
        %v605 = vunpack.c.l.b16 %v395
        %v606 = vunpack.c.h.b16 %v395
        %v607 = vunpack.c.l.b16 %v396
        %v608 = vunpack.c.h.b16 %v396
        %v609 = vunpack.c.l.b16 %v397
        %v610 = vunpack.c.l.b16 %v398
        %v611 = vunpack.c.h.b16 %v398
        %v612 = vunpack.c.l.b16 %v399
        %v613 = vunpack.c.h.b16 %v399
        %v614 = vunpack.c.l.b16 %v400
        %v615 = vunpack.c.l.b16 %v401
        %v616 = vunpack.c.h.b16 %v401
        %v617 = vunpack.c.l.b16 %v402
        %v618 = vunpack.c.h.b16 %v402
        %v619 = vunpack.c.l.b16 %v403
        %v620 = vunpack.c.l.b16 %v404
        %v621 = vunpack.c.h.b16 %v404
        %v622 = vunpack.c.l.b16 %v405
        %v623 = vunpack.c.h.b16 %v405
        %v624 = vunpack.c.l.b16 %v406
        %v625 = vunpack.c.l.b16 %v407
        %v626 = vunpack.c.h.b16 %v407
        %v627 = vunpack.c.l.b16 %v408
        %v628 = vunpack.c.h.b16 %v408
        %v629 = vunpack.c.l.b16 %v409
        %v630 = vunpack.c.l.b16 %v410
        %v631 = vunpack.c.h.b16 %v410
        %v632 = vunpack.c.l.b16 %v411
        %v633 = vunpack.c.h.b16 %v411
        %v634 = vunpack.c.l.b16 %v412
        %v635 = vunpack.c.l.b16 %v413
        %v636 = vunpack.c.h.b16 %v413
        %v637 = vunpack.c.l.b16 %v414
        %v638 = vunpack.c.h.b16 %v414
        %v639 = vunpack.c.l.b16 %v415
        %v640 = vpack.c.b16 %v565, %v560
        %v641 = vpack.c.b16 %v566, %v561
        %v642 = vpack.c.b16 %v567, %v562
        %v643 = vpack.c.b16 %v568, %v563
        %v644 = vpack.c.b16 %v569, %v564
        %v645 = vpack.c.b16 %v575, %v570
        %v646 = vpack.c.b16 %v576, %v571
        %v647 = vpack.c.b16 %v577, %v572
        %v648 = vpack.c.b16 %v578, %v573
        %v649 = vpack.c.b16 %v579, %v574
        %v650 = vpack.c.b16 %v585, %v580
        %v651 = vpack.c.b16 %v586, %v581
        %v652 = vpack.c.b16 %v587, %v582
        %v653 = vpack.c.b16 %v588, %v583
        %v654 = vpack.c.b16 %v589, %v584
        %v655 = vpack.c.b16 %v595, %v590
        %v656 = vpack.c.b16 %v596, %v591
        %v657 = vpack.c.b16 %v597, %v592
        %v658 = vpack.c.b16 %v598, %v593
        %v659 = vpack.c.b16 %v599, %v594
        %v660 = vpack.c.b16 %v605, %v600
        %v661 = vpack.c.b16 %v606, %v601
        %v662 = vpack.c.b16 %v607, %v602
        %v663 = vpack.c.b16 %v608, %v603
        %v664 = vpack.c.b16 %v609, %v604
        %v665 = vpack.c.b16 %v615, %v610
        %v666 = vpack.c.b16 %v616, %v611
        %v667 = vpack.c.b16 %v617, %v612
        %v668 = vpack.c.b16 %v618, %v613
        %v669 = vpack.c.b16 %v619, %v614
        %v670 = vpack.c.b16 %v625, %v620
        %v671 = vpack.c.b16 %v626, %v621
        %v672 = vpack.c.b16 %v627, %v622
        %v673 = vpack.c.b16 %v628, %v623
        %v674 = vpack.c.b16 %v629, %v624
        %v675 = vpack.c.b16 %v635, %v630
        %v676 = vpack.c.b16 %v636, %v631
        %v677 = vpack.c.b16 %v637, %v632
        %v678 = vpack.c.b16 %v638, %v633
        %v679 = vpack.c.b16 %v639, %v634
        %720 = vmatprep.subr.bf16.mxu0 %v641
        %721 = vmatpush1.bf16.msra.mxu0 %v640
        %722 = vmatprep.subr.bf16.mxu0 %v646
        %723 = vmatpush1.bf16.msra.mxu0 %v645
        %724 = vmatprep.subr.bf16.mxu0 %v651
        %725 = vmatpush1.bf16.msra.mxu0 %v650
        %726 = vmatprep.subr.bf16.mxu0 %v656
        %727 = vmatpush1.bf16.msra.mxu0 %v655
        %728 = vmatprep.subr.bf16.mxu0 %v661
        %729 = vmatpush1.bf16.msra.mxu0 %v660
        %730 = vmatprep.subr.bf16.mxu0 %v666
        %731 = vmatpush1.bf16.msra.mxu0 %v665
        %732 = vmatprep.subr.bf16.mxu0 %v671
        %733 = vmatpush1.bf16.msra.mxu0 %v670
        %734 = vmatprep.subr.bf16.mxu0 %v676
        %735 = vmatpush1.bf16.msra.mxu0 %v675
        %736 = vmatprep.subr.bf16.mxu0 0
        %737 = vmatpush1.bf16.msra.mxu0 0
        %738 = vmatprep.subr.bf16.mxu0 0
        %739 = vmatpush1.bf16.msra.mxu0 0
        %740 = vmatprep.subr.bf16.mxu0 0
        %741 = vmatpush1.bf16.msra.mxu0 0
        %742 = vmatprep.subr.bf16.mxu0 0
        %743 = vmatpush1.bf16.msra.mxu0 0
        %744 = vmatprep.subr.bf16.mxu0 0
        %745 = vmatpush1.bf16.msra.mxu0 0
        %746 = vmatprep.subr.bf16.mxu0 0
        %747 = vmatpush1.bf16.msra.mxu0 0
        %748 = vmatprep.subr.bf16.mxu0 0
        %749 = vmatpush1.bf16.msra.mxu0 0
        %750 = vmatprep.subr.bf16.mxu0 0
        %751 = vmatpush1.bf16.msra.mxu0 0
        %752 = vmatprep.mubr.bf16.mxu0 0
        %753 = vmatmul.mubr.bf16.gmra.mrb[0].mxu0 %v480
        %v754 = vpop.f32.mrb[0].mxu0
        %v755 = vadd.f32 0.0, %v754
        %v756 = vpop.f32.mrb[0].mxu0
        %v757 = vadd.f32 0.0, %v756
        %v758 = vpop.f32.mrb[0].mxu0
        %v759 = vadd.f32 0.0, %v758
        %v760 = vpop.f32.mrb[0].mxu0
        %v761 = vadd.f32 0.0, %v760
        %762 = vmatprep.mubr.bf16.mxu0 0
        %763 = vmatmul.mubr.bf16.gmra.mrb[0].mxu0 %v481
        %v764 = vpop.f32.mrb[0].mxu0
        %v765 = vadd.f32 0.0, %v764
        %v766 = vpop.f32.mrb[0].mxu0
        %v767 = vadd.f32 0.0, %v766
        %v768 = vpop.f32.mrb[0].mxu0
        %v769 = vadd.f32 0.0, %v768
        %v770 = vpop.f32.mrb[0].mxu0
        %v771 = vadd.f32 0.0, %v770
        %772 = vmatprep.mubr.bf16.mxu0 0
        %773 = vmatmul.mubr.bf16.gmra.mrb[0].mxu0 %v482
        %v774 = vpop.f32.mrb[0].mxu0
        %v775 = vadd.f32 0.0, %v774
        %v776 = vpop.f32.mrb[0].mxu0
        %v777 = vadd.f32 0.0, %v776
        %v778 = vpop.f32.mrb[0].mxu0
        %v779 = vadd.f32 0.0, %v778
        %v780 = vpop.f32.mrb[0].mxu0
        %v781 = vadd.f32 0.0, %v780
        %782 = vmatprep.mubr.bf16.mxu0 0
        %783 = vmatmul.mubr.bf16.gmra.mrb[0].mxu0 %v483
        %v784 = vpop.f32.mrb[0].mxu0
        %v785 = vadd.f32 0.0, %v784
        %v786 = vpop.f32.mrb[0].mxu0
        %v787 = vadd.f32 0.0, %v786
        %v788 = vpop.f32.mrb[0].mxu0
        %v789 = vadd.f32 0.0, %v788
        %v790 = vpop.f32.mrb[0].mxu0
        %v791 = vadd.f32 0.0, %v790
        %792 = vmatprep.mubr.bf16.mxu0 0
        %793 = vmatmul.mubr.bf16.gmra.mrb[0].mxu0 %v484
        %v794 = vpop.f32.mrb[0].mxu0
        %v795 = vadd.f32 0.0, %v794
        %v796 = vpop.f32.mrb[0].mxu0
        %v797 = vadd.f32 0.0, %v796
        %v798 = vpop.f32.mrb[0].mxu0
        %v799 = vadd.f32 0.0, %v798
        %v800 = vpop.f32.mrb[0].mxu0
        %v801 = vadd.f32 0.0, %v800
        %802 = vmatprep.mubr.bf16.mxu0 0
        %803 = vmatmul.mubr.bf16.gmra.mrb[0].mxu0 %v485
        %v804 = vpop.f32.mrb[0].mxu0
        %v805 = vadd.f32 0.0, %v804
        %v806 = vpop.f32.mrb[0].mxu0
        %v807 = vadd.f32 0.0, %v806
        %v808 = vpop.f32.mrb[0].mxu0
        %v809 = vadd.f32 0.0, %v808
        %v810 = vpop.f32.mrb[0].mxu0
        %v811 = vadd.f32 0.0, %v810
        %812 = vmatprep.mubr.bf16.mxu0 0
        %813 = vmatmul.mubr.bf16.gmra.mrb[0].mxu0 %v486
        %v814 = vpop.f32.mrb[0].mxu0
        %v815 = vadd.f32 0.0, %v814
        %v816 = vpop.f32.mrb[0].mxu0
        %v817 = vadd.f32 0.0, %v816
        %v818 = vpop.f32.mrb[0].mxu0
        %v819 = vadd.f32 0.0, %v818
        %v820 = vpop.f32.mrb[0].mxu0
        %v821 = vadd.f32 0.0, %v820
        %822 = vmatprep.mubr.bf16.mxu0 0
        %823 = vmatmul.mubr.bf16.gmra.mrb[0].mxu0 %v487
        %v824 = vpop.f32.mrb[0].mxu0
        %v825 = vadd.f32 0.0, %v824
        %v826 = vpop.f32.mrb[0].mxu0
        %v827 = vadd.f32 0.0, %v826
        %v828 = vpop.f32.mrb[0].mxu0
        %v829 = vadd.f32 0.0, %v828
        %v830 = vpop.f32.mrb[0].mxu0
        %v831 = vadd.f32 0.0, %v830
        %832 = vmatprep.mubr.bf16.mxu0 0
        %833 = vmatmul.mubr.bf16.gmra.mrb[0].mxu0 %v488
        %v834 = vpop.f32.mrb[0].mxu0
        %v835 = vadd.f32 0.0, %v834
        %v836 = vpop.f32.mrb[0].mxu0
        %v837 = vadd.f32 0.0, %v836
        %v838 = vpop.f32.mrb[0].mxu0
        %v839 = vadd.f32 0.0, %v838
        %v840 = vpop.f32.mrb[0].mxu0
        %v841 = vadd.f32 0.0, %v840
        %842 = vmatprep.mubr.bf16.mxu0 0
        %843 = vmatmul.mubr.bf16.gmra.mrb[0].mxu0 %v489
        %v844 = vpop.f32.mrb[0].mxu0
        %v845 = vadd.f32 0.0, %v844
        %v846 = vpop.f32.mrb[0].mxu0
        %v847 = vadd.f32 0.0, %v846
        %v848 = vpop.f32.mrb[0].mxu0
        %v849 = vadd.f32 0.0, %v848
        %v850 = vpop.f32.mrb[0].mxu0
        %v851 = vadd.f32 0.0, %v850
        %852 = vmatprep.mubr.bf16.mxu0 0
        %853 = vmatmul.mubr.bf16.gmra.mrb[0].mxu0 %v490
        %v854 = vpop.f32.mrb[0].mxu0
        %v855 = vadd.f32 0.0, %v854
        %v856 = vpop.f32.mrb[0].mxu0
        %v857 = vadd.f32 0.0, %v856
        %v858 = vpop.f32.mrb[0].mxu0
        %v859 = vadd.f32 0.0, %v858
        %v860 = vpop.f32.mrb[0].mxu0
        %v861 = vadd.f32 0.0, %v860
        %862 = vmatprep.mubr.bf16.mxu0 0
        %863 = vmatmul.mubr.bf16.gmra.mrb[0].mxu0 %v491
        %v864 = vpop.f32.mrb[0].mxu0
        %v865 = vadd.f32 0.0, %v864
        %v866 = vpop.f32.mrb[0].mxu0
        %v867 = vadd.f32 0.0, %v866
        %v868 = vpop.f32.mrb[0].mxu0
        %v869 = vadd.f32 0.0, %v868
        %v870 = vpop.f32.mrb[0].mxu0
        %v871 = vadd.f32 0.0, %v870
        %872 = vmatprep.mubr.bf16.mxu0 0
        %873 = vmatmul.mubr.bf16.gmra.mrb[0].mxu0 %v492
        %v874 = vpop.f32.mrb[0].mxu0
        %v875 = vadd.f32 0.0, %v874
        %v876 = vpop.f32.mrb[0].mxu0
        %v877 = vadd.f32 0.0, %v876
        %v878 = vpop.f32.mrb[0].mxu0
        %v879 = vadd.f32 0.0, %v878
        %v880 = vpop.f32.mrb[0].mxu0
        %v881 = vadd.f32 0.0, %v880
        %882 = vmatprep.mubr.bf16.mxu0 0
        %883 = vmatmul.mubr.bf16.gmra.mrb[0].mxu0 %v493
        %v884 = vpop.f32.mrb[0].mxu0
        %v885 = vadd.f32 0.0, %v884
        %v886 = vpop.f32.mrb[0].mxu0
        %v887 = vadd.f32 0.0, %v886
        %v888 = vpop.f32.mrb[0].mxu0
        %v889 = vadd.f32 0.0, %v888
        %v890 = vpop.f32.mrb[0].mxu0
        %v891 = vadd.f32 0.0, %v890
        %892 = vmatprep.mubr.bf16.mxu0 0
        %893 = vmatmul.mubr.bf16.gmra.mrb[0].mxu0 %v494
        %v894 = vpop.f32.mrb[0].mxu0
        %v895 = vadd.f32 0.0, %v894
        %v896 = vpop.f32.mrb[0].mxu0
        %v897 = vadd.f32 0.0, %v896
        %v898 = vpop.f32.mrb[0].mxu0
        %v899 = vadd.f32 0.0, %v898
        %v900 = vpop.f32.mrb[0].mxu0
        %v901 = vadd.f32 0.0, %v900
        %902 = vmatprep.mubr.bf16.mxu0 0
        %903 = vmatmul.mubr.bf16.gmra.mrb[0].mxu0 %v495
        %v904 = vpop.f32.mrb[0].mxu0
        %v905 = vadd.f32 0.0, %v904
        %v906 = vpop.f32.mrb[0].mxu0
        %v907 = vadd.f32 0.0, %v906
        %v908 = vpop.f32.mrb[0].mxu0
        %v909 = vadd.f32 0.0, %v908
        %v910 = vpop.f32.mrb[0].mxu0
        %v911 = vadd.f32 0.0, %v910
        %912 = vdwg.mxu0
        %913 = vmatprep.subr.bf16.mxu0 %v643
        %914 = vmatpush1.bf16.msra.mxu0 %v642
        %915 = vmatprep.subr.bf16.mxu0 %v648
        %916 = vmatpush1.bf16.msra.mxu0 %v647
        %917 = vmatprep.subr.bf16.mxu0 %v653
        %918 = vmatpush1.bf16.msra.mxu0 %v652
        %919 = vmatprep.subr.bf16.mxu0 %v658
        %920 = vmatpush1.bf16.msra.mxu0 %v657
        %921 = vmatprep.subr.bf16.mxu0 %v663
        %922 = vmatpush1.bf16.msra.mxu0 %v662
        %923 = vmatprep.subr.bf16.mxu0 %v668
        %924 = vmatpush1.bf16.msra.mxu0 %v667
        %925 = vmatprep.subr.bf16.mxu0 %v673
        %926 = vmatpush1.bf16.msra.mxu0 %v672
        %927 = vmatprep.subr.bf16.mxu0 %v678
        %928 = vmatpush1.bf16.msra.mxu0 %v677
        %929 = vmatprep.subr.bf16.mxu0 0
        %930 = vmatpush1.bf16.msra.mxu0 0
        %931 = vmatprep.subr.bf16.mxu0 0
        %932 = vmatpush1.bf16.msra.mxu0 0
        %933 = vmatprep.subr.bf16.mxu0 0
        %934 = vmatpush1.bf16.msra.mxu0 0
        %935 = vmatprep.subr.bf16.mxu0 0
        %936 = vmatpush1.bf16.msra.mxu0 0
        %937 = vmatprep.subr.bf16.mxu0 0
        %938 = vmatpush1.bf16.msra.mxu0 0
        %939 = vmatprep.subr.bf16.mxu0 0
        %940 = vmatpush1.bf16.msra.mxu0 0
        %941 = vmatprep.subr.bf16.mxu0 0
        %942 = vmatpush1.bf16.msra.mxu0 0
        %943 = vmatprep.subr.bf16.mxu0 0
        %944 = vmatpush1.bf16.msra.mxu0 0
        %945 = vmatprep.mubr.bf16.mxu0 0
        %946 = vmatmul.mubr.bf16.gmra.mrb[0].mxu0 %v480
        %v947 = vpop.f32.mrb[0].mxu0
        %v948 = vadd.f32 0.0, %v947
        %v949 = vpop.f32.mrb[0].mxu0
        %v950 = vadd.f32 0.0, %v949
        %v951 = vpop.f32.mrb[0].mxu0
        %v952 = vadd.f32 0.0, %v951
        %v953 = vpop.f32.mrb[0].mxu0
        %v954 = vadd.f32 0.0, %v953
        %955 = vmatprep.mubr.bf16.mxu0 0
        %956 = vmatmul.mubr.bf16.gmra.mrb[0].mxu0 %v481
        %v957 = vpop.f32.mrb[0].mxu0
        %v958 = vadd.f32 0.0, %v957
        %v959 = vpop.f32.mrb[0].mxu0
        %v960 = vadd.f32 0.0, %v959
        %v961 = vpop.f32.mrb[0].mxu0
        %v962 = vadd.f32 0.0, %v961
        %v963 = vpop.f32.mrb[0].mxu0
        %v964 = vadd.f32 0.0, %v963
        %965 = vmatprep.mubr.bf16.mxu0 0
        %966 = vmatmul.mubr.bf16.gmra.mrb[0].mxu0 %v482
        %v967 = vpop.f32.mrb[0].mxu0
        %v968 = vadd.f32 0.0, %v967
        %v969 = vpop.f32.mrb[0].mxu0
        %v970 = vadd.f32 0.0, %v969
        %v971 = vpop.f32.mrb[0].mxu0
        %v972 = vadd.f32 0.0, %v971
        %v973 = vpop.f32.mrb[0].mxu0
        %v974 = vadd.f32 0.0, %v973
        %975 = vmatprep.mubr.bf16.mxu0 0
        %976 = vmatmul.mubr.bf16.gmra.mrb[0].mxu0 %v483
        %v977 = vpop.f32.mrb[0].mxu0
        %v978 = vadd.f32 0.0, %v977
        %v979 = vpop.f32.mrb[0].mxu0
        %v980 = vadd.f32 0.0, %v979
        %v981 = vpop.f32.mrb[0].mxu0
        %v982 = vadd.f32 0.0, %v981
        %v983 = vpop.f32.mrb[0].mxu0
        %v984 = vadd.f32 0.0, %v983
        %985 = vmatprep.mubr.bf16.mxu0 0
        %986 = vmatmul.mubr.bf16.gmra.mrb[0].mxu0 %v484
        %v987 = vpop.f32.mrb[0].mxu0
        %v988 = vadd.f32 0.0, %v987
        %v989 = vpop.f32.mrb[0].mxu0
        %v990 = vadd.f32 0.0, %v989
        %v991 = vpop.f32.mrb[0].mxu0
        %v992 = vadd.f32 0.0, %v991
        %v993 = vpop.f32.mrb[0].mxu0
        %v994 = vadd.f32 0.0, %v993
        %995 = vmatprep.mubr.bf16.mxu0 0
        %996 = vmatmul.mubr.bf16.gmra.mrb[0].mxu0 %v485
        %v997 = vpop.f32.mrb[0].mxu0
        %v998 = vadd.f32 0.0, %v997
        %v999 = vpop.f32.mrb[0].mxu0
        %v1000 = vadd.f32 0.0, %v999
        %v1001 = vpop.f32.mrb[0].mxu0
        %v1002 = vadd.f32 0.0, %v1001
        %v1003 = vpop.f32.mrb[0].mxu0
        %v1004 = vadd.f32 0.0, %v1003
        %1005 = vmatprep.mubr.bf16.mxu0 0
        %1006 = vmatmul.mubr.bf16.gmra.mrb[0].mxu0 %v486
        %v1007 = vpop.f32.mrb[0].mxu0
        %v1008 = vadd.f32 0.0, %v1007
        %v1009 = vpop.f32.mrb[0].mxu0
        %v1010 = vadd.f32 0.0, %v1009
        %v1011 = vpop.f32.mrb[0].mxu0
        %v1012 = vadd.f32 0.0, %v1011
        %v1013 = vpop.f32.mrb[0].mxu0
        %v1014 = vadd.f32 0.0, %v1013
        %1015 = vmatprep.mubr.bf16.mxu0 0
        %1016 = vmatmul.mubr.bf16.gmra.mrb[0].mxu0 %v487
        %v1017 = vpop.f32.mrb[0].mxu0
        %v1018 = vadd.f32 0.0, %v1017
        %v1019 = vpop.f32.mrb[0].mxu0
        %v1020 = vadd.f32 0.0, %v1019
        %v1021 = vpop.f32.mrb[0].mxu0
        %v1022 = vadd.f32 0.0, %v1021
        %v1023 = vpop.f32.mrb[0].mxu0
        %v1024 = vadd.f32 0.0, %v1023
        %1025 = vmatprep.mubr.bf16.mxu0 0
        %1026 = vmatmul.mubr.bf16.gmra.mrb[0].mxu0 %v488
        %v1027 = vpop.f32.mrb[0].mxu0
        %v1028 = vadd.f32 0.0, %v1027
        %v1029 = vpop.f32.mrb[0].mxu0
        %v1030 = vadd.f32 0.0, %v1029
        %v1031 = vpop.f32.mrb[0].mxu0
        %v1032 = vadd.f32 0.0, %v1031
        %v1033 = vpop.f32.mrb[0].mxu0
        %v1034 = vadd.f32 0.0, %v1033
        %1035 = vmatprep.mubr.bf16.mxu0 0
        %1036 = vmatmul.mubr.bf16.gmra.mrb[0].mxu0 %v489
        %v1037 = vpop.f32.mrb[0].mxu0
        %v1038 = vadd.f32 0.0, %v1037
        %v1039 = vpop.f32.mrb[0].mxu0
        %v1040 = vadd.f32 0.0, %v1039
        %v1041 = vpop.f32.mrb[0].mxu0
        %v1042 = vadd.f32 0.0, %v1041
        %v1043 = vpop.f32.mrb[0].mxu0
        %v1044 = vadd.f32 0.0, %v1043
        %1045 = vmatprep.mubr.bf16.mxu0 0
        %1046 = vmatmul.mubr.bf16.gmra.mrb[0].mxu0 %v490
        %v1047 = vpop.f32.mrb[0].mxu0
        %v1048 = vadd.f32 0.0, %v1047
        %v1049 = vpop.f32.mrb[0].mxu0
        %v1050 = vadd.f32 0.0, %v1049
        %v1051 = vpop.f32.mrb[0].mxu0
        %v1052 = vadd.f32 0.0, %v1051
        %v1053 = vpop.f32.mrb[0].mxu0
        %v1054 = vadd.f32 0.0, %v1053
        %1055 = vmatprep.mubr.bf16.mxu0 0
        %1056 = vmatmul.mubr.bf16.gmra.mrb[0].mxu0 %v491
        %v1057 = vpop.f32.mrb[0].mxu0
        %v1058 = vadd.f32 0.0, %v1057
        %v1059 = vpop.f32.mrb[0].mxu0
        %v1060 = vadd.f32 0.0, %v1059
        %v1061 = vpop.f32.mrb[0].mxu0
        %v1062 = vadd.f32 0.0, %v1061
        %v1063 = vpop.f32.mrb[0].mxu0
        %v1064 = vadd.f32 0.0, %v1063
        %1065 = vmatprep.mubr.bf16.mxu0 0
        %1066 = vmatmul.mubr.bf16.gmra.mrb[0].mxu0 %v492
        %v1067 = vpop.f32.mrb[0].mxu0
        %v1068 = vadd.f32 0.0, %v1067
        %v1069 = vpop.f32.mrb[0].mxu0
        %v1070 = vadd.f32 0.0, %v1069
        %v1071 = vpop.f32.mrb[0].mxu0
        %v1072 = vadd.f32 0.0, %v1071
        %v1073 = vpop.f32.mrb[0].mxu0
        %v1074 = vadd.f32 0.0, %v1073
        %1075 = vmatprep.mubr.bf16.mxu0 0
        %1076 = vmatmul.mubr.bf16.gmra.mrb[0].mxu0 %v493
        %v1077 = vpop.f32.mrb[0].mxu0
        %v1078 = vadd.f32 0.0, %v1077
        %v1079 = vpop.f32.mrb[0].mxu0
        %v1080 = vadd.f32 0.0, %v1079
        %v1081 = vpop.f32.mrb[0].mxu0
        %v1082 = vadd.f32 0.0, %v1081
        %v1083 = vpop.f32.mrb[0].mxu0
        %v1084 = vadd.f32 0.0, %v1083
        %1085 = vmatprep.mubr.bf16.mxu0 0
        %1086 = vmatmul.mubr.bf16.gmra.mrb[0].mxu0 %v494
        %v1087 = vpop.f32.mrb[0].mxu0
        %v1088 = vadd.f32 0.0, %v1087
        %v1089 = vpop.f32.mrb[0].mxu0
        %v1090 = vadd.f32 0.0, %v1089
        %v1091 = vpop.f32.mrb[0].mxu0
        %v1092 = vadd.f32 0.0, %v1091
        %v1093 = vpop.f32.mrb[0].mxu0
        %v1094 = vadd.f32 0.0, %v1093
        %1095 = vmatprep.mubr.bf16.mxu0 0
        %1096 = vmatmul.mubr.bf16.gmra.mrb[0].mxu0 %v495
        %v1097 = vpop.f32.mrb[0].mxu0
        %v1098 = vadd.f32 0.0, %v1097
        %v1099 = vpop.f32.mrb[0].mxu0
        %v1100 = vadd.f32 0.0, %v1099
        %v1101 = vpop.f32.mrb[0].mxu0
        %v1102 = vadd.f32 0.0, %v1101
        %v1103 = vpop.f32.mrb[0].mxu0
        %v1104 = vadd.f32 0.0, %v1103
        %1105 = vdwg.mxu0
        %1106 = vmatprep.subr.bf16.mxu0 0
        %1107 = vmatpush1.bf16.msra.mxu0 %v644
        %1108 = vmatprep.subr.bf16.mxu0 0
        %1109 = vmatpush1.bf16.msra.mxu0 %v649
        %1110 = vmatprep.subr.bf16.mxu0 0
        %1111 = vmatpush1.bf16.msra.mxu0 %v654
        %1112 = vmatprep.subr.bf16.mxu0 0
        %1113 = vmatpush1.bf16.msra.mxu0 %v659
        %1114 = vmatprep.subr.bf16.mxu0 0
        %1115 = vmatpush1.bf16.msra.mxu0 %v664
        %1116 = vmatprep.subr.bf16.mxu0 0
        %1117 = vmatpush1.bf16.msra.mxu0 %v669
        %1118 = vmatprep.subr.bf16.mxu0 0
        %1119 = vmatpush1.bf16.msra.mxu0 %v674
        %1120 = vmatprep.subr.bf16.mxu0 0
        %1121 = vmatpush1.bf16.msra.mxu0 %v679
        %1122 = vmatprep.subr.bf16.mxu0 0
        %1123 = vmatpush1.bf16.msra.mxu0 0
        %1124 = vmatprep.subr.bf16.mxu0 0
        %1125 = vmatpush1.bf16.msra.mxu0 0
        %1126 = vmatprep.subr.bf16.mxu0 0
        %1127 = vmatpush1.bf16.msra.mxu0 0
        %1128 = vmatprep.subr.bf16.mxu0 0
        %1129 = vmatpush1.bf16.msra.mxu0 0
        %1130 = vmatprep.subr.bf16.mxu0 0
        %1131 = vmatpush1.bf16.msra.mxu0 0
        %1132 = vmatprep.subr.bf16.mxu0 0
        %1133 = vmatpush1.bf16.msra.mxu0 0
        %1134 = vmatprep.subr.bf16.mxu0 0
        %1135 = vmatpush1.bf16.msra.mxu0 0
        %1136 = vmatprep.subr.bf16.mxu0 0
        %1137 = vmatpush1.bf16.msra.mxu0 0
        %1138 = vmatprep.mubr.bf16.mxu0 0
        %1139 = vmatmul.mubr.bf16.gmra.mrb[0].mxu0 %v480
        %v1140 = vpop.f32.mrb[0].mxu0
        %v1141 = vadd.f32 0.0, %v1140
        %v1142 = vpop.f32.mrb[0].mxu0
        %v1143 = vpop.f32.mrb[0].mxu0
        %v1144 = vadd.f32 0.0, %v1143
        %v1145 = vpop.f32.mrb[0].mxu0
        %1146 = vmatprep.mubr.bf16.mxu0 0
        %1147 = vmatmul.mubr.bf16.gmra.mrb[0].mxu0 %v481
        %v1148 = vpop.f32.mrb[0].mxu0
        %v1149 = vadd.f32 0.0, %v1148
        %v1150 = vpop.f32.mrb[0].mxu0
        %v1151 = vpop.f32.mrb[0].mxu0
        %v1152 = vadd.f32 0.0, %v1151
        %v1153 = vpop.f32.mrb[0].mxu0
        %1154 = vmatprep.mubr.bf16.mxu0 0
        %1155 = vmatmul.mubr.bf16.gmra.mrb[0].mxu0 %v482
        %v1156 = vpop.f32.mrb[0].mxu0
        %v1157 = vadd.f32 0.0, %v1156
        %v1158 = vpop.f32.mrb[0].mxu0
        %v1159 = vpop.f32.mrb[0].mxu0
        %v1160 = vadd.f32 0.0, %v1159
        %v1161 = vpop.f32.mrb[0].mxu0
        %1162 = vmatprep.mubr.bf16.mxu0 0
        %1163 = vmatmul.mubr.bf16.gmra.mrb[0].mxu0 %v483
        %v1164 = vpop.f32.mrb[0].mxu0
        %v1165 = vadd.f32 0.0, %v1164
        %v1166 = vpop.f32.mrb[0].mxu0
        %v1167 = vpop.f32.mrb[0].mxu0
        %v1168 = vadd.f32 0.0, %v1167
        %v1169 = vpop.f32.mrb[0].mxu0
        %1170 = vmatprep.mubr.bf16.mxu0 0
        %1171 = vmatmul.mubr.bf16.gmra.mrb[0].mxu0 %v484
        %v1172 = vpop.f32.mrb[0].mxu0
        %v1173 = vadd.f32 0.0, %v1172
        %v1174 = vpop.f32.mrb[0].mxu0
        %v1175 = vpop.f32.mrb[0].mxu0
        %v1176 = vadd.f32 0.0, %v1175
        %v1177 = vpop.f32.mrb[0].mxu0
        %1178 = vmatprep.mubr.bf16.mxu0 0
        %1179 = vmatmul.mubr.bf16.gmra.mrb[0].mxu0 %v485
        %v1180 = vpop.f32.mrb[0].mxu0
        %v1181 = vadd.f32 0.0, %v1180
        %v1182 = vpop.f32.mrb[0].mxu0
        %v1183 = vpop.f32.mrb[0].mxu0
        %v1184 = vadd.f32 0.0, %v1183
        %v1185 = vpop.f32.mrb[0].mxu0
        %1186 = vmatprep.mubr.bf16.mxu0 0
        %1187 = vmatmul.mubr.bf16.gmra.mrb[0].mxu0 %v486
        %v1188 = vpop.f32.mrb[0].mxu0
        %v1189 = vadd.f32 0.0, %v1188
        %v1190 = vpop.f32.mrb[0].mxu0
        %v1191 = vpop.f32.mrb[0].mxu0
        %v1192 = vadd.f32 0.0, %v1191
        %v1193 = vpop.f32.mrb[0].mxu0
        %1194 = vmatprep.mubr.bf16.mxu0 0
        %1195 = vmatmul.mubr.bf16.gmra.mrb[0].mxu0 %v487
        %v1196 = vpop.f32.mrb[0].mxu0
        %v1197 = vadd.f32 0.0, %v1196
        %v1198 = vpop.f32.mrb[0].mxu0
        %v1199 = vpop.f32.mrb[0].mxu0
        %v1200 = vadd.f32 0.0, %v1199
        %v1201 = vpop.f32.mrb[0].mxu0
        %1202 = vmatprep.mubr.bf16.mxu0 0
        %1203 = vmatmul.mubr.bf16.gmra.mrb[0].mxu0 %v488
        %v1204 = vpop.f32.mrb[0].mxu0
        %v1205 = vadd.f32 0.0, %v1204
        %v1206 = vpop.f32.mrb[0].mxu0
        %v1207 = vpop.f32.mrb[0].mxu0
        %v1208 = vadd.f32 0.0, %v1207
        %v1209 = vpop.f32.mrb[0].mxu0
        %1210 = vmatprep.mubr.bf16.mxu0 0
        %1211 = vmatmul.mubr.bf16.gmra.mrb[0].mxu0 %v489
        %v1212 = vpop.f32.mrb[0].mxu0
        %v1213 = vadd.f32 0.0, %v1212
        %v1214 = vpop.f32.mrb[0].mxu0
        %v1215 = vpop.f32.mrb[0].mxu0
        %v1216 = vadd.f32 0.0, %v1215
        %v1217 = vpop.f32.mrb[0].mxu0
        %1218 = vmatprep.mubr.bf16.mxu0 0
        %1219 = vmatmul.mubr.bf16.gmra.mrb[0].mxu0 %v490
        %v1220 = vpop.f32.mrb[0].mxu0
        %v1221 = vadd.f32 0.0, %v1220
        %v1222 = vpop.f32.mrb[0].mxu0
        %v1223 = vpop.f32.mrb[0].mxu0
        %v1224 = vadd.f32 0.0, %v1223
        %v1225 = vpop.f32.mrb[0].mxu0
        %1226 = vmatprep.mubr.bf16.mxu0 0
        %1227 = vmatmul.mubr.bf16.gmra.mrb[0].mxu0 %v491
        %v1228 = vpop.f32.mrb[0].mxu0
        %v1229 = vadd.f32 0.0, %v1228
        %v1230 = vpop.f32.mrb[0].mxu0
        %v1231 = vpop.f32.mrb[0].mxu0
        %v1232 = vadd.f32 0.0, %v1231
        %v1233 = vpop.f32.mrb[0].mxu0
        %1234 = vmatprep.mubr.bf16.mxu0 0
        %1235 = vmatmul.mubr.bf16.gmra.mrb[0].mxu0 %v492
        %v1236 = vpop.f32.mrb[0].mxu0
        %v1237 = vadd.f32 0.0, %v1236
        %v1238 = vpop.f32.mrb[0].mxu0
        %v1239 = vpop.f32.mrb[0].mxu0
        %v1240 = vadd.f32 0.0, %v1239
        %v1241 = vpop.f32.mrb[0].mxu0
        %1242 = vmatprep.mubr.bf16.mxu0 0
        %1243 = vmatmul.mubr.bf16.gmra.mrb[0].mxu0 %v493
        %v1244 = vpop.f32.mrb[0].mxu0
        %v1245 = vadd.f32 0.0, %v1244
        %v1246 = vpop.f32.mrb[0].mxu0
        %v1247 = vpop.f32.mrb[0].mxu0
        %v1248 = vadd.f32 0.0, %v1247
        %v1249 = vpop.f32.mrb[0].mxu0
        %1250 = vmatprep.mubr.bf16.mxu0 0
        %1251 = vmatmul.mubr.bf16.gmra.mrb[0].mxu0 %v494
        %v1252 = vpop.f32.mrb[0].mxu0
        %v1253 = vadd.f32 0.0, %v1252
        %v1254 = vpop.f32.mrb[0].mxu0
        %v1255 = vpop.f32.mrb[0].mxu0
        %v1256 = vadd.f32 0.0, %v1255
        %v1257 = vpop.f32.mrb[0].mxu0
        %1258 = vmatprep.mubr.bf16.mxu0 0
        %1259 = vmatmul.mubr.bf16.gmra.mrb[0].mxu0 %v495
        %v1260 = vpop.f32.mrb[0].mxu0
        %v1261 = vadd.f32 0.0, %v1260
        %v1262 = vpop.f32.mrb[0].mxu0
        %v1263 = vpop.f32.mrb[0].mxu0
        %v1264 = vadd.f32 0.0, %v1263
        %v1265 = vpop.f32.mrb[0].mxu0
        %1266 = vdwg.mxu0
        %v1267 = vmax.f32 %v755, 0.0
        %v1268 = vmax.f32 %v757, 0.0
        %v1269 = vmax.f32 %v948, 0.0
        %v1270 = vmax.f32 %v950, 0.0
        %v1271 = vmax.f32 %v759, 0.0
        %v1272 = vmax.f32 %v761, 0.0
        %v1273 = vmax.f32 %v952, 0.0
        %v1274 = vmax.f32 %v954, 0.0
        %v1275 = vmax.f32 %v765, 0.0
        %v1276 = vmax.f32 %v767, 0.0
        %v1277 = vmax.f32 %v958, 0.0
        %v1278 = vmax.f32 %v960, 0.0
        %v1279 = vmax.f32 %v769, 0.0
        %v1280 = vmax.f32 %v771, 0.0
        %v1281 = vmax.f32 %v962, 0.0
        %v1282 = vmax.f32 %v964, 0.0
        %v1283 = vmax.f32 %v775, 0.0
        %v1284 = vmax.f32 %v777, 0.0
        %v1285 = vmax.f32 %v968, 0.0
        %v1286 = vmax.f32 %v970, 0.0
        %v1287 = vmax.f32 %v779, 0.0
        %v1288 = vmax.f32 %v781, 0.0
        %v1289 = vmax.f32 %v972, 0.0
        %v1290 = vmax.f32 %v974, 0.0
        %v1291 = vmax.f32 %v785, 0.0
        %v1292 = vmax.f32 %v787, 0.0
        %v1293 = vmax.f32 %v978, 0.0
        %v1294 = vmax.f32 %v980, 0.0
        %v1295 = vmax.f32 %v789, 0.0
        %v1296 = vmax.f32 %v791, 0.0
        %v1297 = vmax.f32 %v982, 0.0
        %v1298 = vmax.f32 %v984, 0.0
        %v1299 = vmax.f32 %v795, 0.0
        %v1300 = vmax.f32 %v797, 0.0
        %v1301 = vmax.f32 %v988, 0.0
        %v1302 = vmax.f32 %v990, 0.0
        %v1303 = vmax.f32 %v799, 0.0
        %v1304 = vmax.f32 %v801, 0.0
        %v1305 = vmax.f32 %v992, 0.0
        %v1306 = vmax.f32 %v994, 0.0
        %v1307 = vmax.f32 %v805, 0.0
        %v1308 = vmax.f32 %v807, 0.0
        %v1309 = vmax.f32 %v998, 0.0
        %v1310 = vmax.f32 %v1000, 0.0
        %v1311 = vmax.f32 %v809, 0.0
        %v1312 = vmax.f32 %v811, 0.0
        %v1313 = vmax.f32 %v1002, 0.0
        %v1314 = vmax.f32 %v1004, 0.0
        %v1315 = vmax.f32 %v815, 0.0
        %v1316 = vmax.f32 %v817, 0.0
        %v1317 = vmax.f32 %v1008, 0.0
        %v1318 = vmax.f32 %v1010, 0.0
        %v1319 = vmax.f32 %v819, 0.0
        %v1320 = vmax.f32 %v821, 0.0
        %v1321 = vmax.f32 %v1012, 0.0
        %v1322 = vmax.f32 %v1014, 0.0
        %v1323 = vmax.f32 %v825, 0.0
        %v1324 = vmax.f32 %v827, 0.0
        %v1325 = vmax.f32 %v1018, 0.0
        %v1326 = vmax.f32 %v1020, 0.0
        %v1327 = vmax.f32 %v829, 0.0
        %v1328 = vmax.f32 %v831, 0.0
        %v1329 = vmax.f32 %v1022, 0.0
        %v1330 = vmax.f32 %v1024, 0.0
        %v1331 = vmax.f32 %v835, 0.0
        %v1332 = vmax.f32 %v837, 0.0
        %v1333 = vmax.f32 %v1028, 0.0
        %v1334 = vmax.f32 %v1030, 0.0
        %v1335 = vmax.f32 %v839, 0.0
        %v1336 = vmax.f32 %v841, 0.0
        %v1337 = vmax.f32 %v1032, 0.0
        %v1338 = vmax.f32 %v1034, 0.0
        %v1339 = vmax.f32 %v845, 0.0
        %v1340 = vmax.f32 %v847, 0.0
        %v1341 = vmax.f32 %v1038, 0.0
        %v1342 = vmax.f32 %v1040, 0.0
        %v1343 = vmax.f32 %v849, 0.0
        %v1344 = vmax.f32 %v851, 0.0
        %v1345 = vmax.f32 %v1042, 0.0
        %v1346 = vmax.f32 %v1044, 0.0
        %v1347 = vmax.f32 %v855, 0.0
        %v1348 = vmax.f32 %v857, 0.0
        %v1349 = vmax.f32 %v1048, 0.0
        %v1350 = vmax.f32 %v1050, 0.0
        %v1351 = vmax.f32 %v859, 0.0
        %v1352 = vmax.f32 %v861, 0.0
        %v1353 = vmax.f32 %v1052, 0.0
        %v1354 = vmax.f32 %v1054, 0.0
        %v1355 = vmax.f32 %v865, 0.0
        %v1356 = vmax.f32 %v867, 0.0
        %v1357 = vmax.f32 %v1058, 0.0
        %v1358 = vmax.f32 %v1060, 0.0
        %v1359 = vmax.f32 %v869, 0.0
        %v1360 = vmax.f32 %v871, 0.0
        %v1361 = vmax.f32 %v1062, 0.0
        %v1362 = vmax.f32 %v1064, 0.0
        %v1363 = vmax.f32 %v875, 0.0
        %v1364 = vmax.f32 %v877, 0.0
        %v1365 = vmax.f32 %v1068, 0.0
        %v1366 = vmax.f32 %v1070, 0.0
        %v1367 = vmax.f32 %v879, 0.0
        %v1368 = vmax.f32 %v881, 0.0
        %v1369 = vmax.f32 %v1072, 0.0
        %v1370 = vmax.f32 %v1074, 0.0
        %v1371 = vmax.f32 %v885, 0.0
        %v1372 = vmax.f32 %v887, 0.0
        %v1373 = vmax.f32 %v1078, 0.0
        %v1374 = vmax.f32 %v1080, 0.0
        %v1375 = vmax.f32 %v889, 0.0
        %v1376 = vmax.f32 %v891, 0.0
        %v1377 = vmax.f32 %v1082, 0.0
        %v1378 = vmax.f32 %v1084, 0.0
        %v1379 = vmax.f32 %v895, 0.0
        %v1380 = vmax.f32 %v897, 0.0
        %v1381 = vmax.f32 %v1088, 0.0
        %v1382 = vmax.f32 %v1090, 0.0
        %v1383 = vmax.f32 %v899, 0.0
        %v1384 = vmax.f32 %v901, 0.0
        %v1385 = vmax.f32 %v1092, 0.0
        %v1386 = vmax.f32 %v1094, 0.0
        %v1387 = vmax.f32 %v905, 0.0
        %v1388 = vmax.f32 %v907, 0.0
        %v1389 = vmax.f32 %v1098, 0.0
        %v1390 = vmax.f32 %v1100, 0.0
        %v1391 = vmax.f32 %v909, 0.0
        %v1392 = vmax.f32 %v911, 0.0
        %v1393 = vmax.f32 %v1102, 0.0
        %v1394 = vmax.f32 %v1104, 0.0
        %v1395 = vpack.c.bf16 %v1271, %v1267
        %v1396 = vpack.c.bf16 %v1272, %v1268
        %v1397 = vpack.c.bf16 %v1273, %v1269
        %v1398 = vpack.c.bf16 %v1274, %v1270
        %v1399 = vpack.c.bf16 %v1279, %v1275
        %v1400 = vpack.c.bf16 %v1280, %v1276
        %v1401 = vpack.c.bf16 %v1281, %v1277
        %v1402 = vpack.c.bf16 %v1282, %v1278
        %v1403 = vpack.c.bf16 %v1287, %v1283
        %v1404 = vpack.c.bf16 %v1288, %v1284
        %v1405 = vpack.c.bf16 %v1289, %v1285
        %v1406 = vpack.c.bf16 %v1290, %v1286
        %v1407 = vpack.c.bf16 %v1295, %v1291
        %v1408 = vpack.c.bf16 %v1296, %v1292
        %v1409 = vpack.c.bf16 %v1297, %v1293
        %v1410 = vpack.c.bf16 %v1298, %v1294
        %v1411 = vpack.c.bf16 %v1303, %v1299
        %v1412 = vpack.c.bf16 %v1304, %v1300
        %v1413 = vpack.c.bf16 %v1305, %v1301
        %v1414 = vpack.c.bf16 %v1306, %v1302
        %v1415 = vpack.c.bf16 %v1311, %v1307
        %v1416 = vpack.c.bf16 %v1312, %v1308
        %v1417 = vpack.c.bf16 %v1313, %v1309
        %v1418 = vpack.c.bf16 %v1314, %v1310
        %v1419 = vpack.c.bf16 %v1319, %v1315
        %v1420 = vpack.c.bf16 %v1320, %v1316
        %v1421 = vpack.c.bf16 %v1321, %v1317
        %v1422 = vpack.c.bf16 %v1322, %v1318
        %v1423 = vpack.c.bf16 %v1327, %v1323
        %v1424 = vpack.c.bf16 %v1328, %v1324
        %v1425 = vpack.c.bf16 %v1329, %v1325
        %v1426 = vpack.c.bf16 %v1330, %v1326
        %v1427 = vpack.c.bf16 %v1335, %v1331
        %v1428 = vpack.c.bf16 %v1336, %v1332
        %v1429 = vpack.c.bf16 %v1337, %v1333
        %v1430 = vpack.c.bf16 %v1338, %v1334
        %v1431 = vpack.c.bf16 %v1343, %v1339
        %v1432 = vpack.c.bf16 %v1344, %v1340
        %v1433 = vpack.c.bf16 %v1345, %v1341
        %v1434 = vpack.c.bf16 %v1346, %v1342
        %v1435 = vpack.c.bf16 %v1351, %v1347
        %v1436 = vpack.c.bf16 %v1352, %v1348
        %v1437 = vpack.c.bf16 %v1353, %v1349
        %v1438 = vpack.c.bf16 %v1354, %v1350
        %v1439 = vpack.c.bf16 %v1359, %v1355
        %v1440 = vpack.c.bf16 %v1360, %v1356
        %v1441 = vpack.c.bf16 %v1361, %v1357
        %v1442 = vpack.c.bf16 %v1362, %v1358
        %v1443 = vpack.c.bf16 %v1367, %v1363
        %v1444 = vpack.c.bf16 %v1368, %v1364
        %v1445 = vpack.c.bf16 %v1369, %v1365
        %v1446 = vpack.c.bf16 %v1370, %v1366
        %v1447 = vpack.c.bf16 %v1375, %v1371
        %v1448 = vpack.c.bf16 %v1376, %v1372
        %v1449 = vpack.c.bf16 %v1377, %v1373
        %v1450 = vpack.c.bf16 %v1378, %v1374
        %v1451 = vpack.c.bf16 %v1383, %v1379
        %v1452 = vpack.c.bf16 %v1384, %v1380
        %v1453 = vpack.c.bf16 %v1385, %v1381
        %v1454 = vpack.c.bf16 %v1386, %v1382
        %v1455 = vpack.c.bf16 %v1391, %v1387
        %v1456 = vpack.c.bf16 %v1392, %v1388
        %v1457 = vpack.c.bf16 %v1393, %v1389
        %v1458 = vpack.c.bf16 %v1394, %v1390
        %v1459 = vld [vmem:[#allocation6] sm:$0xff]
        %v1460 = vld [vmem:[#allocation6 + $0x8] sm:$0xff]
        %v1461 = vld [vmem:[#allocation6 + $0x10] sm:$0xff]
        %v1462 = vld [vmem:[#allocation6 + $0x18] sm:$0xff]
        %v1463 = vld [vmem:[#allocation6 + $0x20] sm:$0xff]
        %v1464 = vld [vmem:[#allocation6 + $0x28] sm:$0xff]
        %v1465 = vld [vmem:[#allocation6 + $0x30] sm:$0xff]
        %v1466 = vld [vmem:[#allocation6 + $0x38] sm:$0xff]
        %v1467 = vld [vmem:[#allocation6 + $0x40] sm:$0xff]
        %v1468 = vld [vmem:[#allocation6 + $0x48] sm:$0xff]
        %v1469 = vld [vmem:[#allocation6 + $0x50] sm:$0xff]
        %v1470 = vld [vmem:[#allocation6 + $0x58] sm:$0xff]
        %v1471 = vld [vmem:[#allocation6 + $0x60] sm:$0xff]
        %v1472 = vld [vmem:[#allocation6 + $0x68] sm:$0xff]
        %v1473 = vld [vmem:[#allocation6 + $0x70] sm:$0xff]
        %v1474 = vld [vmem:[#allocation6 + $0x78] sm:$0xff]
        %v1475 = vld [vmem:[#allocation6 + $0x80] sm:$0xff]
        %v1476 = vld [vmem:[#allocation6 + $0x88] sm:$0xff]
        %v1477 = vld [vmem:[#allocation6 + $0x90] sm:$0xff]
        %v1478 = vld [vmem:[#allocation6 + $0x98] sm:$0xff]
        %v1479 = vld [vmem:[#allocation6 + $0xa0] sm:$0xff]
        %v1480 = vld [vmem:[#allocation6 + $0xa8] sm:$0xff]
        %v1481 = vld [vmem:[#allocation6 + $0xb0] sm:$0xff]
        %v1482 = vld [vmem:[#allocation6 + $0xb8] sm:$0xff]
        %v1483 = vld [vmem:[#allocation6 + $0xc0] sm:$0xff]
        %v1484 = vld [vmem:[#allocation6 + $0xc8] sm:$0xff]
        %v1485 = vld [vmem:[#allocation6 + $0xd0] sm:$0xff]
        %v1486 = vld [vmem:[#allocation6 + $0xd8] sm:$0xff]
        %v1487 = vld [vmem:[#allocation6 + $0xe0] sm:$0xff]
        %v1488 = vld [vmem:[#allocation6 + $0xe8] sm:$0xff]
        %v1489 = vld [vmem:[#allocation6 + $0xf0] sm:$0xff]
        %v1490 = vld [vmem:[#allocation6 + $0xf8] sm:$0xff]
        %v1491 = vld [vmem:[#allocation6 + $0x100] sm:$0xff]
        %v1492 = vld [vmem:[#allocation6 + $0x108] sm:$0xff]
        %v1493 = vld [vmem:[#allocation6 + $0x110] sm:$0xff]
        %v1494 = vld [vmem:[#allocation6 + $0x118] sm:$0xff]
        %v1495 = vld [vmem:[#allocation6 + $0x120] sm:$0xff]
        %v1496 = vld [vmem:[#allocation6 + $0x128] sm:$0xff]
        %v1497 = vld [vmem:[#allocation6 + $0x130] sm:$0xff]
        %v1498 = vld [vmem:[#allocation6 + $0x138] sm:$0xff]
        %v1499 = vld [vmem:[#allocation6 + $0x140] sm:$0xff]
        %v1500 = vld [vmem:[#allocation6 + $0x148] sm:$0xff]
        %v1501 = vld [vmem:[#allocation6 + $0x150] sm:$0xff]
        %v1502 = vld [vmem:[#allocation6 + $0x158] sm:$0xff]
        %v1503 = vld [vmem:[#allocation6 + $0x160] sm:$0xff]
        %v1504 = vld [vmem:[#allocation6 + $0x168] sm:$0xff]
        %v1505 = vld [vmem:[#allocation6 + $0x170] sm:$0xff]
        %v1506 = vld [vmem:[#allocation6 + $0x178] sm:$0xff]
        %v1507 = vld [vmem:[#allocation6 + $0x180] sm:$0xff]
        %v1508 = vld [vmem:[#allocation6 + $0x188] sm:$0xff]
        %v1509 = vld [vmem:[#allocation6 + $0x190] sm:$0xff]
        %v1510 = vld [vmem:[#allocation6 + $0x198] sm:$0xff]
        %v1511 = vld [vmem:[#allocation6 + $0x1a0] sm:$0xff]
        %v1512 = vld [vmem:[#allocation6 + $0x1a8] sm:$0xff]
        %v1513 = vld [vmem:[#allocation6 + $0x1b0] sm:$0xff]
        %v1514 = vld [vmem:[#allocation6 + $0x1b8] sm:$0xff]
        %v1515 = vld [vmem:[#allocation6 + $0x1c0] sm:$0xff]
        %v1516 = vld [vmem:[#allocation6 + $0x1c8] sm:$0xff]
        %v1517 = vld [vmem:[#allocation6 + $0x1d0] sm:$0xff]
        %v1518 = vld [vmem:[#allocation6 + $0x1d8] sm:$0xff]
        %v1519 = vld [vmem:[#allocation6 + $0x1e0] sm:$0xff]
        %v1520 = vld [vmem:[#allocation6 + $0x1e8] sm:$0xff]
        %v1521 = vld [vmem:[#allocation6 + $0x1f0] sm:$0xff]
        %v1522 = vld [vmem:[#allocation6 + $0x1f8] sm:$0xff]
        %v1524 = vlaneseq
        %v1525 = vshrl.u32 %v1524, 7
        %v1526 = vsub.s32 0, %v1525
        %v1527 = vrot.slane %v365, %v1526
        %v1528 = vlaneseq
        %v1529 = vshrl.u32 %v1528, 7
        %v1530 = vsub.s32 1, %v1529
        %v1531 = vrot.slane %v365, %v1530
        %v1598 = vunpack.c.l.b16 %v1459
        %v1599 = vunpack.c.h.b16 %v1459
        %v1600 = vunpack.c.l.b16 %v1460
        %v1601 = vunpack.c.h.b16 %v1460
        %v1602 = vunpack.c.l.b16 %v1461
        %v1603 = vunpack.c.h.b16 %v1461
        %v1604 = vunpack.c.l.b16 %v1462
        %v1605 = vunpack.c.h.b16 %v1462
        %v1606 = vunpack.c.l.b16 %v1463
        %v1607 = vunpack.c.h.b16 %v1463
        %v1608 = vunpack.c.l.b16 %v1464
        %v1609 = vunpack.c.h.b16 %v1464
        %v1610 = vunpack.c.l.b16 %v1465
        %v1611 = vunpack.c.h.b16 %v1465
        %v1612 = vunpack.c.l.b16 %v1466
        %v1613 = vunpack.c.h.b16 %v1466
        %v1614 = vunpack.c.l.b16 %v1467
        %v1615 = vunpack.c.h.b16 %v1467
        %v1616 = vunpack.c.l.b16 %v1468
        %v1617 = vunpack.c.h.b16 %v1468
        %v1618 = vunpack.c.l.b16 %v1469
        %v1619 = vunpack.c.h.b16 %v1469
        %v1620 = vunpack.c.l.b16 %v1470
        %v1621 = vunpack.c.h.b16 %v1470
        %v1622 = vunpack.c.l.b16 %v1471
        %v1623 = vunpack.c.h.b16 %v1471
        %v1624 = vunpack.c.l.b16 %v1472
        %v1625 = vunpack.c.h.b16 %v1472
        %v1626 = vunpack.c.l.b16 %v1473
        %v1627 = vunpack.c.h.b16 %v1473
        %v1628 = vunpack.c.l.b16 %v1474
        %v1629 = vunpack.c.h.b16 %v1474
        %v1630 = vunpack.c.l.b16 %v1475
        %v1631 = vunpack.c.h.b16 %v1475
        %v1632 = vunpack.c.l.b16 %v1476
        %v1633 = vunpack.c.h.b16 %v1476
        %v1634 = vunpack.c.l.b16 %v1477
        %v1635 = vunpack.c.h.b16 %v1477
        %v1636 = vunpack.c.l.b16 %v1478
        %v1637 = vunpack.c.h.b16 %v1478
        %v1638 = vunpack.c.l.b16 %v1479
        %v1639 = vunpack.c.h.b16 %v1479
        %v1640 = vunpack.c.l.b16 %v1480
        %v1641 = vunpack.c.h.b16 %v1480
        %v1642 = vunpack.c.l.b16 %v1481
        %v1643 = vunpack.c.h.b16 %v1481
        %v1644 = vunpack.c.l.b16 %v1482
        %v1645 = vunpack.c.h.b16 %v1482
        %v1646 = vunpack.c.l.b16 %v1483
        %v1647 = vunpack.c.h.b16 %v1483
        %v1648 = vunpack.c.l.b16 %v1484
        %v1649 = vunpack.c.h.b16 %v1484
        %v1650 = vunpack.c.l.b16 %v1485
        %v1651 = vunpack.c.h.b16 %v1485
        %v1652 = vunpack.c.l.b16 %v1486
        %v1653 = vunpack.c.h.b16 %v1486
        %v1654 = vunpack.c.l.b16 %v1487
        %v1655 = vunpack.c.h.b16 %v1487
        %v1656 = vunpack.c.l.b16 %v1488
        %v1657 = vunpack.c.h.b16 %v1488
        %v1658 = vunpack.c.l.b16 %v1489
        %v1659 = vunpack.c.h.b16 %v1489
        %v1660 = vunpack.c.l.b16 %v1490
        %v1661 = vunpack.c.h.b16 %v1490
        %v1662 = vunpack.c.l.b16 %v1491
        %v1663 = vunpack.c.h.b16 %v1491
        %v1664 = vunpack.c.l.b16 %v1492
        %v1665 = vunpack.c.h.b16 %v1492
        %v1666 = vunpack.c.l.b16 %v1493
        %v1667 = vunpack.c.h.b16 %v1493
        %v1668 = vunpack.c.l.b16 %v1494
        %v1669 = vunpack.c.h.b16 %v1494
        %v1670 = vunpack.c.l.b16 %v1495
        %v1671 = vunpack.c.h.b16 %v1495
        %v1672 = vunpack.c.l.b16 %v1496
        %v1673 = vunpack.c.h.b16 %v1496
        %v1674 = vunpack.c.l.b16 %v1497
        %v1675 = vunpack.c.h.b16 %v1497
        %v1676 = vunpack.c.l.b16 %v1498
        %v1677 = vunpack.c.h.b16 %v1498
        %v1678 = vunpack.c.l.b16 %v1499
        %v1679 = vunpack.c.h.b16 %v1499
        %v1680 = vunpack.c.l.b16 %v1500
        %v1681 = vunpack.c.h.b16 %v1500
        %v1682 = vunpack.c.l.b16 %v1501
        %v1683 = vunpack.c.h.b16 %v1501
        %v1684 = vunpack.c.l.b16 %v1502
        %v1685 = vunpack.c.h.b16 %v1502
        %v1686 = vunpack.c.l.b16 %v1503
        %v1687 = vunpack.c.h.b16 %v1503
        %v1688 = vunpack.c.l.b16 %v1504
        %v1689 = vunpack.c.h.b16 %v1504
        %v1690 = vunpack.c.l.b16 %v1505
        %v1691 = vunpack.c.h.b16 %v1505
        %v1692 = vunpack.c.l.b16 %v1506
        %v1693 = vunpack.c.h.b16 %v1506
        %v1694 = vunpack.c.l.b16 %v1507
        %v1695 = vunpack.c.h.b16 %v1507
        %v1696 = vunpack.c.l.b16 %v1508
        %v1697 = vunpack.c.h.b16 %v1508
        %v1698 = vunpack.c.l.b16 %v1509
        %v1699 = vunpack.c.h.b16 %v1509
        %v1700 = vunpack.c.l.b16 %v1510
        %v1701 = vunpack.c.h.b16 %v1510
        %v1702 = vunpack.c.l.b16 %v1511
        %v1703 = vunpack.c.h.b16 %v1511
        %v1704 = vunpack.c.l.b16 %v1512
        %v1705 = vunpack.c.h.b16 %v1512
        %v1706 = vunpack.c.l.b16 %v1513
        %v1707 = vunpack.c.h.b16 %v1513
        %v1708 = vunpack.c.l.b16 %v1514
        %v1709 = vunpack.c.h.b16 %v1514
        %v1710 = vunpack.c.l.b16 %v1515
        %v1711 = vunpack.c.h.b16 %v1515
        %v1712 = vunpack.c.l.b16 %v1516
        %v1713 = vunpack.c.h.b16 %v1516
        %v1714 = vunpack.c.l.b16 %v1517
        %v1715 = vunpack.c.h.b16 %v1517
        %v1716 = vunpack.c.l.b16 %v1518
        %v1717 = vunpack.c.h.b16 %v1518
        %v1718 = vunpack.c.l.b16 %v1519
        %v1719 = vunpack.c.h.b16 %v1519
        %v1720 = vunpack.c.l.b16 %v1520
        %v1721 = vunpack.c.h.b16 %v1520
        %v1722 = vunpack.c.l.b16 %v1521
        %v1723 = vunpack.c.h.b16 %v1521
        %v1724 = vunpack.c.l.b16 %v1522
        %v1725 = vunpack.c.h.b16 %v1522
        %v1726 = vpack.c.b16 %v1600, %v1598
        %v1727 = vpack.c.b16 %v1601, %v1599
        %v1728 = vpack.c.b16 %v1604, %v1602
        %v1729 = vpack.c.b16 %v1605, %v1603
        %v1730 = vpack.c.b16 %v1608, %v1606
        %v1731 = vpack.c.b16 %v1609, %v1607
        %v1732 = vpack.c.b16 %v1612, %v1610
        %v1733 = vpack.c.b16 %v1613, %v1611
        %v1734 = vpack.c.b16 %v1616, %v1614
        %v1735 = vpack.c.b16 %v1617, %v1615
        %v1736 = vpack.c.b16 %v1620, %v1618
        %v1737 = vpack.c.b16 %v1621, %v1619
        %v1738 = vpack.c.b16 %v1624, %v1622
        %v1739 = vpack.c.b16 %v1625, %v1623
        %v1740 = vpack.c.b16 %v1628, %v1626
        %v1741 = vpack.c.b16 %v1629, %v1627
        %v1742 = vpack.c.b16 %v1632, %v1630
        %v1743 = vpack.c.b16 %v1633, %v1631
        %v1744 = vpack.c.b16 %v1636, %v1634
        %v1745 = vpack.c.b16 %v1637, %v1635
        %v1746 = vpack.c.b16 %v1640, %v1638
        %v1747 = vpack.c.b16 %v1641, %v1639
        %v1748 = vpack.c.b16 %v1644, %v1642
        %v1749 = vpack.c.b16 %v1645, %v1643
        %v1750 = vpack.c.b16 %v1648, %v1646
        %v1751 = vpack.c.b16 %v1649, %v1647
        %v1752 = vpack.c.b16 %v1652, %v1650
        %v1753 = vpack.c.b16 %v1653, %v1651
        %v1754 = vpack.c.b16 %v1656, %v1654
        %v1755 = vpack.c.b16 %v1657, %v1655
        %v1756 = vpack.c.b16 %v1660, %v1658
        %v1757 = vpack.c.b16 %v1661, %v1659
        %v1758 = vpack.c.b16 %v1664, %v1662
        %v1759 = vpack.c.b16 %v1665, %v1663
        %v1760 = vpack.c.b16 %v1668, %v1666
        %v1761 = vpack.c.b16 %v1669, %v1667
        %v1762 = vpack.c.b16 %v1672, %v1670
        %v1763 = vpack.c.b16 %v1673, %v1671
        %v1764 = vpack.c.b16 %v1676, %v1674
        %v1765 = vpack.c.b16 %v1677, %v1675
        %v1766 = vpack.c.b16 %v1680, %v1678
        %v1767 = vpack.c.b16 %v1681, %v1679
        %v1768 = vpack.c.b16 %v1684, %v1682
        %v1769 = vpack.c.b16 %v1685, %v1683
        %v1770 = vpack.c.b16 %v1688, %v1686
        %v1771 = vpack.c.b16 %v1689, %v1687
        %v1772 = vpack.c.b16 %v1692, %v1690
        %v1773 = vpack.c.b16 %v1693, %v1691
        %v1774 = vpack.c.b16 %v1696, %v1694
        %v1775 = vpack.c.b16 %v1697, %v1695
        %v1776 = vpack.c.b16 %v1700, %v1698
        %v1777 = vpack.c.b16 %v1701, %v1699
        %v1778 = vpack.c.b16 %v1704, %v1702
        %v1779 = vpack.c.b16 %v1705, %v1703
        %v1780 = vpack.c.b16 %v1708, %v1706
        %v1781 = vpack.c.b16 %v1709, %v1707
        %v1782 = vpack.c.b16 %v1712, %v1710
        %v1783 = vpack.c.b16 %v1713, %v1711
        %v1784 = vpack.c.b16 %v1716, %v1714
        %v1785 = vpack.c.b16 %v1717, %v1715
        %v1786 = vpack.c.b16 %v1720, %v1718
        %v1787 = vpack.c.b16 %v1721, %v1719
        %v1788 = vpack.c.b16 %v1724, %v1722
        %v1789 = vpack.c.b16 %v1725, %v1723
        %1854 = vmatprep.subr.bf16.mxu0 %v1727
        %1855 = vmatpush1.bf16.msra.mxu0 %v1726
        %1856 = vmatprep.subr.bf16.mxu0 %v1729
        %1857 = vmatpush1.bf16.msra.mxu0 %v1728
        %1858 = vmatprep.subr.bf16.mxu0 %v1731
        %1859 = vmatpush1.bf16.msra.mxu0 %v1730
        %1860 = vmatprep.subr.bf16.mxu0 %v1733
        %1861 = vmatpush1.bf16.msra.mxu0 %v1732
        %1862 = vmatprep.subr.bf16.mxu0 %v1735
        %1863 = vmatpush1.bf16.msra.mxu0 %v1734
        %1864 = vmatprep.subr.bf16.mxu0 %v1737
        %1865 = vmatpush1.bf16.msra.mxu0 %v1736
        %1866 = vmatprep.subr.bf16.mxu0 %v1739
        %1867 = vmatpush1.bf16.msra.mxu0 %v1738
        %1868 = vmatprep.subr.bf16.mxu0 %v1741
        %1869 = vmatpush1.bf16.msra.mxu0 %v1740
        %1870 = vmatprep.subr.bf16.mxu0 %v1743
        %1871 = vmatpush1.bf16.msra.mxu0 %v1742
        %1872 = vmatprep.subr.bf16.mxu0 %v1745
        %1873 = vmatpush1.bf16.msra.mxu0 %v1744
        %1874 = vmatprep.subr.bf16.mxu0 %v1747
        %1875 = vmatpush1.bf16.msra.mxu0 %v1746
        %1876 = vmatprep.subr.bf16.mxu0 %v1749
        %1877 = vmatpush1.bf16.msra.mxu0 %v1748
        %1878 = vmatprep.subr.bf16.mxu0 %v1751
        %1879 = vmatpush1.bf16.msra.mxu0 %v1750
        %1880 = vmatprep.subr.bf16.mxu0 %v1753
        %1881 = vmatpush1.bf16.msra.mxu0 %v1752
        %1882 = vmatprep.subr.bf16.mxu0 %v1755
        %1883 = vmatpush1.bf16.msra.mxu0 %v1754
        %1884 = vmatprep.subr.bf16.mxu0 %v1757
        %1885 = vmatpush1.bf16.msra.mxu0 %v1756
        %1886 = vmatprep.mubr.bf16.mxu0 %v1396
        %1887 = vmatmul.mubr.bf16.gmra.mrb[0].mxu0 %v1395
        %v1888 = vpop.f32.mrb[0].mxu0
        %v1889 = vadd.f32 %v1527, %v1888
        %v1890 = vpop.f32.mrb[0].mxu0
        %v1891 = vadd.f32 %v1531, %v1890
        %v1892 = vpop.f32.mrb[0].mxu0
        %v1893 = vadd.f32 %v1527, %v1892
        %v1894 = vpop.f32.mrb[0].mxu0
        %v1895 = vadd.f32 %v1531, %v1894
        %1896 = vmatprep.mubr.bf16.mxu0 %v1400
        %1897 = vmatmul.mubr.bf16.gmra.mrb[0].mxu0 %v1399
        %v1898 = vpop.f32.mrb[0].mxu0
        %v1899 = vadd.f32 %v1527, %v1898
        %v1900 = vpop.f32.mrb[0].mxu0
        %v1901 = vadd.f32 %v1531, %v1900
        %v1902 = vpop.f32.mrb[0].mxu0
        %v1903 = vadd.f32 %v1527, %v1902
        %v1904 = vpop.f32.mrb[0].mxu0
        %v1905 = vadd.f32 %v1531, %v1904
        %1906 = vmatprep.mubr.bf16.mxu0 %v1404
        %1907 = vmatmul.mubr.bf16.gmra.mrb[0].mxu0 %v1403
        %v1908 = vpop.f32.mrb[0].mxu0
        %v1909 = vadd.f32 %v1527, %v1908
        %v1910 = vpop.f32.mrb[0].mxu0
        %v1911 = vadd.f32 %v1531, %v1910
        %v1912 = vpop.f32.mrb[0].mxu0
        %v1913 = vadd.f32 %v1527, %v1912
        %v1914 = vpop.f32.mrb[0].mxu0
        %v1915 = vadd.f32 %v1531, %v1914
        %1916 = vmatprep.mubr.bf16.mxu0 %v1408
        %1917 = vmatmul.mubr.bf16.gmra.mrb[0].mxu0 %v1407
        %v1918 = vpop.f32.mrb[0].mxu0
        %v1919 = vadd.f32 %v1527, %v1918
        %v1920 = vpop.f32.mrb[0].mxu0
        %v1921 = vadd.f32 %v1531, %v1920
        %v1922 = vpop.f32.mrb[0].mxu0
        %v1923 = vadd.f32 %v1527, %v1922
        %v1924 = vpop.f32.mrb[0].mxu0
        %v1925 = vadd.f32 %v1531, %v1924
        %1926 = vmatprep.mubr.bf16.mxu0 %v1412
        %1927 = vmatmul.mubr.bf16.gmra.mrb[0].mxu0 %v1411
        %v1928 = vpop.f32.mrb[0].mxu0
        %v1929 = vadd.f32 %v1527, %v1928
        %v1930 = vpop.f32.mrb[0].mxu0
        %v1931 = vadd.f32 %v1531, %v1930
        %v1932 = vpop.f32.mrb[0].mxu0
        %v1933 = vadd.f32 %v1527, %v1932
        %v1934 = vpop.f32.mrb[0].mxu0
        %v1935 = vadd.f32 %v1531, %v1934
        %1936 = vmatprep.mubr.bf16.mxu0 %v1416
        %1937 = vmatmul.mubr.bf16.gmra.mrb[0].mxu0 %v1415
        %v1938 = vpop.f32.mrb[0].mxu0
        %v1939 = vadd.f32 %v1527, %v1938
        %v1940 = vpop.f32.mrb[0].mxu0
        %v1941 = vadd.f32 %v1531, %v1940
        %v1942 = vpop.f32.mrb[0].mxu0
        %v1943 = vadd.f32 %v1527, %v1942
        %v1944 = vpop.f32.mrb[0].mxu0
        %v1945 = vadd.f32 %v1531, %v1944
        %1946 = vmatprep.mubr.bf16.mxu0 %v1420
        %1947 = vmatmul.mubr.bf16.gmra.mrb[0].mxu0 %v1419
        %v1948 = vpop.f32.mrb[0].mxu0
        %v1949 = vadd.f32 %v1527, %v1948
        %v1950 = vpop.f32.mrb[0].mxu0
        %v1951 = vadd.f32 %v1531, %v1950
        %v1952 = vpop.f32.mrb[0].mxu0
        %v1953 = vadd.f32 %v1527, %v1952
        %v1954 = vpop.f32.mrb[0].mxu0
        %v1955 = vadd.f32 %v1531, %v1954
        %1956 = vmatprep.mubr.bf16.mxu0 %v1424
        %1957 = vmatmul.mubr.bf16.gmra.mrb[0].mxu0 %v1423
        %v1958 = vpop.f32.mrb[0].mxu0
        %v1959 = vadd.f32 %v1527, %v1958
        %v1960 = vpop.f32.mrb[0].mxu0
        %v1961 = vadd.f32 %v1531, %v1960
        %v1962 = vpop.f32.mrb[0].mxu0
        %v1963 = vadd.f32 %v1527, %v1962
        %v1964 = vpop.f32.mrb[0].mxu0
        %v1965 = vadd.f32 %v1531, %v1964
        %1966 = vmatprep.mubr.bf16.mxu0 %v1428
        %1967 = vmatmul.mubr.bf16.gmra.mrb[0].mxu0 %v1427
        %v1968 = vpop.f32.mrb[0].mxu0
        %v1969 = vadd.f32 %v1527, %v1968
        %v1970 = vpop.f32.mrb[0].mxu0
        %v1971 = vadd.f32 %v1531, %v1970
        %v1972 = vpop.f32.mrb[0].mxu0
        %v1973 = vadd.f32 %v1527, %v1972
        %v1974 = vpop.f32.mrb[0].mxu0
        %v1975 = vadd.f32 %v1531, %v1974
        %1976 = vmatprep.mubr.bf16.mxu0 %v1432
        %1977 = vmatmul.mubr.bf16.gmra.mrb[0].mxu0 %v1431
        %v1978 = vpop.f32.mrb[0].mxu0
        %v1979 = vadd.f32 %v1527, %v1978
        %v1980 = vpop.f32.mrb[0].mxu0
        %v1981 = vadd.f32 %v1531, %v1980
        %v1982 = vpop.f32.mrb[0].mxu0
        %v1983 = vadd.f32 %v1527, %v1982
        %v1984 = vpop.f32.mrb[0].mxu0
        %v1985 = vadd.f32 %v1531, %v1984
        %1986 = vmatprep.mubr.bf16.mxu0 %v1436
        %1987 = vmatmul.mubr.bf16.gmra.mrb[0].mxu0 %v1435
        %v1988 = vpop.f32.mrb[0].mxu0
        %v1989 = vadd.f32 %v1527, %v1988
        %v1990 = vpop.f32.mrb[0].mxu0
        %v1991 = vadd.f32 %v1531, %v1990
        %v1992 = vpop.f32.mrb[0].mxu0
        %v1993 = vadd.f32 %v1527, %v1992
        %v1994 = vpop.f32.mrb[0].mxu0
        %v1995 = vadd.f32 %v1531, %v1994
        %1996 = vmatprep.mubr.bf16.mxu0 %v1440
        %1997 = vmatmul.mubr.bf16.gmra.mrb[0].mxu0 %v1439
        %v1998 = vpop.f32.mrb[0].mxu0
        %v1999 = vadd.f32 %v1527, %v1998
        %v2000 = vpop.f32.mrb[0].mxu0
        %v2001 = vadd.f32 %v1531, %v2000
        %v2002 = vpop.f32.mrb[0].mxu0
        %v2003 = vadd.f32 %v1527, %v2002
        %v2004 = vpop.f32.mrb[0].mxu0
        %v2005 = vadd.f32 %v1531, %v2004
        %2006 = vmatprep.mubr.bf16.mxu0 %v1444
        %2007 = vmatmul.mubr.bf16.gmra.mrb[0].mxu0 %v1443
        %v2008 = vpop.f32.mrb[0].mxu0
        %v2009 = vadd.f32 %v1527, %v2008
        %v2010 = vpop.f32.mrb[0].mxu0
        %v2011 = vadd.f32 %v1531, %v2010
        %v2012 = vpop.f32.mrb[0].mxu0
        %v2013 = vadd.f32 %v1527, %v2012
        %v2014 = vpop.f32.mrb[0].mxu0
        %v2015 = vadd.f32 %v1531, %v2014
        %2016 = vmatprep.mubr.bf16.mxu0 %v1448
        %2017 = vmatmul.mubr.bf16.gmra.mrb[0].mxu0 %v1447
        %v2018 = vpop.f32.mrb[0].mxu0
        %v2019 = vadd.f32 %v1527, %v2018
        %v2020 = vpop.f32.mrb[0].mxu0
        %v2021 = vadd.f32 %v1531, %v2020
        %v2022 = vpop.f32.mrb[0].mxu0
        %v2023 = vadd.f32 %v1527, %v2022
        %v2024 = vpop.f32.mrb[0].mxu0
        %v2025 = vadd.f32 %v1531, %v2024
        %2026 = vmatprep.mubr.bf16.mxu0 %v1452
        %2027 = vmatmul.mubr.bf16.gmra.mrb[0].mxu0 %v1451
        %v2028 = vpop.f32.mrb[0].mxu0
        %v2029 = vadd.f32 %v1527, %v2028
        %v2030 = vpop.f32.mrb[0].mxu0
        %v2031 = vadd.f32 %v1531, %v2030
        %v2032 = vpop.f32.mrb[0].mxu0
        %v2033 = vadd.f32 %v1527, %v2032
        %v2034 = vpop.f32.mrb[0].mxu0
        %v2035 = vadd.f32 %v1531, %v2034
        %2036 = vmatprep.mubr.bf16.mxu0 %v1456
        %2037 = vmatmul.mubr.bf16.gmra.mrb[0].mxu0 %v1455
        %v2038 = vpop.f32.mrb[0].mxu0
        %v2039 = vadd.f32 %v1527, %v2038
        %v2040 = vpop.f32.mrb[0].mxu0
        %v2041 = vadd.f32 %v1531, %v2040
        %v2042 = vpop.f32.mrb[0].mxu0
        %v2043 = vadd.f32 %v1527, %v2042
        %v2044 = vpop.f32.mrb[0].mxu0
        %v2045 = vadd.f32 %v1531, %v2044
        %2046 = vdwg.mxu0
        %2047 = vmatprep.subr.bf16.mxu0 %v1759
        %2048 = vmatpush1.bf16.msra.mxu0 %v1758
        %2049 = vmatprep.subr.bf16.mxu0 %v1761
        %2050 = vmatpush1.bf16.msra.mxu0 %v1760
        %2051 = vmatprep.subr.bf16.mxu0 %v1763
        %2052 = vmatpush1.bf16.msra.mxu0 %v1762
        %2053 = vmatprep.subr.bf16.mxu0 %v1765
        %2054 = vmatpush1.bf16.msra.mxu0 %v1764
        %2055 = vmatprep.subr.bf16.mxu0 %v1767
        %2056 = vmatpush1.bf16.msra.mxu0 %v1766
        %2057 = vmatprep.subr.bf16.mxu0 %v1769
        %2058 = vmatpush1.bf16.msra.mxu0 %v1768
        %2059 = vmatprep.subr.bf16.mxu0 %v1771
        %2060 = vmatpush1.bf16.msra.mxu0 %v1770
        %2061 = vmatprep.subr.bf16.mxu0 %v1773
        %2062 = vmatpush1.bf16.msra.mxu0 %v1772
        %2063 = vmatprep.subr.bf16.mxu0 %v1775
        %2064 = vmatpush1.bf16.msra.mxu0 %v1774
        %2065 = vmatprep.subr.bf16.mxu0 %v1777
        %2066 = vmatpush1.bf16.msra.mxu0 %v1776
        %2067 = vmatprep.subr.bf16.mxu0 %v1779
        %2068 = vmatpush1.bf16.msra.mxu0 %v1778
        %2069 = vmatprep.subr.bf16.mxu0 %v1781
        %2070 = vmatpush1.bf16.msra.mxu0 %v1780
        %2071 = vmatprep.subr.bf16.mxu0 %v1783
        %2072 = vmatpush1.bf16.msra.mxu0 %v1782
        %2073 = vmatprep.subr.bf16.mxu0 %v1785
        %2074 = vmatpush1.bf16.msra.mxu0 %v1784
        %2075 = vmatprep.subr.bf16.mxu0 %v1787
        %2076 = vmatpush1.bf16.msra.mxu0 %v1786
        %2077 = vmatprep.subr.bf16.mxu0 %v1789
        %2078 = vmatpush1.bf16.msra.mxu0 %v1788
        %2079 = vmatprep.mubr.bf16.mxu0 %v1398
        %2080 = vmatmul.mubr.bf16.gmra.mrb[0].mxu0 %v1397
        %v2081 = vpop.f32.mrb[0].mxu0
        %v2082 = vadd.f32 %v1889, %v2081
        %v2083 = vpop.f32.mrb[0].mxu0
        %v2084 = vadd.f32 %v1891, %v2083
        %v2085 = vpop.f32.mrb[0].mxu0
        %v2086 = vadd.f32 %v1893, %v2085
        %v2087 = vpop.f32.mrb[0].mxu0
        %v2088 = vadd.f32 %v1895, %v2087
        %2089 = vmatprep.mubr.bf16.mxu0 %v1402
        %2090 = vmatmul.mubr.bf16.gmra.mrb[0].mxu0 %v1401
        %v2091 = vpop.f32.mrb[0].mxu0
        %v2092 = vadd.f32 %v1899, %v2091
        %v2093 = vpop.f32.mrb[0].mxu0
        %v2094 = vadd.f32 %v1901, %v2093
        %v2095 = vpop.f32.mrb[0].mxu0
        %v2096 = vadd.f32 %v1903, %v2095
        %v2097 = vpop.f32.mrb[0].mxu0
        %v2098 = vadd.f32 %v1905, %v2097
        %2099 = vmatprep.mubr.bf16.mxu0 %v1406
        %2100 = vmatmul.mubr.bf16.gmra.mrb[0].mxu0 %v1405
        %v2101 = vpop.f32.mrb[0].mxu0
        %v2102 = vadd.f32 %v1909, %v2101
        %v2103 = vpop.f32.mrb[0].mxu0
        %v2104 = vadd.f32 %v1911, %v2103
        %v2105 = vpop.f32.mrb[0].mxu0
        %v2106 = vadd.f32 %v1913, %v2105
        %v2107 = vpop.f32.mrb[0].mxu0
        %v2108 = vadd.f32 %v1915, %v2107
        %2109 = vmatprep.mubr.bf16.mxu0 %v1410
        %2110 = vmatmul.mubr.bf16.gmra.mrb[0].mxu0 %v1409
        %v2111 = vpop.f32.mrb[0].mxu0
        %v2112 = vadd.f32 %v1919, %v2111
        %v2113 = vpop.f32.mrb[0].mxu0
        %v2114 = vadd.f32 %v1921, %v2113
        %v2115 = vpop.f32.mrb[0].mxu0
        %v2116 = vadd.f32 %v1923, %v2115
        %v2117 = vpop.f32.mrb[0].mxu0
        %v2118 = vadd.f32 %v1925, %v2117
        %2119 = vmatprep.mubr.bf16.mxu0 %v1414
        %2120 = vmatmul.mubr.bf16.gmra.mrb[0].mxu0 %v1413
        %v2121 = vpop.f32.mrb[0].mxu0
        %v2122 = vadd.f32 %v1929, %v2121
        %v2123 = vpop.f32.mrb[0].mxu0
        %v2124 = vadd.f32 %v1931, %v2123
        %v2125 = vpop.f32.mrb[0].mxu0
        %v2126 = vadd.f32 %v1933, %v2125
        %v2127 = vpop.f32.mrb[0].mxu0
        %v2128 = vadd.f32 %v1935, %v2127
        %2129 = vmatprep.mubr.bf16.mxu0 %v1418
        %2130 = vmatmul.mubr.bf16.gmra.mrb[0].mxu0 %v1417
        %v2131 = vpop.f32.mrb[0].mxu0
        %v2132 = vadd.f32 %v1939, %v2131
        %v2133 = vpop.f32.mrb[0].mxu0
        %v2134 = vadd.f32 %v1941, %v2133
        %v2135 = vpop.f32.mrb[0].mxu0
        %v2136 = vadd.f32 %v1943, %v2135
        %v2137 = vpop.f32.mrb[0].mxu0
        %v2138 = vadd.f32 %v1945, %v2137
        %2139 = vmatprep.mubr.bf16.mxu0 %v1422
        %2140 = vmatmul.mubr.bf16.gmra.mrb[0].mxu0 %v1421
        %v2141 = vpop.f32.mrb[0].mxu0
        %v2142 = vadd.f32 %v1949, %v2141
        %v2143 = vpop.f32.mrb[0].mxu0
        %v2144 = vadd.f32 %v1951, %v2143
        %v2145 = vpop.f32.mrb[0].mxu0
        %v2146 = vadd.f32 %v1953, %v2145
        %v2147 = vpop.f32.mrb[0].mxu0
        %v2148 = vadd.f32 %v1955, %v2147
        %2149 = vmatprep.mubr.bf16.mxu0 %v1426
        %2150 = vmatmul.mubr.bf16.gmra.mrb[0].mxu0 %v1425
        %v2151 = vpop.f32.mrb[0].mxu0
        %v2152 = vadd.f32 %v1959, %v2151
        %v2153 = vpop.f32.mrb[0].mxu0
        %v2154 = vadd.f32 %v1961, %v2153
        %v2155 = vpop.f32.mrb[0].mxu0
        %v2156 = vadd.f32 %v1963, %v2155
        %v2157 = vpop.f32.mrb[0].mxu0
        %v2158 = vadd.f32 %v1965, %v2157
        %2159 = vmatprep.mubr.bf16.mxu0 %v1430
        %2160 = vmatmul.mubr.bf16.gmra.mrb[0].mxu0 %v1429
        %v2161 = vpop.f32.mrb[0].mxu0
        %v2162 = vadd.f32 %v1969, %v2161
        %v2163 = vpop.f32.mrb[0].mxu0
        %v2164 = vadd.f32 %v1971, %v2163
        %v2165 = vpop.f32.mrb[0].mxu0
        %v2166 = vadd.f32 %v1973, %v2165
        %v2167 = vpop.f32.mrb[0].mxu0
        %v2168 = vadd.f32 %v1975, %v2167
        %2169 = vmatprep.mubr.bf16.mxu0 %v1434
        %2170 = vmatmul.mubr.bf16.gmra.mrb[0].mxu0 %v1433
        %v2171 = vpop.f32.mrb[0].mxu0
        %v2172 = vadd.f32 %v1979, %v2171
        %v2173 = vpop.f32.mrb[0].mxu0
        %v2174 = vadd.f32 %v1981, %v2173
        %v2175 = vpop.f32.mrb[0].mxu0
        %v2176 = vadd.f32 %v1983, %v2175
        %v2177 = vpop.f32.mrb[0].mxu0
        %v2178 = vadd.f32 %v1985, %v2177
        %2179 = vmatprep.mubr.bf16.mxu0 %v1438
        %2180 = vmatmul.mubr.bf16.gmra.mrb[0].mxu0 %v1437
        %v2181 = vpop.f32.mrb[0].mxu0
        %v2182 = vadd.f32 %v1989, %v2181
        %v2183 = vpop.f32.mrb[0].mxu0
        %v2184 = vadd.f32 %v1991, %v2183
        %v2185 = vpop.f32.mrb[0].mxu0
        %v2186 = vadd.f32 %v1993, %v2185
        %v2187 = vpop.f32.mrb[0].mxu0
        %v2188 = vadd.f32 %v1995, %v2187
        %2189 = vmatprep.mubr.bf16.mxu0 %v1442
        %2190 = vmatmul.mubr.bf16.gmra.mrb[0].mxu0 %v1441
        %v2191 = vpop.f32.mrb[0].mxu0
        %v2192 = vadd.f32 %v1999, %v2191
        %v2193 = vpop.f32.mrb[0].mxu0
        %v2194 = vadd.f32 %v2001, %v2193
        %v2195 = vpop.f32.mrb[0].mxu0
        %v2196 = vadd.f32 %v2003, %v2195
        %v2197 = vpop.f32.mrb[0].mxu0
        %v2198 = vadd.f32 %v2005, %v2197
        %2199 = vmatprep.mubr.bf16.mxu0 %v1446
        %2200 = vmatmul.mubr.bf16.gmra.mrb[0].mxu0 %v1445
        %v2201 = vpop.f32.mrb[0].mxu0
        %v2202 = vadd.f32 %v2009, %v2201
        %v2203 = vpop.f32.mrb[0].mxu0
        %v2204 = vadd.f32 %v2011, %v2203
        %v2205 = vpop.f32.mrb[0].mxu0
        %v2206 = vadd.f32 %v2013, %v2205
        %v2207 = vpop.f32.mrb[0].mxu0
        %v2208 = vadd.f32 %v2015, %v2207
        %2209 = vmatprep.mubr.bf16.mxu0 %v1450
        %2210 = vmatmul.mubr.bf16.gmra.mrb[0].mxu0 %v1449
        %v2211 = vpop.f32.mrb[0].mxu0
        %v2212 = vadd.f32 %v2019, %v2211
        %v2213 = vpop.f32.mrb[0].mxu0
        %v2214 = vadd.f32 %v2021, %v2213
        %v2215 = vpop.f32.mrb[0].mxu0
        %v2216 = vadd.f32 %v2023, %v2215
        %v2217 = vpop.f32.mrb[0].mxu0
        %v2218 = vadd.f32 %v2025, %v2217
        %2219 = vmatprep.mubr.bf16.mxu0 %v1454
        %2220 = vmatmul.mubr.bf16.gmra.mrb[0].mxu0 %v1453
        %v2221 = vpop.f32.mrb[0].mxu0
        %v2222 = vadd.f32 %v2029, %v2221
        %v2223 = vpop.f32.mrb[0].mxu0
        %v2224 = vadd.f32 %v2031, %v2223
        %v2225 = vpop.f32.mrb[0].mxu0
        %v2226 = vadd.f32 %v2033, %v2225
        %v2227 = vpop.f32.mrb[0].mxu0
        %v2228 = vadd.f32 %v2035, %v2227
        %2229 = vmatprep.mubr.bf16.mxu0 %v1458
        %2230 = vmatmul.mubr.bf16.gmra.mrb[0].mxu0 %v1457
        %v2231 = vpop.f32.mrb[0].mxu0
        %v2232 = vadd.f32 %v2039, %v2231
        %v2233 = vpop.f32.mrb[0].mxu0
        %v2234 = vadd.f32 %v2041, %v2233
        %v2235 = vpop.f32.mrb[0].mxu0
        %v2236 = vadd.f32 %v2043, %v2235
        %v2237 = vpop.f32.mrb[0].mxu0
        %v2238 = vadd.f32 %v2045, %v2237
        %2239 = vdwg.mxu0
        %v2240 = vmax.f32 %v2082, 0.0
        %v2241 = vmax.f32 %v2084, 0.0
        %v2242 = vmax.f32 %v2086, 0.0
        %v2243 = vmax.f32 %v2088, 0.0
        %v2244 = vmax.f32 %v2092, 0.0
        %v2245 = vmax.f32 %v2094, 0.0
        %v2246 = vmax.f32 %v2096, 0.0
        %v2247 = vmax.f32 %v2098, 0.0
        %v2248 = vmax.f32 %v2102, 0.0
        %v2249 = vmax.f32 %v2104, 0.0
        %v2250 = vmax.f32 %v2106, 0.0
        %v2251 = vmax.f32 %v2108, 0.0
        %v2252 = vmax.f32 %v2112, 0.0
        %v2253 = vmax.f32 %v2114, 0.0
        %v2254 = vmax.f32 %v2116, 0.0
        %v2255 = vmax.f32 %v2118, 0.0
        %v2256 = vmax.f32 %v2122, 0.0
        %v2257 = vmax.f32 %v2124, 0.0
        %v2258 = vmax.f32 %v2126, 0.0
        %v2259 = vmax.f32 %v2128, 0.0
        %v2260 = vmax.f32 %v2132, 0.0
        %v2261 = vmax.f32 %v2134, 0.0
        %v2262 = vmax.f32 %v2136, 0.0
        %v2263 = vmax.f32 %v2138, 0.0
        %v2264 = vmax.f32 %v2142, 0.0
        %v2265 = vmax.f32 %v2144, 0.0
        %v2266 = vmax.f32 %v2146, 0.0
        %v2267 = vmax.f32 %v2148, 0.0
        %v2268 = vmax.f32 %v2152, 0.0
        %v2269 = vmax.f32 %v2154, 0.0
        %v2270 = vmax.f32 %v2156, 0.0
        %v2271 = vmax.f32 %v2158, 0.0
        %v2272 = vmax.f32 %v2162, 0.0
        %v2273 = vmax.f32 %v2164, 0.0
        %v2274 = vmax.f32 %v2166, 0.0
        %v2275 = vmax.f32 %v2168, 0.0
        %v2276 = vmax.f32 %v2172, 0.0
        %v2277 = vmax.f32 %v2174, 0.0
        %v2278 = vmax.f32 %v2176, 0.0
        %v2279 = vmax.f32 %v2178, 0.0
        %v2280 = vmax.f32 %v2182, 0.0
        %v2281 = vmax.f32 %v2184, 0.0
        %v2282 = vmax.f32 %v2186, 0.0
        %v2283 = vmax.f32 %v2188, 0.0
        %v2284 = vmax.f32 %v2192, 0.0
        %v2285 = vmax.f32 %v2194, 0.0
        %v2286 = vmax.f32 %v2196, 0.0
        %v2287 = vmax.f32 %v2198, 0.0
        %v2288 = vmax.f32 %v2202, 0.0
        %v2289 = vmax.f32 %v2204, 0.0
        %v2290 = vmax.f32 %v2206, 0.0
        %v2291 = vmax.f32 %v2208, 0.0
        %v2292 = vmax.f32 %v2212, 0.0
        %v2293 = vmax.f32 %v2214, 0.0
        %v2294 = vmax.f32 %v2216, 0.0
        %v2295 = vmax.f32 %v2218, 0.0
        %v2296 = vmax.f32 %v2222, 0.0
        %v2297 = vmax.f32 %v2224, 0.0
        %v2298 = vmax.f32 %v2226, 0.0
        %v2299 = vmax.f32 %v2228, 0.0
        %v2300 = vmax.f32 %v2232, 0.0
        %v2301 = vmax.f32 %v2234, 0.0
        %v2302 = vmax.f32 %v2236, 0.0
        %v2303 = vmax.f32 %v2238, 0.0
        %v2304 = vpack.c.bf16 %v2242, %v2240
        %v2305 = vpack.c.bf16 %v2243, %v2241
        %v2306 = vpack.c.bf16 %v2246, %v2244
        %v2307 = vpack.c.bf16 %v2247, %v2245
        %v2308 = vpack.c.bf16 %v2250, %v2248
        %v2309 = vpack.c.bf16 %v2251, %v2249
        %v2310 = vpack.c.bf16 %v2254, %v2252
        %v2311 = vpack.c.bf16 %v2255, %v2253
        %v2312 = vpack.c.bf16 %v2258, %v2256
        %v2313 = vpack.c.bf16 %v2259, %v2257
        %v2314 = vpack.c.bf16 %v2262, %v2260
        %v2315 = vpack.c.bf16 %v2263, %v2261
        %v2316 = vpack.c.bf16 %v2266, %v2264
        %v2317 = vpack.c.bf16 %v2267, %v2265
        %v2318 = vpack.c.bf16 %v2270, %v2268
        %v2319 = vpack.c.bf16 %v2271, %v2269
        %v2320 = vpack.c.bf16 %v2274, %v2272
        %v2321 = vpack.c.bf16 %v2275, %v2273
        %v2322 = vpack.c.bf16 %v2278, %v2276
        %v2323 = vpack.c.bf16 %v2279, %v2277
        %v2324 = vpack.c.bf16 %v2282, %v2280
        %v2325 = vpack.c.bf16 %v2283, %v2281
        %v2326 = vpack.c.bf16 %v2286, %v2284
        %v2327 = vpack.c.bf16 %v2287, %v2285
        %v2328 = vpack.c.bf16 %v2290, %v2288
        %v2329 = vpack.c.bf16 %v2291, %v2289
        %v2330 = vpack.c.bf16 %v2294, %v2292
        %v2331 = vpack.c.bf16 %v2295, %v2293
        %v2332 = vpack.c.bf16 %v2298, %v2296
        %v2333 = vpack.c.bf16 %v2299, %v2297
        %v2334 = vpack.c.bf16 %v2302, %v2300
        %v2335 = vpack.c.bf16 %v2303, %v2301
        %v2336 = vld [vmem:[#allocation7] sm:$0xf]
        %v2337 = vld [vmem:[#allocation7 + $0x4] sm:$0xf]
        %v2338 = vld [vmem:[#allocation7 + $0x8] sm:$0xf]
        %v2339 = vld [vmem:[#allocation7 + $0xc] sm:$0xf]
        %v2340 = vld [vmem:[#allocation7 + $0x10] sm:$0xf]
        %v2341 = vld [vmem:[#allocation7 + $0x14] sm:$0xf]
        %v2342 = vld [vmem:[#allocation7 + $0x18] sm:$0xf]
        %v2343 = vld [vmem:[#allocation7 + $0x1c] sm:$0xf]
        %v2344 = vld [vmem:[#allocation7 + $0x20] sm:$0xf]
        %v2345 = vld [vmem:[#allocation7 + $0x24] sm:$0xf]
        %v2346 = vld [vmem:[#allocation7 + $0x28] sm:$0xf]
        %v2347 = vld [vmem:[#allocation7 + $0x2c] sm:$0xf]
        %v2348 = vld [vmem:[#allocation7 + $0x30] sm:$0xf]
        %v2349 = vld [vmem:[#allocation7 + $0x34] sm:$0xf]
        %v2350 = vld [vmem:[#allocation7 + $0x38] sm:$0xf]
        %v2351 = vld [vmem:[#allocation7 + $0x3c] sm:$0xf]
        %v2352 = vld [vmem:[#allocation7 + $0x40] sm:$0xf]
        %v2353 = vld [vmem:[#allocation7 + $0x44] sm:$0xf]
        %v2354 = vld [vmem:[#allocation7 + $0x48] sm:$0xf]
        %v2355 = vld [vmem:[#allocation7 + $0x4c] sm:$0xf]
        %v2356 = vld [vmem:[#allocation7 + $0x50] sm:$0xf]
        %v2357 = vld [vmem:[#allocation7 + $0x54] sm:$0xf]
        %v2358 = vld [vmem:[#allocation7 + $0x58] sm:$0xf]
        %v2359 = vld [vmem:[#allocation7 + $0x5c] sm:$0xf]
        %v2360 = vld [vmem:[#allocation7 + $0x60] sm:$0xf]
        %v2361 = vld [vmem:[#allocation7 + $0x64] sm:$0xf]
        %v2362 = vld [vmem:[#allocation7 + $0x68] sm:$0xf]
        %v2363 = vld [vmem:[#allocation7 + $0x6c] sm:$0xf]
        %v2364 = vld [vmem:[#allocation7 + $0x70] sm:$0xf]
        %v2365 = vld [vmem:[#allocation7 + $0x74] sm:$0xf]
        %v2366 = vld [vmem:[#allocation7 + $0x78] sm:$0xf]
        %v2367 = vld [vmem:[#allocation7 + $0x7c] sm:$0xf]
        %v2369 = vlaneseq
        %v2370 = vshrl.u32 %v2369, 7
        %v2371 = vsub.s32 0, %v2370
        %v2372 = vrot.slane %v366, %v2371
        %v2406 = vunpack.c.l.b16 %v2336
        %v2407 = vunpack.c.l.b16 %v2337
        %v2408 = vunpack.c.l.b16 %v2338
        %v2409 = vunpack.c.l.b16 %v2339
        %v2410 = vunpack.c.l.b16 %v2340
        %v2411 = vunpack.c.l.b16 %v2341
        %v2412 = vunpack.c.l.b16 %v2342
        %v2413 = vunpack.c.l.b16 %v2343
        %v2414 = vunpack.c.l.b16 %v2344
        %v2415 = vunpack.c.l.b16 %v2345
        %v2416 = vunpack.c.l.b16 %v2346
        %v2417 = vunpack.c.l.b16 %v2347
        %v2418 = vunpack.c.l.b16 %v2348
        %v2419 = vunpack.c.l.b16 %v2349
        %v2420 = vunpack.c.l.b16 %v2350
        %v2421 = vunpack.c.l.b16 %v2351
        %v2422 = vunpack.c.l.b16 %v2352
        %v2423 = vunpack.c.l.b16 %v2353
        %v2424 = vunpack.c.l.b16 %v2354
        %v2425 = vunpack.c.l.b16 %v2355
        %v2426 = vunpack.c.l.b16 %v2356
        %v2427 = vunpack.c.l.b16 %v2357
        %v2428 = vunpack.c.l.b16 %v2358
        %v2429 = vunpack.c.l.b16 %v2359
        %v2430 = vunpack.c.l.b16 %v2360
        %v2431 = vunpack.c.l.b16 %v2361
        %v2432 = vunpack.c.l.b16 %v2362
        %v2433 = vunpack.c.l.b16 %v2363
        %v2434 = vunpack.c.l.b16 %v2364
        %v2435 = vunpack.c.l.b16 %v2365
        %v2436 = vunpack.c.l.b16 %v2366
        %v2437 = vunpack.c.l.b16 %v2367
        %v2438 = vpack.c.b16 %v2407, %v2406
        %v2439 = vpack.c.b16 %v2409, %v2408
        %v2440 = vpack.c.b16 %v2411, %v2410
        %v2441 = vpack.c.b16 %v2413, %v2412
        %v2442 = vpack.c.b16 %v2415, %v2414
        %v2443 = vpack.c.b16 %v2417, %v2416
        %v2444 = vpack.c.b16 %v2419, %v2418
        %v2445 = vpack.c.b16 %v2421, %v2420
        %v2446 = vpack.c.b16 %v2423, %v2422
        %v2447 = vpack.c.b16 %v2425, %v2424
        %v2448 = vpack.c.b16 %v2427, %v2426
        %v2449 = vpack.c.b16 %v2429, %v2428
        %v2450 = vpack.c.b16 %v2431, %v2430
        %v2451 = vpack.c.b16 %v2433, %v2432
        %v2452 = vpack.c.b16 %v2435, %v2434
        %v2453 = vpack.c.b16 %v2437, %v2436
        %2470 = vmatprep.subr.bf16.mxu0 0
        %2471 = vmatpush1.bf16.msra.mxu0 %v2438
        %2472 = vmatprep.subr.bf16.mxu0 0
        %2473 = vmatpush1.bf16.msra.mxu0 %v2439
        %2474 = vmatprep.subr.bf16.mxu0 0
        %2475 = vmatpush1.bf16.msra.mxu0 %v2440
        %2476 = vmatprep.subr.bf16.mxu0 0
        %2477 = vmatpush1.bf16.msra.mxu0 %v2441
        %2478 = vmatprep.subr.bf16.mxu0 0
        %2479 = vmatpush1.bf16.msra.mxu0 %v2442
        %2480 = vmatprep.subr.bf16.mxu0 0
        %2481 = vmatpush1.bf16.msra.mxu0 %v2443
        %2482 = vmatprep.subr.bf16.mxu0 0
        %2483 = vmatpush1.bf16.msra.mxu0 %v2444
        %2484 = vmatprep.subr.bf16.mxu0 0
        %2485 = vmatpush1.bf16.msra.mxu0 %v2445
        %2486 = vmatprep.subr.bf16.mxu0 0
        %2487 = vmatpush1.bf16.msra.mxu0 %v2446
        %2488 = vmatprep.subr.bf16.mxu0 0
        %2489 = vmatpush1.bf16.msra.mxu0 %v2447
        %2490 = vmatprep.subr.bf16.mxu0 0
        %2491 = vmatpush1.bf16.msra.mxu0 %v2448
        %2492 = vmatprep.subr.bf16.mxu0 0
        %2493 = vmatpush1.bf16.msra.mxu0 %v2449
        %2494 = vmatprep.subr.bf16.mxu0 0
        %2495 = vmatpush1.bf16.msra.mxu0 %v2450
        %2496 = vmatprep.subr.bf16.mxu0 0
        %2497 = vmatpush1.bf16.msra.mxu0 %v2451
        %2498 = vmatprep.subr.bf16.mxu0 0
        %2499 = vmatpush1.bf16.msra.mxu0 %v2452
        %2500 = vmatprep.subr.bf16.mxu0 0
        %2501 = vmatpush1.bf16.msra.mxu0 %v2453
        %2502 = vmatprep.mubr.bf16.mxu0 %v2305
        %2503 = vmatmul.mubr.bf16.gmra.mrb[0].mxu0 %v2304
        %v2504 = vpop.f32.mrb[0].mxu0
        %v2505 = vadd.f32 %v2372, %v2504
        %v2506 = vpop.f32.mrb[0].mxu0
        %v2507 = vpop.f32.mrb[0].mxu0
        %v2508 = vadd.f32 %v2372, %v2507
        %v2509 = vpop.f32.mrb[0].mxu0
        %2510 = vmatprep.mubr.bf16.mxu0 %v2307
        %2511 = vmatmul.mubr.bf16.gmra.mrb[0].mxu0 %v2306
        %v2512 = vpop.f32.mrb[0].mxu0
        %v2513 = vadd.f32 %v2372, %v2512
        %v2514 = vpop.f32.mrb[0].mxu0
        %v2515 = vpop.f32.mrb[0].mxu0
        %v2516 = vadd.f32 %v2372, %v2515
        %v2517 = vpop.f32.mrb[0].mxu0
        %2518 = vmatprep.mubr.bf16.mxu0 %v2309
        %2519 = vmatmul.mubr.bf16.gmra.mrb[0].mxu0 %v2308
        %v2520 = vpop.f32.mrb[0].mxu0
        %v2521 = vadd.f32 %v2372, %v2520
        %v2522 = vpop.f32.mrb[0].mxu0
        %v2523 = vpop.f32.mrb[0].mxu0
        %v2524 = vadd.f32 %v2372, %v2523
        %v2525 = vpop.f32.mrb[0].mxu0
        %2526 = vmatprep.mubr.bf16.mxu0 %v2311
        %2527 = vmatmul.mubr.bf16.gmra.mrb[0].mxu0 %v2310
        %v2528 = vpop.f32.mrb[0].mxu0
        %v2529 = vadd.f32 %v2372, %v2528
        %v2530 = vpop.f32.mrb[0].mxu0
        %v2531 = vpop.f32.mrb[0].mxu0
        %v2532 = vadd.f32 %v2372, %v2531
        %v2533 = vpop.f32.mrb[0].mxu0
        %2534 = vmatprep.mubr.bf16.mxu0 %v2313
        %2535 = vmatmul.mubr.bf16.gmra.mrb[0].mxu0 %v2312
        %v2536 = vpop.f32.mrb[0].mxu0
        %v2537 = vadd.f32 %v2372, %v2536
        %v2538 = vpop.f32.mrb[0].mxu0
        %v2539 = vpop.f32.mrb[0].mxu0
        %v2540 = vadd.f32 %v2372, %v2539
        %v2541 = vpop.f32.mrb[0].mxu0
        %2542 = vmatprep.mubr.bf16.mxu0 %v2315
        %2543 = vmatmul.mubr.bf16.gmra.mrb[0].mxu0 %v2314
        %v2544 = vpop.f32.mrb[0].mxu0
        %v2545 = vadd.f32 %v2372, %v2544
        %v2546 = vpop.f32.mrb[0].mxu0
        %v2547 = vpop.f32.mrb[0].mxu0
        %v2548 = vadd.f32 %v2372, %v2547
        %v2549 = vpop.f32.mrb[0].mxu0
        %2550 = vmatprep.mubr.bf16.mxu0 %v2317
        %2551 = vmatmul.mubr.bf16.gmra.mrb[0].mxu0 %v2316
        %v2552 = vpop.f32.mrb[0].mxu0
        %v2553 = vadd.f32 %v2372, %v2552
        %v2554 = vpop.f32.mrb[0].mxu0
        %v2555 = vpop.f32.mrb[0].mxu0
        %v2556 = vadd.f32 %v2372, %v2555
        %v2557 = vpop.f32.mrb[0].mxu0
        %2558 = vmatprep.mubr.bf16.mxu0 %v2319
        %2559 = vmatmul.mubr.bf16.gmra.mrb[0].mxu0 %v2318
        %v2560 = vpop.f32.mrb[0].mxu0
        %v2561 = vadd.f32 %v2372, %v2560
        %v2562 = vpop.f32.mrb[0].mxu0
        %v2563 = vpop.f32.mrb[0].mxu0
        %v2564 = vadd.f32 %v2372, %v2563
        %v2565 = vpop.f32.mrb[0].mxu0
        %2566 = vmatprep.mubr.bf16.mxu0 %v2321
        %2567 = vmatmul.mubr.bf16.gmra.mrb[0].mxu0 %v2320
        %v2568 = vpop.f32.mrb[0].mxu0
        %v2569 = vadd.f32 %v2372, %v2568
        %v2570 = vpop.f32.mrb[0].mxu0
        %v2571 = vpop.f32.mrb[0].mxu0
        %v2572 = vadd.f32 %v2372, %v2571
        %v2573 = vpop.f32.mrb[0].mxu0
        %2574 = vmatprep.mubr.bf16.mxu0 %v2323
        %2575 = vmatmul.mubr.bf16.gmra.mrb[0].mxu0 %v2322
        %v2576 = vpop.f32.mrb[0].mxu0
        %v2577 = vadd.f32 %v2372, %v2576
        %v2578 = vpop.f32.mrb[0].mxu0
        %v2579 = vpop.f32.mrb[0].mxu0
        %v2580 = vadd.f32 %v2372, %v2579
        %v2581 = vpop.f32.mrb[0].mxu0
        %2582 = vmatprep.mubr.bf16.mxu0 %v2325
        %2583 = vmatmul.mubr.bf16.gmra.mrb[0].mxu0 %v2324
        %v2584 = vpop.f32.mrb[0].mxu0
        %v2585 = vadd.f32 %v2372, %v2584
        %v2586 = vpop.f32.mrb[0].mxu0
        %v2587 = vpop.f32.mrb[0].mxu0
        %v2588 = vadd.f32 %v2372, %v2587
        %v2589 = vpop.f32.mrb[0].mxu0
        %2590 = vmatprep.mubr.bf16.mxu0 %v2327
        %2591 = vmatmul.mubr.bf16.gmra.mrb[0].mxu0 %v2326
        %v2592 = vpop.f32.mrb[0].mxu0
        %v2593 = vadd.f32 %v2372, %v2592
        %v2594 = vpop.f32.mrb[0].mxu0
        %v2595 = vpop.f32.mrb[0].mxu0
        %v2596 = vadd.f32 %v2372, %v2595
        %v2597 = vpop.f32.mrb[0].mxu0
        %2598 = vmatprep.mubr.bf16.mxu0 %v2329
        %2599 = vmatmul.mubr.bf16.gmra.mrb[0].mxu0 %v2328
        %v2600 = vpop.f32.mrb[0].mxu0
        %v2601 = vadd.f32 %v2372, %v2600
        %v2602 = vpop.f32.mrb[0].mxu0
        %v2603 = vpop.f32.mrb[0].mxu0
        %v2604 = vadd.f32 %v2372, %v2603
        %v2605 = vpop.f32.mrb[0].mxu0
        %2606 = vmatprep.mubr.bf16.mxu0 %v2331
        %2607 = vmatmul.mubr.bf16.gmra.mrb[0].mxu0 %v2330
        %v2608 = vpop.f32.mrb[0].mxu0
        %v2609 = vadd.f32 %v2372, %v2608
        %v2610 = vpop.f32.mrb[0].mxu0
        %v2611 = vpop.f32.mrb[0].mxu0
        %v2612 = vadd.f32 %v2372, %v2611
        %v2613 = vpop.f32.mrb[0].mxu0
        %2614 = vmatprep.mubr.bf16.mxu0 %v2333
        %2615 = vmatmul.mubr.bf16.gmra.mrb[0].mxu0 %v2332
        %v2616 = vpop.f32.mrb[0].mxu0
        %v2617 = vadd.f32 %v2372, %v2616
        %v2618 = vpop.f32.mrb[0].mxu0
        %v2619 = vpop.f32.mrb[0].mxu0
        %v2620 = vadd.f32 %v2372, %v2619
        %v2621 = vpop.f32.mrb[0].mxu0
        %2622 = vmatprep.mubr.bf16.mxu0 %v2335
        %2623 = vmatmul.mubr.bf16.gmra.mrb[0].mxu0 %v2334
        %v2624 = vpop.f32.mrb[0].mxu0
        %v2625 = vadd.f32 %v2372, %v2624
        %v2626 = vpop.f32.mrb[0].mxu0
        %v2627 = vpop.f32.mrb[0].mxu0
        %v2628 = vadd.f32 %v2372, %v2627
        %v2629 = vpop.f32.mrb[0].mxu0
        %2630 = vdwg.mxu0
        %v2631 = vmax.f32 %v2505, 0.0
        %v2632 = vmax.f32 %v2508, 0.0
        %v2633 = vmax.f32 %v2513, 0.0
        %v2634 = vmax.f32 %v2516, 0.0
        %v2635 = vmax.f32 %v2521, 0.0
        %v2636 = vmax.f32 %v2524, 0.0
        %v2637 = vmax.f32 %v2529, 0.0
        %v2638 = vmax.f32 %v2532, 0.0
        %v2639 = vmax.f32 %v2537, 0.0
        %v2640 = vmax.f32 %v2540, 0.0
        %v2641 = vmax.f32 %v2545, 0.0
        %v2642 = vmax.f32 %v2548, 0.0
        %v2643 = vmax.f32 %v2553, 0.0
        %v2644 = vmax.f32 %v2556, 0.0
        %v2645 = vmax.f32 %v2561, 0.0
        %v2646 = vmax.f32 %v2564, 0.0
        %v2647 = vmax.f32 %v2569, 0.0
        %v2648 = vmax.f32 %v2572, 0.0
        %v2649 = vmax.f32 %v2577, 0.0
        %v2650 = vmax.f32 %v2580, 0.0
        %v2651 = vmax.f32 %v2585, 0.0
        %v2652 = vmax.f32 %v2588, 0.0
        %v2653 = vmax.f32 %v2593, 0.0
        %v2654 = vmax.f32 %v2596, 0.0
        %v2655 = vmax.f32 %v2601, 0.0
        %v2656 = vmax.f32 %v2604, 0.0
        %v2657 = vmax.f32 %v2609, 0.0
        %v2658 = vmax.f32 %v2612, 0.0
        %v2659 = vmax.f32 %v2617, 0.0
        %v2660 = vmax.f32 %v2620, 0.0
        %v2661 = vmax.f32 %v2625, 0.0
        %v2662 = vmax.f32 %v2628, 0.0
        %v2663 = vpack.c.bf16 %v2632, %v2631
        %v2664 = vpack.c.bf16 %v2634, %v2633
        %v2665 = vpack.c.bf16 %v2636, %v2635
        %v2666 = vpack.c.bf16 %v2638, %v2637
        %v2667 = vpack.c.bf16 %v2640, %v2639
        %v2668 = vpack.c.bf16 %v2642, %v2641
        %v2669 = vpack.c.bf16 %v2644, %v2643
        %v2670 = vpack.c.bf16 %v2646, %v2645
        %v2671 = vpack.c.bf16 %v2648, %v2647
        %v2672 = vpack.c.bf16 %v2650, %v2649
        %v2673 = vpack.c.bf16 %v2652, %v2651
        %v2674 = vpack.c.bf16 %v2654, %v2653
        %v2675 = vpack.c.bf16 %v2656, %v2655
        %v2676 = vpack.c.bf16 %v2658, %v2657
        %v2677 = vpack.c.bf16 %v2660, %v2659
        %v2678 = vpack.c.bf16 %v2662, %v2661
        %v2679 = vmax.f32 %v1141, 0.0
        %v2680 = vmax.f32 %v1144, 0.0
        %v2681 = vmax.f32 %v1149, 0.0
        %v2682 = vmax.f32 %v1152, 0.0
        %v2683 = vmax.f32 %v1157, 0.0
        %v2684 = vmax.f32 %v1160, 0.0
        %v2685 = vmax.f32 %v1165, 0.0
        %v2686 = vmax.f32 %v1168, 0.0
        %v2687 = vmax.f32 %v1173, 0.0
        %v2688 = vmax.f32 %v1176, 0.0
        %v2689 = vmax.f32 %v1181, 0.0
        %v2690 = vmax.f32 %v1184, 0.0
        %v2691 = vmax.f32 %v1189, 0.0
        %v2692 = vmax.f32 %v1192, 0.0
        %v2693 = vmax.f32 %v1197, 0.0
        %v2694 = vmax.f32 %v1200, 0.0
        %v2695 = vmax.f32 %v1205, 0.0
        %v2696 = vmax.f32 %v1208, 0.0
        %v2697 = vmax.f32 %v1213, 0.0
        %v2698 = vmax.f32 %v1216, 0.0
        %v2699 = vmax.f32 %v1221, 0.0
        %v2700 = vmax.f32 %v1224, 0.0
        %v2701 = vmax.f32 %v1229, 0.0
        %v2702 = vmax.f32 %v1232, 0.0
        %v2703 = vmax.f32 %v1237, 0.0
        %v2704 = vmax.f32 %v1240, 0.0
        %v2705 = vmax.f32 %v1245, 0.0
        %v2706 = vmax.f32 %v1248, 0.0
        %v2707 = vmax.f32 %v1253, 0.0
        %v2708 = vmax.f32 %v1256, 0.0
        %v2709 = vmax.f32 %v1261, 0.0
        %v2710 = vmax.f32 %v1264, 0.0
        %v2711 = vpack.c.bf16 %v2680, %v2679
        %v2712 = vpack.c.bf16 %v2682, %v2681
        %v2713 = vpack.c.bf16 %v2684, %v2683
        %v2714 = vpack.c.bf16 %v2686, %v2685
        %v2715 = vpack.c.bf16 %v2688, %v2687
        %v2716 = vpack.c.bf16 %v2690, %v2689
        %v2717 = vpack.c.bf16 %v2692, %v2691
        %v2718 = vpack.c.bf16 %v2694, %v2693
        %v2719 = vpack.c.bf16 %v2696, %v2695
        %v2720 = vpack.c.bf16 %v2698, %v2697
        %v2721 = vpack.c.bf16 %v2700, %v2699
        %v2722 = vpack.c.bf16 %v2702, %v2701
        %v2723 = vpack.c.bf16 %v2704, %v2703
        %v2724 = vpack.c.bf16 %v2706, %v2705
        %v2725 = vpack.c.bf16 %v2708, %v2707
        %v2726 = vpack.c.bf16 %v2710, %v2709
        %v2727 = vld [vmem:[#allocation9] sm:$0xf]
        %v2728 = vld [vmem:[#allocation9 + $0x4] sm:$0xf]
        %v2729 = vld [vmem:[#allocation9 + $0x8] sm:$0xf]
        %v2730 = vld [vmem:[#allocation9 + $0xc] sm:$0xf]
        %v2731 = vld [vmem:[#allocation9 + $0x10] sm:$0xf]
        %v2732 = vld [vmem:[#allocation9 + $0x14] sm:$0xf]
        %v2733 = vld [vmem:[#allocation9 + $0x18] sm:$0xf]
        %v2734 = vld [vmem:[#allocation9 + $0x1c] sm:$0xf]
        %v2735 = vld [vmem:[#allocation9 + $0x20] sm:$0xf]
        %v2736 = vld [vmem:[#allocation9 + $0x24] sm:$0xf]
        %v2737 = vld [vmem:[#allocation9 + $0x28] sm:$0xf]
        %v2738 = vld [vmem:[#allocation9 + $0x2c] sm:$0xf]
        %v2739 = vld [vmem:[#allocation9 + $0x30] sm:$0xf]
        %v2740 = vld [vmem:[#allocation9 + $0x34] sm:$0xf]
        %v2741 = vld [vmem:[#allocation9 + $0x38] sm:$0xf]
        %v2742 = vld [vmem:[#allocation9 + $0x3c] sm:$0xf]
        %v2743 = vld [vmem:[#allocation9 + $0x40] sm:$0xf]
        %v2744 = vld [vmem:[#allocation9 + $0x44] sm:$0xf]
        %v2745 = vld [vmem:[#allocation9 + $0x48] sm:$0xf]
        %v2746 = vld [vmem:[#allocation9 + $0x4c] sm:$0xf]
        %v2747 = vld [vmem:[#allocation9 + $0x50] sm:$0xf]
        %v2748 = vld [vmem:[#allocation9 + $0x54] sm:$0xf]
        %v2749 = vld [vmem:[#allocation9 + $0x58] sm:$0xf]
        %v2750 = vld [vmem:[#allocation9 + $0x5c] sm:$0xf]
        %v2751 = vld [vmem:[#allocation9 + $0x60] sm:$0xf]
        %v2752 = vld [vmem:[#allocation9 + $0x64] sm:$0xf]
        %v2753 = vld [vmem:[#allocation9 + $0x68] sm:$0xf]
        %v2754 = vld [vmem:[#allocation9 + $0x6c] sm:$0xf]
        %v2755 = vld [vmem:[#allocation9 + $0x70] sm:$0xf]
        %v2756 = vld [vmem:[#allocation9 + $0x74] sm:$0xf]
        %v2757 = vld [vmem:[#allocation9 + $0x78] sm:$0xf]
        %v2758 = vld [vmem:[#allocation9 + $0x7c] sm:$0xf]
        %v2760 = vlaneseq
        %v2761 = vshrl.u32 %v2760, 7
        %v2762 = vsub.s32 0, %v2761
        %v2763 = vrot.slane %v367, %v2762
        %v2797 = vunpack.c.l.b16 %v2727
        %v2798 = vunpack.c.l.b16 %v2728
        %v2799 = vunpack.c.l.b16 %v2729
        %v2800 = vunpack.c.l.b16 %v2730
        %v2801 = vunpack.c.l.b16 %v2731
        %v2802 = vunpack.c.l.b16 %v2732
        %v2803 = vunpack.c.l.b16 %v2733
        %v2804 = vunpack.c.l.b16 %v2734
        %v2805 = vunpack.c.l.b16 %v2735
        %v2806 = vunpack.c.l.b16 %v2736
        %v2807 = vunpack.c.l.b16 %v2737
        %v2808 = vunpack.c.l.b16 %v2738
        %v2809 = vunpack.c.l.b16 %v2739
        %v2810 = vunpack.c.l.b16 %v2740
        %v2811 = vunpack.c.l.b16 %v2741
        %v2812 = vunpack.c.l.b16 %v2742
        %v2813 = vunpack.c.l.b16 %v2743
        %v2814 = vunpack.c.l.b16 %v2744
        %v2815 = vunpack.c.l.b16 %v2745
        %v2816 = vunpack.c.l.b16 %v2746
        %v2817 = vunpack.c.l.b16 %v2747
        %v2818 = vunpack.c.l.b16 %v2748
        %v2819 = vunpack.c.l.b16 %v2749
        %v2820 = vunpack.c.l.b16 %v2750
        %v2821 = vunpack.c.l.b16 %v2751
        %v2822 = vunpack.c.l.b16 %v2752
        %v2823 = vunpack.c.l.b16 %v2753
        %v2824 = vunpack.c.l.b16 %v2754
        %v2825 = vunpack.c.l.b16 %v2755
        %v2826 = vunpack.c.l.b16 %v2756
        %v2827 = vunpack.c.l.b16 %v2757
        %v2828 = vunpack.c.l.b16 %v2758
        %v2829 = vpack.c.b16 %v2798, %v2797
        %v2830 = vpack.c.b16 %v2800, %v2799
        %v2831 = vpack.c.b16 %v2802, %v2801
        %v2832 = vpack.c.b16 %v2804, %v2803
        %v2833 = vpack.c.b16 %v2806, %v2805
        %v2834 = vpack.c.b16 %v2808, %v2807
        %v2835 = vpack.c.b16 %v2810, %v2809
        %v2836 = vpack.c.b16 %v2812, %v2811
        %v2837 = vpack.c.b16 %v2814, %v2813
        %v2838 = vpack.c.b16 %v2816, %v2815
        %v2839 = vpack.c.b16 %v2818, %v2817
        %v2840 = vpack.c.b16 %v2820, %v2819
        %v2841 = vpack.c.b16 %v2822, %v2821
        %v2842 = vpack.c.b16 %v2824, %v2823
        %v2843 = vpack.c.b16 %v2826, %v2825
        %v2844 = vpack.c.b16 %v2828, %v2827
        %2861 = vmatprep.subr.bf16.mxu0 0
        %2862 = vmatpush1.bf16.msra.mxu0 %v2829
        %2863 = vmatprep.subr.bf16.mxu0 0
        %2864 = vmatpush1.bf16.msra.mxu0 %v2830
        %2865 = vmatprep.subr.bf16.mxu0 0
        %2866 = vmatpush1.bf16.msra.mxu0 %v2831
        %2867 = vmatprep.subr.bf16.mxu0 0
        %2868 = vmatpush1.bf16.msra.mxu0 %v2832
        %2869 = vmatprep.subr.bf16.mxu0 0
        %2870 = vmatpush1.bf16.msra.mxu0 %v2833
        %2871 = vmatprep.subr.bf16.mxu0 0
        %2872 = vmatpush1.bf16.msra.mxu0 %v2834
        %2873 = vmatprep.subr.bf16.mxu0 0
        %2874 = vmatpush1.bf16.msra.mxu0 %v2835
        %2875 = vmatprep.subr.bf16.mxu0 0
        %2876 = vmatpush1.bf16.msra.mxu0 %v2836
        %2877 = vmatprep.subr.bf16.mxu0 0
        %2878 = vmatpush1.bf16.msra.mxu0 %v2837
        %2879 = vmatprep.subr.bf16.mxu0 0
        %2880 = vmatpush1.bf16.msra.mxu0 %v2838
        %2881 = vmatprep.subr.bf16.mxu0 0
        %2882 = vmatpush1.bf16.msra.mxu0 %v2839
        %2883 = vmatprep.subr.bf16.mxu0 0
        %2884 = vmatpush1.bf16.msra.mxu0 %v2840
        %2885 = vmatprep.subr.bf16.mxu0 0
        %2886 = vmatpush1.bf16.msra.mxu0 %v2841
        %2887 = vmatprep.subr.bf16.mxu0 0
        %2888 = vmatpush1.bf16.msra.mxu0 %v2842
        %2889 = vmatprep.subr.bf16.mxu0 0
        %2890 = vmatpush1.bf16.msra.mxu0 %v2843
        %2891 = vmatprep.subr.bf16.mxu0 0
        %2892 = vmatpush1.bf16.msra.mxu0 %v2844
        %2893 = vmatprep.mubr.bf16.mxu0 %v2711
        %2894 = vmatmul.mubr.bf16.gmra.mrb[0].mxu0 %v2663
        %v2895 = vpop.f32.mrb[0].mxu0
        %v2896 = vadd.f32 %v2763, %v2895
        %v2897 = vpop.f32.mrb[0].mxu0
        %v2898 = vpop.f32.mrb[0].mxu0
        %v2899 = vadd.f32 %v2763, %v2898
        %v2900 = vpop.f32.mrb[0].mxu0
        %2901 = vmatprep.mubr.bf16.mxu0 %v2712
        %2902 = vmatmul.mubr.bf16.gmra.mrb[0].mxu0 %v2664
        %v2903 = vpop.f32.mrb[0].mxu0
        %v2904 = vadd.f32 %v2763, %v2903
        %v2905 = vpop.f32.mrb[0].mxu0
        %v2906 = vpop.f32.mrb[0].mxu0
        %v2907 = vadd.f32 %v2763, %v2906
        %v2908 = vpop.f32.mrb[0].mxu0
        %2909 = vmatprep.mubr.bf16.mxu0 %v2713
        %2910 = vmatmul.mubr.bf16.gmra.mrb[0].mxu0 %v2665
        %v2911 = vpop.f32.mrb[0].mxu0
        %v2912 = vadd.f32 %v2763, %v2911
        %v2913 = vpop.f32.mrb[0].mxu0
        %v2914 = vpop.f32.mrb[0].mxu0
        %v2915 = vadd.f32 %v2763, %v2914
        %v2916 = vpop.f32.mrb[0].mxu0
        %2917 = vmatprep.mubr.bf16.mxu0 %v2714
        %2918 = vmatmul.mubr.bf16.gmra.mrb[0].mxu0 %v2666
        %v2919 = vpop.f32.mrb[0].mxu0
        %v2920 = vadd.f32 %v2763, %v2919
        %v2921 = vpop.f32.mrb[0].mxu0
        %v2922 = vpop.f32.mrb[0].mxu0
        %v2923 = vadd.f32 %v2763, %v2922
        %v2924 = vpop.f32.mrb[0].mxu0
        %2925 = vmatprep.mubr.bf16.mxu0 %v2715
        %2926 = vmatmul.mubr.bf16.gmra.mrb[0].mxu0 %v2667
        %v2927 = vpop.f32.mrb[0].mxu0
        %v2928 = vadd.f32 %v2763, %v2927
        %v2929 = vpop.f32.mrb[0].mxu0
        %v2930 = vpop.f32.mrb[0].mxu0
        %v2931 = vadd.f32 %v2763, %v2930
        %v2932 = vpop.f32.mrb[0].mxu0
        %2933 = vmatprep.mubr.bf16.mxu0 %v2716
        %2934 = vmatmul.mubr.bf16.gmra.mrb[0].mxu0 %v2668
        %v2935 = vpop.f32.mrb[0].mxu0
        %v2936 = vadd.f32 %v2763, %v2935
        %v2937 = vpop.f32.mrb[0].mxu0
        %v2938 = vpop.f32.mrb[0].mxu0
        %v2939 = vadd.f32 %v2763, %v2938
        %v2940 = vpop.f32.mrb[0].mxu0
        %2941 = vmatprep.mubr.bf16.mxu0 %v2717
        %2942 = vmatmul.mubr.bf16.gmra.mrb[0].mxu0 %v2669
        %v2943 = vpop.f32.mrb[0].mxu0
        %v2944 = vadd.f32 %v2763, %v2943
        %v2945 = vpop.f32.mrb[0].mxu0
        %v2946 = vpop.f32.mrb[0].mxu0
        %v2947 = vadd.f32 %v2763, %v2946
        %v2948 = vpop.f32.mrb[0].mxu0
        %2949 = vmatprep.mubr.bf16.mxu0 %v2718
        %2950 = vmatmul.mubr.bf16.gmra.mrb[0].mxu0 %v2670
        %v2951 = vpop.f32.mrb[0].mxu0
        %v2952 = vadd.f32 %v2763, %v2951
        %v2953 = vpop.f32.mrb[0].mxu0
        %v2954 = vpop.f32.mrb[0].mxu0
        %v2955 = vadd.f32 %v2763, %v2954
        %v2956 = vpop.f32.mrb[0].mxu0
        %2957 = vmatprep.mubr.bf16.mxu0 %v2719
        %2958 = vmatmul.mubr.bf16.gmra.mrb[0].mxu0 %v2671
        %v2959 = vpop.f32.mrb[0].mxu0
        %v2960 = vadd.f32 %v2763, %v2959
        %v2961 = vpop.f32.mrb[0].mxu0
        %v2962 = vpop.f32.mrb[0].mxu0
        %v2963 = vadd.f32 %v2763, %v2962
        %v2964 = vpop.f32.mrb[0].mxu0
        %2965 = vmatprep.mubr.bf16.mxu0 %v2720
        %2966 = vmatmul.mubr.bf16.gmra.mrb[0].mxu0 %v2672
        %v2967 = vpop.f32.mrb[0].mxu0
        %v2968 = vadd.f32 %v2763, %v2967
        %v2969 = vpop.f32.mrb[0].mxu0
        %v2970 = vpop.f32.mrb[0].mxu0
        %v2971 = vadd.f32 %v2763, %v2970
        %v2972 = vpop.f32.mrb[0].mxu0
        %2973 = vmatprep.mubr.bf16.mxu0 %v2721
        %2974 = vmatmul.mubr.bf16.gmra.mrb[0].mxu0 %v2673
        %v2975 = vpop.f32.mrb[0].mxu0
        %v2976 = vadd.f32 %v2763, %v2975
        %v2977 = vpop.f32.mrb[0].mxu0
        %v2978 = vpop.f32.mrb[0].mxu0
        %v2979 = vadd.f32 %v2763, %v2978
        %v2980 = vpop.f32.mrb[0].mxu0
        %2981 = vmatprep.mubr.bf16.mxu0 %v2722
        %2982 = vmatmul.mubr.bf16.gmra.mrb[0].mxu0 %v2674
        %v2983 = vpop.f32.mrb[0].mxu0
        %v2984 = vadd.f32 %v2763, %v2983
        %v2985 = vpop.f32.mrb[0].mxu0
        %v2986 = vpop.f32.mrb[0].mxu0
        %v2987 = vadd.f32 %v2763, %v2986
        %v2988 = vpop.f32.mrb[0].mxu0
        %2989 = vmatprep.mubr.bf16.mxu0 %v2723
        %2990 = vmatmul.mubr.bf16.gmra.mrb[0].mxu0 %v2675
        %v2991 = vpop.f32.mrb[0].mxu0
        %v2992 = vadd.f32 %v2763, %v2991
        %v2993 = vpop.f32.mrb[0].mxu0
        %v2994 = vpop.f32.mrb[0].mxu0
        %v2995 = vadd.f32 %v2763, %v2994
        %v2996 = vpop.f32.mrb[0].mxu0
        %2997 = vmatprep.mubr.bf16.mxu0 %v2724
        %2998 = vmatmul.mubr.bf16.gmra.mrb[0].mxu0 %v2676
        %v2999 = vpop.f32.mrb[0].mxu0
        %v3000 = vadd.f32 %v2763, %v2999
        %v3001 = vpop.f32.mrb[0].mxu0
        %v3002 = vpop.f32.mrb[0].mxu0
        %v3003 = vadd.f32 %v2763, %v3002
        %v3004 = vpop.f32.mrb[0].mxu0
        %3005 = vmatprep.mubr.bf16.mxu0 %v2725
        %3006 = vmatmul.mubr.bf16.gmra.mrb[0].mxu0 %v2677
        %v3007 = vpop.f32.mrb[0].mxu0
        %v3008 = vadd.f32 %v2763, %v3007
        %v3009 = vpop.f32.mrb[0].mxu0
        %v3010 = vpop.f32.mrb[0].mxu0
        %v3011 = vadd.f32 %v2763, %v3010
        %v3012 = vpop.f32.mrb[0].mxu0
        %3013 = vmatprep.mubr.bf16.mxu0 %v2726
        %3014 = vmatmul.mubr.bf16.gmra.mrb[0].mxu0 %v2678
        %v3015 = vpop.f32.mrb[0].mxu0
        %v3016 = vadd.f32 %v2763, %v3015
        %v3017 = vpop.f32.mrb[0].mxu0
        %v3018 = vpop.f32.mrb[0].mxu0
        %v3019 = vadd.f32 %v2763, %v3018
        %v3020 = vpop.f32.mrb[0].mxu0
        %3021 = vdwg.mxu0
        %3022 = vmax.xlane.f32.xlu0 %v2896
        %v3023 = vpop.xlane.xlu0 %3022
        %3024 = vmax.xlane.f32.xlu0 %v2899
        %v3025 = vpop.xlane.xlu0 %3024
        %3026 = vmax.xlane.f32.xlu0 %v2904
        %v3027 = vpop.xlane.xlu0 %3026
        %3028 = vmax.xlane.f32.xlu0 %v2907
        %v3029 = vpop.xlane.xlu0 %3028
        %3030 = vmax.xlane.f32.xlu0 %v2912
        %v3031 = vpop.xlane.xlu0 %3030
        %3032 = vmax.xlane.f32.xlu0 %v2915
        %v3033 = vpop.xlane.xlu0 %3032
        %3034 = vmax.xlane.f32.xlu0 %v2920
        %v3035 = vpop.xlane.xlu0 %3034
        %3036 = vmax.xlane.f32.xlu0 %v2923
        %v3037 = vpop.xlane.xlu0 %3036
        %3038 = vmax.xlane.f32.xlu0 %v2928
        %v3039 = vpop.xlane.xlu0 %3038
        %3040 = vmax.xlane.f32.xlu0 %v2931
        %v3041 = vpop.xlane.xlu0 %3040
        %3042 = vmax.xlane.f32.xlu0 %v2936
        %v3043 = vpop.xlane.xlu0 %3042
        %3044 = vmax.xlane.f32.xlu0 %v2939
        %v3045 = vpop.xlane.xlu0 %3044
        %3046 = vmax.xlane.f32.xlu0 %v2944
        %v3047 = vpop.xlane.xlu0 %3046
        %3048 = vmax.xlane.f32.xlu0 %v2947
        %v3049 = vpop.xlane.xlu0 %3048
        %3050 = vmax.xlane.f32.xlu0 %v2952
        %v3051 = vpop.xlane.xlu0 %3050
        %3052 = vmax.xlane.f32.xlu0 %v2955
        %v3053 = vpop.xlane.xlu0 %3052
        %3054 = vmax.xlane.f32.xlu0 %v2960
        %v3055 = vpop.xlane.xlu0 %3054
        %3056 = vmax.xlane.f32.xlu0 %v2963
        %v3057 = vpop.xlane.xlu0 %3056
        %3058 = vmax.xlane.f32.xlu0 %v2968
        %v3059 = vpop.xlane.xlu0 %3058
        %3060 = vmax.xlane.f32.xlu0 %v2971
        %v3061 = vpop.xlane.xlu0 %3060
        %3062 = vmax.xlane.f32.xlu0 %v2976
        %v3063 = vpop.xlane.xlu0 %3062
        %3064 = vmax.xlane.f32.xlu0 %v2979
        %v3065 = vpop.xlane.xlu0 %3064
        %3066 = vmax.xlane.f32.xlu0 %v2984
        %v3067 = vpop.xlane.xlu0 %3066
        %3068 = vmax.xlane.f32.xlu0 %v2987
        %v3069 = vpop.xlane.xlu0 %3068
        %3070 = vmax.xlane.f32.xlu0 %v2992
        %v3071 = vpop.xlane.xlu0 %3070
        %3072 = vmax.xlane.f32.xlu0 %v2995
        %v3073 = vpop.xlane.xlu0 %3072
        %3074 = vmax.xlane.f32.xlu0 %v3000
        %v3075 = vpop.xlane.xlu0 %3074
        %3076 = vmax.xlane.f32.xlu0 %v3003
        %v3077 = vpop.xlane.xlu0 %3076
        %3078 = vmax.xlane.f32.xlu0 %v3008
        %v3079 = vpop.xlane.xlu0 %3078
        %3080 = vmax.xlane.f32.xlu0 %v3011
        %v3081 = vpop.xlane.xlu0 %3080
        %3082 = vmax.xlane.f32.xlu0 %v3016
        %v3083 = vpop.xlane.xlu0 %3082
        %3084 = vmax.xlane.f32.xlu0 %v3019
        %v3085 = vpop.xlane.xlu0 %3084
        %v3086 = vsub.f32 %v2896, %v3023
        %v3087 = vsub.f32 %v2899, %v3025
        %v3088 = vsub.f32 %v2904, %v3027
        %v3089 = vsub.f32 %v2907, %v3029
        %v3090 = vsub.f32 %v2912, %v3031
        %v3091 = vsub.f32 %v2915, %v3033
        %v3092 = vsub.f32 %v2920, %v3035
        %v3093 = vsub.f32 %v2923, %v3037
        %v3094 = vsub.f32 %v2928, %v3039
        %v3095 = vsub.f32 %v2931, %v3041
        %v3096 = vsub.f32 %v2936, %v3043
        %v3097 = vsub.f32 %v2939, %v3045
        %v3098 = vsub.f32 %v2944, %v3047
        %v3099 = vsub.f32 %v2947, %v3049
        %v3100 = vsub.f32 %v2952, %v3051
        %v3101 = vsub.f32 %v2955, %v3053
        %v3102 = vsub.f32 %v2960, %v3055
        %v3103 = vsub.f32 %v2963, %v3057
        %v3104 = vsub.f32 %v2968, %v3059
        %v3105 = vsub.f32 %v2971, %v3061
        %v3106 = vsub.f32 %v2976, %v3063
        %v3107 = vsub.f32 %v2979, %v3065
        %v3108 = vsub.f32 %v2984, %v3067
        %v3109 = vsub.f32 %v2987, %v3069
        %v3110 = vsub.f32 %v2992, %v3071
        %v3111 = vsub.f32 %v2995, %v3073
        %v3112 = vsub.f32 %v3000, %v3075
        %v3113 = vsub.f32 %v3003, %v3077
        %v3114 = vsub.f32 %v3008, %v3079
        %v3115 = vsub.f32 %v3011, %v3081
        %v3116 = vsub.f32 %v3016, %v3083
        %v3117 = vsub.f32 %v3019, %v3085
        %v3118 = vmul.f32 %v3086, 1.442695
        %v3119 = vpow.pop %v3118
        %v3120 = vmul.f32 %v3087, 1.442695
        %v3121 = vpow.pop %v3120
        %v3122 = vmul.f32 %v3088, 1.442695
        %v3123 = vpow.pop %v3122
        %v3124 = vmul.f32 %v3089, 1.442695
        %v3125 = vpow.pop %v3124
        %v3126 = vmul.f32 %v3090, 1.442695
        %v3127 = vpow.pop %v3126
        %v3128 = vmul.f32 %v3091, 1.442695
        %v3129 = vpow.pop %v3128
        %v3130 = vmul.f32 %v3092, 1.442695
        %v3131 = vpow.pop %v3130
        %v3132 = vmul.f32 %v3093, 1.442695
        %v3133 = vpow.pop %v3132
        %v3134 = vmul.f32 %v3094, 1.442695
        %v3135 = vpow.pop %v3134
        %v3136 = vmul.f32 %v3095, 1.442695
        %v3137 = vpow.pop %v3136
        %v3138 = vmul.f32 %v3096, 1.442695
        %v3139 = vpow.pop %v3138
        %v3140 = vmul.f32 %v3097, 1.442695
        %v3141 = vpow.pop %v3140
        %v3142 = vmul.f32 %v3098, 1.442695
        %v3143 = vpow.pop %v3142
        %v3144 = vmul.f32 %v3099, 1.442695
        %v3145 = vpow.pop %v3144
        %v3146 = vmul.f32 %v3100, 1.442695
        %v3147 = vpow.pop %v3146
        %v3148 = vmul.f32 %v3101, 1.442695
        %v3149 = vpow.pop %v3148
        %v3150 = vmul.f32 %v3102, 1.442695
        %v3151 = vpow.pop %v3150
        %v3152 = vmul.f32 %v3103, 1.442695
        %v3153 = vpow.pop %v3152
        %v3154 = vmul.f32 %v3104, 1.442695
        %v3155 = vpow.pop %v3154
        %v3156 = vmul.f32 %v3105, 1.442695
        %v3157 = vpow.pop %v3156
        %v3158 = vmul.f32 %v3106, 1.442695
        %v3159 = vpow.pop %v3158
        %v3160 = vmul.f32 %v3107, 1.442695
        %v3161 = vpow.pop %v3160
        %v3162 = vmul.f32 %v3108, 1.442695
        %v3163 = vpow.pop %v3162
        %v3164 = vmul.f32 %v3109, 1.442695
        %v3165 = vpow.pop %v3164
        %v3166 = vmul.f32 %v3110, 1.442695
        %v3167 = vpow.pop %v3166
        %v3168 = vmul.f32 %v3111, 1.442695
        %v3169 = vpow.pop %v3168
        %v3170 = vmul.f32 %v3112, 1.442695
        %v3171 = vpow.pop %v3170
        %v3172 = vmul.f32 %v3113, 1.442695
        %v3173 = vpow.pop %v3172
        %v3174 = vmul.f32 %v3114, 1.442695
        %v3175 = vpow.pop %v3174
        %v3176 = vmul.f32 %v3115, 1.442695
        %v3177 = vpow.pop %v3176
        %v3178 = vmul.f32 %v3116, 1.442695
        %v3179 = vpow.pop %v3178
        %v3180 = vmul.f32 %v3117, 1.442695
        %v3181 = vpow.pop %v3180
        %3182 = vadd.xlane.f32.xlu0 %v3119
        %v3183 = vpop.xlane.xlu0 %3182
        %3184 = vadd.xlane.f32.xlu0 %v3121
        %v3185 = vpop.xlane.xlu0 %3184
        %3186 = vadd.xlane.f32.xlu0 %v3123
        %v3187 = vpop.xlane.xlu0 %3186
        %3188 = vadd.xlane.f32.xlu0 %v3125
        %v3189 = vpop.xlane.xlu0 %3188
        %3190 = vadd.xlane.f32.xlu0 %v3127
        %v3191 = vpop.xlane.xlu0 %3190
        %3192 = vadd.xlane.f32.xlu0 %v3129
        %v3193 = vpop.xlane.xlu0 %3192
        %3194 = vadd.xlane.f32.xlu0 %v3131
        %v3195 = vpop.xlane.xlu0 %3194
        %3196 = vadd.xlane.f32.xlu0 %v3133
        %v3197 = vpop.xlane.xlu0 %3196
        %3198 = vadd.xlane.f32.xlu0 %v3135
        %v3199 = vpop.xlane.xlu0 %3198
        %3200 = vadd.xlane.f32.xlu0 %v3137
        %v3201 = vpop.xlane.xlu0 %3200
        %3202 = vadd.xlane.f32.xlu0 %v3139
        %v3203 = vpop.xlane.xlu0 %3202
        %3204 = vadd.xlane.f32.xlu0 %v3141
        %v3205 = vpop.xlane.xlu0 %3204
        %3206 = vadd.xlane.f32.xlu0 %v3143
        %v3207 = vpop.xlane.xlu0 %3206
        %3208 = vadd.xlane.f32.xlu0 %v3145
        %v3209 = vpop.xlane.xlu0 %3208
        %3210 = vadd.xlane.f32.xlu0 %v3147
        %v3211 = vpop.xlane.xlu0 %3210
        %3212 = vadd.xlane.f32.xlu0 %v3149
        %v3213 = vpop.xlane.xlu0 %3212
        %3214 = vadd.xlane.f32.xlu0 %v3151
        %v3215 = vpop.xlane.xlu0 %3214
        %3216 = vadd.xlane.f32.xlu0 %v3153
        %v3217 = vpop.xlane.xlu0 %3216
        %3218 = vadd.xlane.f32.xlu0 %v3155
        %v3219 = vpop.xlane.xlu0 %3218
        %3220 = vadd.xlane.f32.xlu0 %v3157
        %v3221 = vpop.xlane.xlu0 %3220
        %3222 = vadd.xlane.f32.xlu0 %v3159
        %v3223 = vpop.xlane.xlu0 %3222
        %3224 = vadd.xlane.f32.xlu0 %v3161
        %v3225 = vpop.xlane.xlu0 %3224
        %3226 = vadd.xlane.f32.xlu0 %v3163
        %v3227 = vpop.xlane.xlu0 %3226
        %3228 = vadd.xlane.f32.xlu0 %v3165
        %v3229 = vpop.xlane.xlu0 %3228
        %3230 = vadd.xlane.f32.xlu0 %v3167
        %v3231 = vpop.xlane.xlu0 %3230
        %3232 = vadd.xlane.f32.xlu0 %v3169
        %v3233 = vpop.xlane.xlu0 %3232
        %3234 = vadd.xlane.f32.xlu0 %v3171
        %v3235 = vpop.xlane.xlu0 %3234
        %3236 = vadd.xlane.f32.xlu0 %v3173
        %v3237 = vpop.xlane.xlu0 %3236
        %3238 = vadd.xlane.f32.xlu0 %v3175
        %v3239 = vpop.xlane.xlu0 %3238
        %3240 = vadd.xlane.f32.xlu0 %v3177
        %v3241 = vpop.xlane.xlu0 %3240
        %3242 = vadd.xlane.f32.xlu0 %v3179
        %v3243 = vpop.xlane.xlu0 %3242
        %3244 = vadd.xlane.f32.xlu0 %v3181
        %v3245 = vpop.xlane.xlu0 %3244
        %v3246 = vrcp.pop %v3183
        %v3247 = vrcp.pop %v3185
        %v3248 = vrcp.pop %v3187
        %v3249 = vrcp.pop %v3189
        %v3250 = vrcp.pop %v3191
        %v3251 = vrcp.pop %v3193
        %v3252 = vrcp.pop %v3195
        %v3253 = vrcp.pop %v3197
        %v3254 = vrcp.pop %v3199
        %v3255 = vrcp.pop %v3201
        %v3256 = vrcp.pop %v3203
        %v3257 = vrcp.pop %v3205
        %v3258 = vrcp.pop %v3207
        %v3259 = vrcp.pop %v3209
        %v3260 = vrcp.pop %v3211
        %v3261 = vrcp.pop %v3213
        %v3262 = vrcp.pop %v3215
        %v3263 = vrcp.pop %v3217
        %v3264 = vrcp.pop %v3219
        %v3265 = vrcp.pop %v3221
        %v3266 = vrcp.pop %v3223
        %v3267 = vrcp.pop %v3225
        %v3268 = vrcp.pop %v3227
        %v3269 = vrcp.pop %v3229
        %v3270 = vrcp.pop %v3231
        %v3271 = vrcp.pop %v3233
        %v3272 = vrcp.pop %v3235
        %v3273 = vrcp.pop %v3237
        %v3274 = vrcp.pop %v3239
        %v3275 = vrcp.pop %v3241
        %v3276 = vrcp.pop %v3243
        %v3277 = vrcp.pop %v3245
        %v3278 = vmul.f32 %v3183, %v3246
        %v3279 = vmul.f32 %v3185, %v3247
        %v3280 = vmul.f32 %v3187, %v3248
        %v3281 = vmul.f32 %v3189, %v3249
        %v3282 = vmul.f32 %v3191, %v3250
        %v3283 = vmul.f32 %v3193, %v3251
        %v3284 = vmul.f32 %v3195, %v3252
        %v3285 = vmul.f32 %v3197, %v3253
        %v3286 = vmul.f32 %v3199, %v3254
        %v3287 = vmul.f32 %v3201, %v3255
        %v3288 = vmul.f32 %v3203, %v3256
        %v3289 = vmul.f32 %v3205, %v3257
        %v3290 = vmul.f32 %v3207, %v3258
        %v3291 = vmul.f32 %v3209, %v3259
        %v3292 = vmul.f32 %v3211, %v3260
        %v3293 = vmul.f32 %v3213, %v3261
        %v3294 = vmul.f32 %v3215, %v3262
        %v3295 = vmul.f32 %v3217, %v3263
        %v3296 = vmul.f32 %v3219, %v3264
        %v3297 = vmul.f32 %v3221, %v3265
        %v3298 = vmul.f32 %v3223, %v3266
        %v3299 = vmul.f32 %v3225, %v3267
        %v3300 = vmul.f32 %v3227, %v3268
        %v3301 = vmul.f32 %v3229, %v3269
        %v3302 = vmul.f32 %v3231, %v3270
        %v3303 = vmul.f32 %v3233, %v3271
        %v3304 = vmul.f32 %v3235, %v3272
        %v3305 = vmul.f32 %v3237, %v3273
        %v3306 = vmul.f32 %v3239, %v3274
        %v3307 = vmul.f32 %v3241, %v3275
        %v3308 = vmul.f32 %v3243, %v3276
        %v3309 = vmul.f32 %v3245, %v3277
        %v3310 = vsub.f32 2.0, %v3278
        %v3311 = vsub.f32 2.0, %v3279
        %v3312 = vsub.f32 2.0, %v3280
        %v3313 = vsub.f32 2.0, %v3281
        %v3314 = vsub.f32 2.0, %v3282
        %v3315 = vsub.f32 2.0, %v3283
        %v3316 = vsub.f32 2.0, %v3284
        %v3317 = vsub.f32 2.0, %v3285
        %v3318 = vsub.f32 2.0, %v3286
        %v3319 = vsub.f32 2.0, %v3287
        %v3320 = vsub.f32 2.0, %v3288
        %v3321 = vsub.f32 2.0, %v3289
        %v3322 = vsub.f32 2.0, %v3290
        %v3323 = vsub.f32 2.0, %v3291
        %v3324 = vsub.f32 2.0, %v3292
        %v3325 = vsub.f32 2.0, %v3293
        %v3326 = vsub.f32 2.0, %v3294
        %v3327 = vsub.f32 2.0, %v3295
        %v3328 = vsub.f32 2.0, %v3296
        %v3329 = vsub.f32 2.0, %v3297
        %v3330 = vsub.f32 2.0, %v3298
        %v3331 = vsub.f32 2.0, %v3299
        %v3332 = vsub.f32 2.0, %v3300
        %v3333 = vsub.f32 2.0, %v3301
        %v3334 = vsub.f32 2.0, %v3302
        %v3335 = vsub.f32 2.0, %v3303
        %v3336 = vsub.f32 2.0, %v3304
        %v3337 = vsub.f32 2.0, %v3305
        %v3338 = vsub.f32 2.0, %v3306
        %v3339 = vsub.f32 2.0, %v3307
        %v3340 = vsub.f32 2.0, %v3308
        %v3341 = vsub.f32 2.0, %v3309
        %v3342 = vmul.f32 %v3246, %v3310
        %v3343 = vmul.f32 %v3247, %v3311
        %v3344 = vmul.f32 %v3248, %v3312
        %v3345 = vmul.f32 %v3249, %v3313
        %v3346 = vmul.f32 %v3250, %v3314
        %v3347 = vmul.f32 %v3251, %v3315
        %v3348 = vmul.f32 %v3252, %v3316
        %v3349 = vmul.f32 %v3253, %v3317
        %v3350 = vmul.f32 %v3254, %v3318
        %v3351 = vmul.f32 %v3255, %v3319
        %v3352 = vmul.f32 %v3256, %v3320
        %v3353 = vmul.f32 %v3257, %v3321
        %v3354 = vmul.f32 %v3258, %v3322
        %v3355 = vmul.f32 %v3259, %v3323
        %v3356 = vmul.f32 %v3260, %v3324
        %v3357 = vmul.f32 %v3261, %v3325
        %v3358 = vmul.f32 %v3262, %v3326
        %v3359 = vmul.f32 %v3263, %v3327
        %v3360 = vmul.f32 %v3264, %v3328
        %v3361 = vmul.f32 %v3265, %v3329
        %v3362 = vmul.f32 %v3266, %v3330
        %v3363 = vmul.f32 %v3267, %v3331
        %v3364 = vmul.f32 %v3268, %v3332
        %v3365 = vmul.f32 %v3269, %v3333
        %v3366 = vmul.f32 %v3270, %v3334
        %v3367 = vmul.f32 %v3271, %v3335
        %v3368 = vmul.f32 %v3272, %v3336
        %v3369 = vmul.f32 %v3273, %v3337
        %v3370 = vmul.f32 %v3274, %v3338
        %v3371 = vmul.f32 %v3275, %v3339
        %v3372 = vmul.f32 %v3276, %v3340
        %v3373 = vmul.f32 %v3277, %v3341
        %v3374 = vmul.f32 %v3119, %v3342
        %v3375 = vmul.f32 %v3121, %v3343
        %v3376 = vmul.f32 %v3123, %v3344
        %v3377 = vmul.f32 %v3125, %v3345
        %v3378 = vmul.f32 %v3127, %v3346
        %v3379 = vmul.f32 %v3129, %v3347
        %v3380 = vmul.f32 %v3131, %v3348
        %v3381 = vmul.f32 %v3133, %v3349
        %v3382 = vmul.f32 %v3135, %v3350
        %v3383 = vmul.f32 %v3137, %v3351
        %v3384 = vmul.f32 %v3139, %v3352
        %v3385 = vmul.f32 %v3141, %v3353
        %v3386 = vmul.f32 %v3143, %v3354
        %v3387 = vmul.f32 %v3145, %v3355
        %v3388 = vmul.f32 %v3147, %v3356
        %v3389 = vmul.f32 %v3149, %v3357
        %v3390 = vmul.f32 %v3151, %v3358
        %v3391 = vmul.f32 %v3153, %v3359
        %v3392 = vmul.f32 %v3155, %v3360
        %v3393 = vmul.f32 %v3157, %v3361
        %v3394 = vmul.f32 %v3159, %v3362
        %v3395 = vmul.f32 %v3161, %v3363
        %v3396 = vmul.f32 %v3163, %v3364
        %v3397 = vmul.f32 %v3165, %v3365
        %v3398 = vmul.f32 %v3167, %v3366
        %v3399 = vmul.f32 %v3169, %v3367
        %v3400 = vmul.f32 %v3171, %v3368
        %v3401 = vmul.f32 %v3173, %v3369
        %v3402 = vmul.f32 %v3175, %v3370
        %v3403 = vmul.f32 %v3177, %v3371
        %v3404 = vmul.f32 %v3179, %v3372
        %v3405 = vmul.f32 %v3181, %v3373
        %vm3406 = vcmask 130048
        %3407 = vst.msk [vmem:[%s330] sm:$0xff] %vm3406, %v3374
        %3408 = vst.msk [vmem:[%s330 + $0x8] sm:$0xff] %vm3406, %v3375
        %3409 = vst.msk [vmem:[%s330 + $0x10] sm:$0xff] %vm3406, %v3376
        %3410 = vst.msk [vmem:[%s330 + $0x18] sm:$0xff] %vm3406, %v3377
        %3411 = vst.msk [vmem:[%s330 + $0x20] sm:$0xff] %vm3406, %v3378
        %3412 = vst.msk [vmem:[%s330 + $0x28] sm:$0xff] %vm3406, %v3379
        %3413 = vst.msk [vmem:[%s330 + $0x30] sm:$0xff] %vm3406, %v3380
        %3414 = vst.msk [vmem:[%s330 + $0x38] sm:$0xff] %vm3406, %v3381
        %3415 = vst.msk [vmem:[%s330 + $0x40] sm:$0xff] %vm3406, %v3382
        %3416 = vst.msk [vmem:[%s330 + $0x48] sm:$0xff] %vm3406, %v3383
        %3417 = vst.msk [vmem:[%s330 + $0x50] sm:$0xff] %vm3406, %v3384
        %3418 = vst.msk [vmem:[%s330 + $0x58] sm:$0xff] %vm3406, %v3385
        %3419 = vst.msk [vmem:[%s330 + $0x60] sm:$0xff] %vm3406, %v3386
        %3420 = vst.msk [vmem:[%s330 + $0x68] sm:$0xff] %vm3406, %v3387
        %3421 = vst.msk [vmem:[%s330 + $0x70] sm:$0xff] %vm3406, %v3388
        %3422 = vst.msk [vmem:[%s330 + $0x78] sm:$0xff] %vm3406, %v3389
        %3423 = vst.msk [vmem:[%s330 + $0x80] sm:$0xff] %vm3406, %v3390
        %3424 = vst.msk [vmem:[%s330 + $0x88] sm:$0xff] %vm3406, %v3391
        %3425 = vst.msk [vmem:[%s330 + $0x90] sm:$0xff] %vm3406, %v3392
        %3426 = vst.msk [vmem:[%s330 + $0x98] sm:$0xff] %vm3406, %v3393
        %3427 = vst.msk [vmem:[%s330 + $0xa0] sm:$0xff] %vm3406, %v3394
        %3428 = vst.msk [vmem:[%s330 + $0xa8] sm:$0xff] %vm3406, %v3395
        %3429 = vst.msk [vmem:[%s330 + $0xb0] sm:$0xff] %vm3406, %v3396
        %3430 = vst.msk [vmem:[%s330 + $0xb8] sm:$0xff] %vm3406, %v3397
        %3431 = vst.msk [vmem:[%s330 + $0xc0] sm:$0xff] %vm3406, %v3398
        %3432 = vst.msk [vmem:[%s330 + $0xc8] sm:$0xff] %vm3406, %v3399
        %3433 = vst.msk [vmem:[%s330 + $0xd0] sm:$0xff] %vm3406, %v3400
        %3434 = vst.msk [vmem:[%s330 + $0xd8] sm:$0xff] %vm3406, %v3401
        %3435 = vst.msk [vmem:[%s330 + $0xe0] sm:$0xff] %vm3406, %v3402
        %3436 = vst.msk [vmem:[%s330 + $0xe8] sm:$0xff] %vm3406, %v3403
        %3437 = vst.msk [vmem:[%s330 + $0xf0] sm:$0xff] %vm3406, %v3404
        %3438 = vst.msk [vmem:[%s330 + $0xf8] sm:$0xff] %vm3406, %v3405
        %s3439 = smul.u32 32, %s22
        %p3440 = scmp.lt.s32.totalorder %s3439, 63
        %s3441 = scalar_select %p3440, %s3439, 63
        %s3442 = smul.addr %s3441, 8
        %s3443 = scalar_lea.vmem %s6, %s3442
        // Predicated region
        $region65: #{tpu_custom_call.1} parent=43 // pred_check
          %p3444 = pneg %p171
        $region66: #{tpu_custom_call.1} parent=43 // pred_check_branch
          %3446 = sbr.rel (%p3444) target = $region68
        $region67: #{tpu_custom_call.1} parent=43 // pred_region
          %s3447 = smul.u32 32, %s22
        $region68: #{tpu_custom_call.1} parent=43 // pred_fallthru
          _
      $region44: #{tpu_custom_call.1} parent=5 // pred_fallthru
        _
      %p3448 = scmp.le.s32.totalorder 2, %s17
      // Predicated region
      $region69: #{tpu_custom_call.1} parent=5 // pred_check
        %p3449 = pneg %p3448
      $region70: #{tpu_custom_call.1} parent=5 // pred_check_branch
        %3451 = sbr.rel (%p3449) target = $region72
      $region71: #{tpu_custom_call.1} parent=5 // pred_region
        %s3452 = ssub.s32 %s17, 2
        // Predicated region
        $region73: #{tpu_custom_call.1} parent=71 // pred_check
          %p3453 = pneg %p177
        $region74: #{tpu_custom_call.1} parent=71 // pred_check_branch
          %3455 = sbr.rel (%p3453) target = $region76
        $region75: #{tpu_custom_call.1} parent=71 // pred_region
          %s3456 = smul.u32 32, %s23
          %p3457 = scmp.lt.s32.totalorder %s3456, 63
          %s3458 = scalar_select %p3457, %s3456, 63
          %s3459 = smul.addr %s3458, 8
          %s3460 = scalar_lea.vmem %s6, %s3459
        $region76: #{tpu_custom_call.1} parent=71 // pred_fallthru
          _
      $region72: #{tpu_custom_call.1} parent=5 // pred_fallthru
        _
    $region6: #{tpu_custom_call.1} parent=1 // loop_footer
      %s21 = sadd.s32 1, %s17
    $region7: #{tpu_custom_call.1} parent=1 // loop_footer_branch
      %16 = sbr.rel target = $region3
    $region8: #{tpu_custom_call.1} parent=1 // loop_exit
      _
    %3461 = vsyncpa [#allocation3], 1
    %s3462 = scalar_lea.sflag [#allocation3], 1
    %3463 = vsyncpa %s3462, 1
    %3464 = vsyncpa [#allocation5], 1
    %3465 = vsyncpa [#allocation8], 1

</llo_original>
